<compile_context>
chip_gen: v5e
topology: v5e:2x2
jax: 0.10.0
libtpu: 0.0.40
codegen_flags: <defaults>
</compile_context>

<pallas_src>
import functools
import numpy as np
import jax
import jax.numpy as jnp
from jax import lax
from jax.experimental import pallas as pl
from jax.experimental.pallas import tpu as pltpu


# ---------------------------------------------------------------------------
# Pallas kernel
# ---------------------------------------------------------------------------
def dismix_decoder_kernel(pitch_ref, timbre_ref, w_ref, b_ref, out_ref, *, hidden_dim):
    # Packed weight buffer w_ref: [15, R, C] (zero-padded slabs)
    #   0: w_scale [Tm,P]      1: w_shift [Tm,P]
    #   2-4:  layer-0 fused input weights per gate      [P, 2H]   (fwd | bwd in lanes)
    #   5-7:  layer-0 block-diag recurrent per gate     [2H, 2H]
    #   8-10: layer-1 block-diag recurrent per gate     [2H, 2H]
    #   11-13: layer-1 block-diag input weights per gate [4H, 2H]
    #   14: final linear [2H, out]
    # Packed bias buffer b_ref: [11, C]
    #   0 b_scale, 1 b_shift,
    #   2-4 layer-0 fused gate biases (r: b_ir+b_hr, z: b_iz+b_hz, n: b_in), 5 layer-0 b_hn,
    #   6-8 layer-1 fused gate biases, 9 layer-1 b_hn, 10 b_lin
    B, P = pitch_ref.shape
    Tm = timbre_ref.shape[1]
    TB, out_dim = out_ref.shape
    T = TB // B
    H = hidden_dim
    H2, H4 = 2 * H, 4 * H
    f32 = jnp.float32

    pitch = pitch_ref[...]
    timbre = timbre_ref[...]

    # ---------------- FiLM ----------------
    scale = jnp.dot(timbre, w_ref[0, :Tm, :P], preferred_element_type=f32) + b_ref[0:1, :P]
    shift = jnp.dot(timbre, w_ref[1, :Tm, :P], preferred_element_type=f32) + b_ref[1:2, :P]
    film = scale * pitch + shift                          # [B, P]

    # ------------- fused bidirectional GRU cell (block-diag recurrent weights) -
    def cell(h, gi_r, gi_z, gi_n, w_r, w_z, w_n, bhn):
        gh_r = jnp.dot(h, w_r, preferred_element_type=f32)
        gh_z = jnp.dot(h, w_z, preferred_element_type=f32)
        gh_n = jnp.dot(h, w_n, preferred_element_type=f32) + bhn
        r = jax.nn.sigmoid(gi_r + gh_r)                   # gi_r already holds b_ir + b_hr
        z = jax.nn.sigmoid(gi_z + gh_z)                   # gi_z already holds b_iz + b_hz
        n = jnp.tanh(gi_n + r * gh_n)                     # gi_n holds b_in, gh_n holds b_hn
        return n + z * (h - n)                            # == (1-z)*n + z*h

    # ---------------- layer 0: frame-invariant fused input gates (one-time) ----
    gi0 = [jnp.dot(film, w_ref[2 + g, :P, :H2], preferred_element_type=f32)
           + b_ref[2 + g:3 + g, :H2] for g in range(3)]
    bhn0 = jnp.broadcast_to(b_ref[5:6, :H2], (B, H2))     # hoisted broadcast
    whh0 = [w_ref[5 + g, :H2, :H2] for g in range(3)]

    # Fused recurrence: lanes [0:H] run the forward chain (frames 0..T-1),
    # lanes [H:2H] run the backward chain (frames T-1..0), on one MXU stream.
    h = jnp.zeros((B, H2), f32)
    hs0 = []
    for _ in range(T):                                    # T is small -> static unroll
        h = cell(h, gi0[0], gi0[1], gi0[2], whh0[0], whh0[1], whh0[2], bhn0)
        hs0.append(h)                                     # stays in registers
    # hs0[t][:, :H] = fwd hidden at frame t ; hs0[t][:, H:] = bwd hidden at frame T-1-t

    # ---------------- layer 1: batched input-gate precompute (off serial path) -
    hf0 = jnp.concatenate([h[:, :H] for h in hs0], axis=0)         # frames 0..T-1 (fwd)
    hb0 = jnp.concatenate([h[:, H:] for h in hs0[::-1]], axis=0)   # frames 0..T-1 (bwd)
    x = jnp.concatenate([hf0, hb0], axis=-1)                       # [T*B, 2H]  layer-0 output
    hf0r = jnp.concatenate([h[:, :H] for h in hs0[::-1]], axis=0)  # frames T-1..0 (fwd)
    hb0r = jnp.concatenate([h[:, H:] for h in hs0], axis=0)        # frames T-1..0 (bwd)
    x_rev = jnp.concatenate([hf0r, hb0r], axis=-1)                 # [T*B, 2H]  frame-reversed
    x_cat = jnp.concatenate([x, x_rev], axis=-1)                   # [T*B, 4H]

    gi1 = [jnp.dot(x_cat, w_ref[11 + g, :H4, :H2], preferred_element_type=f32)
           + b_ref[6 + g:7 + g, :H2] for g in range(3)]            # [T*B, 2H] per gate
    bhn1 = jnp.broadcast_to(b_ref[9:10, :H2], (B, H2))
    whh1 = [w_ref[8 + g, :H2, :H2] for g in range(3)]

    # per-step fused gate slices (register slices, hoisted out of the chain)
    gi1_steps = [[g_[t * B:(t + 1) * B, :] for g_ in gi1] for t in range(T)]

    # ---------------- layer 1 fused recurrence --------------------------------
    h = jnp.zeros((B, H2), f32)
    hs1 = []
    for t in range(T):
        gr, gz, gn = gi1_steps[t]
        h = cell(h, gr, gz, gn, whh1[0], whh1[1], whh1[2], bhn1)
        hs1.append(h)
    # hs1[t][:, :H] = fwd hidden at frame t ; hs1[t][:, H:] = bwd hidden at frame T-1-t

    # ---------------- hoisted final Linear over all frames, single store ------
    yf = jnp.concatenate([h[:, :H] for h in hs1], axis=0)          # [T*B, H]
    yb = jnp.concatenate([h[:, H:] for h in hs1[::-1]], axis=0)    # [T*B, H]
    w_lin = w_ref[14, :H2, :out_dim]
    y = (jnp.dot(yf, w_lin[:H, :], preferred_element_type=f32)
         + jnp.dot(yb, w_lin[H:, :], preferred_element_type=f32)
         + b_ref[10:11, :out_dim])
    out_ref[...] = y


# ---------------------------------------------------------------------------
# Wrapper: one-time parameter packing (block-diag fusion + single buffers)
# ---------------------------------------------------------------------------
def pack_params(params, *, pitch_dim, timbre_dim, gru_hidden_dim, output_dim):
    P, Tm, H, out = pitch_dim, timbre_dim, gru_hidden_dim, output_dim
    H2, H4 = 2 * H, 4 * H
    R = max(Tm, P, H2, H4)
    C = max(P, H2, out)

    def pad2(w):
        r, c = w.shape
        return jnp.pad(w.astype(jnp.float32), ((0, R - r), (0, C - c)))

    def gate(w, g):                       # [in, 3H] -> per-gate [in, H]
        return w[:, g * H:(g + 1) * H]

    weights = [pad2(params["w_scale"]), pad2(params["w_shift"])]
    # layer-0 fused input weights per gate: [P, 2H] = [wih_f_g | wih_b_g]
    for g in range(3):
        weights.append(pad2(jnp.concatenate(
            [gate(params["wih0f"], g), gate(params["wih0b"], g)], axis=1)))
    # block-diagonal recurrent weights per layer / gate: [2H, 2H]
    for layer in (0, 1):
        for g in range(3):
            wf, wb = gate(params[f"whh{layer}f"], g), gate(params[f"whh{layer}b"], g)
            blk = jnp.zeros((H2, H2), jnp.float32).at[:H, :H].set(wf).at[H:, H:].set(wb)
            weights.append(pad2(blk))
    # layer-1 block-diagonal input weights per gate: [4H, 2H]
    for g in range(3):
        wf, wb = gate(params["wih1f"], g), gate(params["wih1b"], g)  # each [2H, H]
        blk = jnp.zeros((H4, H2), jnp.float32).at[:H2, :H].set(wf).at[H2:, H:].set(wb)
        weights.append(pad2(blk))
    weights.append(pad2(params["w_lin"]))
    w_all = jnp.stack(weights, axis=0)                    # [15, R, C]

    def padrow(b):
        return jnp.pad(b.astype(jnp.float32), ((0, 0), (0, C - b.shape[1])))

    def fuse(bf, bb, g):
        return jnp.concatenate([bf[:, g * H:(g + 1) * H], bb[:, g * H:(g + 1) * H]], axis=1)

    rows = [padrow(params["b_scale"]), padrow(params["b_shift"])]
    for layer in (0, 1):
        bif, bib = params[f"bih{layer}f"], params[f"bih{layer}b"]
        bhf, bhb = params[f"bhh{layer}f"], params[f"bhh{layer}b"]
        rows.append(padrow(fuse(bif, bib, 0) + fuse(bhf, bhb, 0)))   # r: b_ir + b_hr
        rows.append(padrow(fuse(bif, bib, 1) + fuse(bhf, bhb, 1)))   # z: b_iz + b_hz
        rows.append(padrow(fuse(bif, bib, 2)))                       # n: b_in only
        rows.append(padrow(fuse(bhf, bhb, 2)))                       # b_hn
    rows.append(padrow(params["b_lin"]))
    b_all = jnp.concatenate(rows, axis=0)                 # [11, C]
    return w_all, b_all


@functools.partial(jax.jit, static_argnames=("num_frames", "gru_hidden_dim", "output_dim"))
def dismix_decoder_forward(pitch, timbre, w_all, b_all, *,
                           num_frames, gru_hidden_dim, output_dim):
    B = pitch.shape[0]
    T = num_frames
    kernel = functools.partial(dismix_decoder_kernel, hidden_dim=gru_hidden_dim)
    out_flat = pl.pallas_call(
        kernel,
        out_shape=jax.ShapeDtypeStruct((T * B, output_dim), jnp.float32),
        in_specs=[pl.BlockSpec(memory_space=pltpu.MemorySpace.VMEM)] * 4,
        out_specs=pl.BlockSpec(memory_space=pltpu.MemorySpace.VMEM),
        compiler_params=pltpu.CompilerParams(vmem_limit_bytes=32 * 1024 * 1024),
    )(pitch, timbre, w_all, b_all)
    # Kernel emits [T*B, output_dim] (frame-major, batch-minor). Match PyTorch's
    # `self.linear(output).transpose(1, 2)` -> [B, output_dim, num_frames].
    return jnp.transpose(out_flat.reshape(T, B, output_dim), (1, 2, 0))


# ---------------------------------------------------------------------------
# Deterministic parameter init (PyTorch-style uniform bounds; synthetic)
# ---------------------------------------------------------------------------
def init_params(key, pitch_dim, timbre_dim, H, output_dim):
    def u(key, shape, bound):
        return jax.random.uniform(key, shape, jnp.float32, -bound, bound)

    keys = iter(jax.random.split(key, 64))
    p = {}
    kb = 1.0 / np.sqrt(timbre_dim)
    p["w_scale"] = u(next(keys), (timbre_dim, pitch_dim), kb)
    p["b_scale"] = u(next(keys), (1, pitch_dim), kb)
    p["w_shift"] = u(next(keys), (timbre_dim, pitch_dim), kb)
    p["b_shift"] = u(next(keys), (1, pitch_dim), kb)

    gb = 1.0 / np.sqrt(H)
    def gru_dir(in_dim):
        return dict(
            wih=u(next(keys), (in_dim, 3 * H), gb),
            whh=u(next(keys), (H, 3 * H), gb),
            bih=u(next(keys), (1, 3 * H), gb),
            bhh=u(next(keys), (1, 3 * H), gb),
        )

    for layer, in_dim in ((0, pitch_dim), (1, 2 * H)):
        for tag in ("f", "b"):
            d = gru_dir(in_dim)
            p[f"wih{layer}{tag}"] = d["wih"]
            p[f"whh{layer}{tag}"] = d["whh"]
            p[f"bih{layer}{tag}"] = d["bih"]
            p[f"bhh{layer}{tag}"] = d["bhh"]

    lb = 1.0 / np.sqrt(2 * H)
    p["w_lin"] = u(next(keys), (2 * H, output_dim), lb)
    p["b_lin"] = u(next(keys), (1, output_dim), lb)
    return p


# ---------------------------------------------------------------------------
# Pure-JAX reference (same math) for a sanity check
# ---------------------------------------------------------------------------
def _ref_gru_cell(x, h, wih, whh, bih, bhh, H):
    hi = jnp.dot(x, wih, precision=lax.Precision.HIGHEST) + bih
    hh = jnp.dot(h, whh, precision=lax.Precision.HIGHEST) + bhh
    r = jax.nn.sigmoid(hi[:, :H] + hh[:, :H])
    z = jax.nn.sigmoid(hi[:, H:2 * H] + hh[:, H:2 * H])
    n = jnp.tanh(hi[:, 2 * H:] + r * hh[:, 2 * H:])
    return (1.0 - z) * n + z * h


def reference_forward(pitch, timbre, p, *, num_frames, H, output_dim):
    B = pitch.shape[0]
    scale = jnp.dot(timbre, p["w_scale"], precision=lax.Precision.HIGHEST) + p["b_scale"]
    shift = jnp.dot(timbre, p["w_shift"], precision=lax.Precision.HIGHEST) + p["b_shift"]
    film = scale * pitch + shift
    x_seq = jnp.broadcast_to(film[:, None, :], (B, num_frames, film.shape[-1]))

    def run_layer(x_seq, layer):
        T = x_seq.shape[1]
        outs_f, outs_b = [], []
        h = jnp.zeros((B, H), jnp.float32)
        for t in range(T):
            h = _ref_gru_cell(x_seq[:, t], h, p[f"wih{layer}f"], p[f"whh{layer}f"],
                              p[f"bih{layer}f"], p[f"bhh{layer}f"], H)
            outs_f.append(h)
        h = jnp.zeros((B, H), jnp.float32)
        for t in reversed(range(T)):
            h = _ref_gru_cell(x_seq[:, t], h, p[f"wih{layer}b"], p[f"whh{layer}b"],
                              p[f"bih{layer}b"], p[f"bhh{layer}b"], H)
            outs_b.append(h)
        outs_b = outs_b[::-1]
        return jnp.stack([jnp.concatenate([f, b], -1) for f, b in zip(outs_f, outs_b)], axis=1)

    y = run_layer(x_seq, 0)
    y = run_layer(y, 1)
    y = jnp.dot(y, p["w_lin"], precision=lax.Precision.HIGHEST) + p["b_lin"]
    return jnp.transpose(y, (0, 2, 1))


# ---------------------------------------------------------------------------
# Main
# ---------------------------------------------------------------------------
if __name__ == "__main__":
    B = 2
    PITCH_DIM = 16
    TIMBRE_DIM = 16
    GRU_HIDDEN = 32
    OUTPUT_DIM = 32
    NUM_FRAMES = 8

    key = jax.random.PRNGKey(0)
    k_pitch, k_timbre, k_params = jax.random.split(key, 3)

    pitch = jax.random.normal(k_pitch, (B, PITCH_DIM), jnp.float32)
    timbre = jax.random.normal(k_timbre, (B, TIMBRE_DIM), jnp.float32)
    params = init_params(k_params, PITCH_DIM, TIMBRE_DIM, GRU_HIDDEN, OUTPUT_DIM)

    # One-time packing (block-diag fusion + single weight/bias buffers).
    w_all, b_all = pack_params(params, pitch_dim=PITCH_DIM, timbre_dim=TIMBRE_DIM,
                               gru_hidden_dim=GRU_HIDDEN, output_dim=OUTPUT_DIM)
    w_all, b_all = jax.block_until_ready((w_all, b_all))

    out = dismix_decoder_forward(
        pitch, timbre, w_all, b_all,
        num_frames=NUM_FRAMES, gru_hidden_dim=GRU_HIDDEN, output_dim=OUTPUT_DIM)
    out = jax.block_until_ready(out)
    assert out.shape == (B, OUTPUT_DIM, NUM_FRAMES), out.shape

    ref = reference_forward(pitch, timbre, params,
                            num_frames=NUM_FRAMES, H=GRU_HIDDEN, output_dim=OUTPUT_DIM)
    ref = jax.block_until_ready(ref)
    np.testing.assert_allclose(np.asarray(out), np.asarray(ref), atol=2e-3, rtol=2e-3)

    print("KERNEL_OK")
</pallas_src>

<mosaic_0001>
module attributes {stable_mosaic.version = 11 : i64} {
  func.func @dismix_decoder_kernel(%arg0: memref<2x16xf32, #tpu.memory_space<vmem>>, %arg1: memref<2x16xf32, #tpu.memory_space<vmem>>, %arg2: memref<15x128x64xf32, #tpu.memory_space<vmem>>, %arg3: memref<11x64xf32, #tpu.memory_space<vmem>>, %arg4: memref<16x32xf32, #tpu.memory_space<vmem>>) attributes {dimension_semantics = [], scalar_prefetch = 0 : i64, scratch_operands = 0 : i64, tpu.core_type = #tpu.core_type<tc>} {
    %c0 = arith.constant 0 : index
    %c0_0 = arith.constant 0 : index
    %0 = vector.load %arg0[%c0, %c0_0] : memref<2x16xf32, #tpu.memory_space<vmem>>, vector<2x16xf32>
    %c0_1 = arith.constant 0 : index
    %c0_2 = arith.constant 0 : index
    %1 = vector.load %arg1[%c0_1, %c0_2] : memref<2x16xf32, #tpu.memory_space<vmem>>, vector<2x16xf32>
    %c0_3 = arith.constant 0 : index
    %c0_4 = arith.constant 0 : index
    %c0_5 = arith.constant 0 : index
    %2 = vector.load %arg2[%c0_3, %c0_4, %c0_5] : memref<15x128x64xf32, #tpu.memory_space<vmem>>, vector<1x16x16xf32>
    %3 = vector.shape_cast %2 : vector<1x16x16xf32> to vector<16x16xf32>
    %cst = arith.constant dense<0.000000e+00> : vector<2x16xf32>
    %4 = tpu.matmul %1, %3, %cst {dimension_numbers = #tpu.dot_dimension_numbers<[1], [0], [0], [1], [0, 0, 1, 1], [], []>} : vector<2x16xf32>, vector<16x16xf32>, vector<2x16xf32> -> vector<2x16xf32>
    %c0_6 = arith.constant 0 : index
    %c0_7 = arith.constant 0 : index
    %5 = vector.load %arg3[%c0_6, %c0_7] : memref<11x64xf32, #tpu.memory_space<vmem>>, vector<1x16xf32>
    %6 = vector.broadcast %5 : vector<1x16xf32> to vector<2x16xf32>
    %7 = arith.addf %4, %6 : vector<2x16xf32>
    %c1 = arith.constant 1 : index
    %c0_8 = arith.constant 0 : index
    %c0_9 = arith.constant 0 : index
    %8 = vector.load %arg2[%c1, %c0_8, %c0_9] : memref<15x128x64xf32, #tpu.memory_space<vmem>>, vector<1x16x16xf32>
    %9 = vector.shape_cast %8 : vector<1x16x16xf32> to vector<16x16xf32>
    %cst_10 = arith.constant dense<0.000000e+00> : vector<2x16xf32>
    %10 = tpu.matmul %1, %9, %cst_10 {dimension_numbers = #tpu.dot_dimension_numbers<[1], [0], [0], [1], [0, 0, 1, 1], [], []>} : vector<2x16xf32>, vector<16x16xf32>, vector<2x16xf32> -> vector<2x16xf32>
    %c1_11 = arith.constant 1 : index
    %c0_12 = arith.constant 0 : index
    %11 = vector.load %arg3[%c1_11, %c0_12] : memref<11x64xf32, #tpu.memory_space<vmem>>, vector<1x16xf32>
    %12 = vector.broadcast %11 : vector<1x16xf32> to vector<2x16xf32>
    %13 = arith.addf %10, %12 : vector<2x16xf32>
    %14 = arith.mulf %7, %0 : vector<2x16xf32>
    %15 = arith.addf %14, %13 : vector<2x16xf32>
    %c2 = arith.constant 2 : index
    %c0_13 = arith.constant 0 : index
    %c0_14 = arith.constant 0 : index
    %16 = vector.load %arg2[%c2, %c0_13, %c0_14] : memref<15x128x64xf32, #tpu.memory_space<vmem>>, vector<1x16x64xf32>
    %17 = vector.shape_cast %16 : vector<1x16x64xf32> to vector<16x64xf32>
    %cst_15 = arith.constant dense<0.000000e+00> : vector<2x64xf32>
    %18 = tpu.matmul %15, %17, %cst_15 {dimension_numbers = #tpu.dot_dimension_numbers<[1], [0], [0], [1], [0, 0, 1, 1], [], []>} : vector<2x16xf32>, vector<16x64xf32>, vector<2x64xf32> -> vector<2x64xf32>
    %c2_16 = arith.constant 2 : index
    %c0_17 = arith.constant 0 : index
    %19 = vector.load %arg3[%c2_16, %c0_17] : memref<11x64xf32, #tpu.memory_space<vmem>>, vector<1x64xf32>
    %20 = vector.broadcast %19 : vector<1x64xf32> to vector<2x64xf32>
    %21 = arith.addf %18, %20 : vector<2x64xf32>
    %c3 = arith.constant 3 : index
    %c0_18 = arith.constant 0 : index
    %c0_19 = arith.constant 0 : index
    %22 = vector.load %arg2[%c3, %c0_18, %c0_19] : memref<15x128x64xf32, #tpu.memory_space<vmem>>, vector<1x16x64xf32>
    %23 = vector.shape_cast %22 : vector<1x16x64xf32> to vector<16x64xf32>
    %cst_20 = arith.constant dense<0.000000e+00> : vector<2x64xf32>
    %24 = tpu.matmul %15, %23, %cst_20 {dimension_numbers = #tpu.dot_dimension_numbers<[1], [0], [0], [1], [0, 0, 1, 1], [], []>} : vector<2x16xf32>, vector<16x64xf32>, vector<2x64xf32> -> vector<2x64xf32>
    %c3_21 = arith.constant 3 : index
    %c0_22 = arith.constant 0 : index
    %25 = vector.load %arg3[%c3_21, %c0_22] : memref<11x64xf32, #tpu.memory_space<vmem>>, vector<1x64xf32>
    %26 = vector.broadcast %25 : vector<1x64xf32> to vector<2x64xf32>
    %27 = arith.addf %24, %26 : vector<2x64xf32>
    %c4 = arith.constant 4 : index
    %c0_23 = arith.constant 0 : index
    %c0_24 = arith.constant 0 : index
    %28 = vector.load %arg2[%c4, %c0_23, %c0_24] : memref<15x128x64xf32, #tpu.memory_space<vmem>>, vector<1x16x64xf32>
    %29 = vector.shape_cast %28 : vector<1x16x64xf32> to vector<16x64xf32>
    %cst_25 = arith.constant dense<0.000000e+00> : vector<2x64xf32>
    %30 = tpu.matmul %15, %29, %cst_25 {dimension_numbers = #tpu.dot_dimension_numbers<[1], [0], [0], [1], [0, 0, 1, 1], [], []>} : vector<2x16xf32>, vector<16x64xf32>, vector<2x64xf32> -> vector<2x64xf32>
    %c4_26 = arith.constant 4 : index
    %c0_27 = arith.constant 0 : index
    %31 = vector.load %arg3[%c4_26, %c0_27] : memref<11x64xf32, #tpu.memory_space<vmem>>, vector<1x64xf32>
    %32 = vector.broadcast %31 : vector<1x64xf32> to vector<2x64xf32>
    %33 = arith.addf %30, %32 : vector<2x64xf32>
    %c5 = arith.constant 5 : index
    %c0_28 = arith.constant 0 : index
    %34 = vector.load %arg3[%c5, %c0_28] : memref<11x64xf32, #tpu.memory_space<vmem>>, vector<1x64xf32>
    %35 = vector.shape_cast %34 : vector<1x64xf32> to vector<1x64xf32>
    %36 = vector.broadcast %35 : vector<1x64xf32> to vector<2x64xf32>
    %c5_29 = arith.constant 5 : index
    %c0_30 = arith.constant 0 : index
    %c0_31 = arith.constant 0 : index
    %37 = vector.load %arg2[%c5_29, %c0_30, %c0_31] : memref<15x128x64xf32, #tpu.memory_space<vmem>>, vector<1x64x64xf32>
    %38 = vector.shape_cast %37 : vector<1x64x64xf32> to vector<64x64xf32>
    %c6 = arith.constant 6 : index
    %c0_32 = arith.constant 0 : index
    %c0_33 = arith.constant 0 : index
    %39 = vector.load %arg2[%c6, %c0_32, %c0_33] : memref<15x128x64xf32, #tpu.memory_space<vmem>>, vector<1x64x64xf32>
    %40 = vector.shape_cast %39 : vector<1x64x64xf32> to vector<64x64xf32>
    %c7 = arith.constant 7 : index
    %c0_34 = arith.constant 0 : index
    %c0_35 = arith.constant 0 : index
    %41 = vector.load %arg2[%c7, %c0_34, %c0_35] : memref<15x128x64xf32, #tpu.memory_space<vmem>>, vector<1x64x64xf32>
    %42 = vector.shape_cast %41 : vector<1x64x64xf32> to vector<64x64xf32>
    %cst_36 = arith.constant 0.000000e+00 : f32
    %43 = vector.broadcast %cst_36 : f32 to vector<2x64xf32>
    %cst_37 = arith.constant dense<0.000000e+00> : vector<2x64xf32>
    %44 = tpu.matmul %43, %38, %cst_37 {dimension_numbers = #tpu.dot_dimension_numbers<[1], [0], [0], [1], [0, 0, 1, 1], [], []>} : vector<2x64xf32>, vector<64x64xf32>, vector<2x64xf32> -> vector<2x64xf32>
    %cst_38 = arith.constant dense<0.000000e+00> : vector<2x64xf32>
    %45 = tpu.matmul %43, %40, %cst_38 {dimension_numbers = #tpu.dot_dimension_numbers<[1], [0], [0], [1], [0, 0, 1, 1], [], []>} : vector<2x64xf32>, vector<64x64xf32>, vector<2x64xf32> -> vector<2x64xf32>
    %cst_39 = arith.constant dense<0.000000e+00> : vector<2x64xf32>
    %46 = tpu.matmul %43, %42, %cst_39 {dimension_numbers = #tpu.dot_dimension_numbers<[1], [0], [0], [1], [0, 0, 1, 1], [], []>} : vector<2x64xf32>, vector<64x64xf32>, vector<2x64xf32> -> vector<2x64xf32>
    %47 = arith.addf %46, %36 : vector<2x64xf32>
    %48 = arith.addf %21, %44 : vector<2x64xf32>
    %49 = arith.negf %48 : vector<2x64xf32>
    %50 = math.exp %49 : vector<2x64xf32>
    %cst_40 = arith.constant 1.000000e+00 : f32
    %51 = vector.broadcast %cst_40 : f32 to vector<2x64xf32>
    %52 = arith.addf %51, %50 : vector<2x64xf32>
    %53 = arith.divf %51, %52 : vector<2x64xf32>
    %54 = arith.addf %27, %45 : vector<2x64xf32>
    %55 = arith.negf %54 : vector<2x64xf32>
    %56 = math.exp %55 : vector<2x64xf32>
    %cst_41 = arith.constant 1.000000e+00 : f32
    %57 = vector.broadcast %cst_41 : f32 to vector<2x64xf32>
    %58 = arith.addf %57, %56 : vector<2x64xf32>
    %59 = arith.divf %57, %58 : vector<2x64xf32>
    %60 = arith.mulf %53, %47 : vector<2x64xf32>
    %61 = arith.addf %33, %60 : vector<2x64xf32>
    %62 = math.tanh %61 : vector<2x64xf32>
    %63 = arith.subf %43, %62 : vector<2x64xf32>
    %64 = arith.mulf %59, %63 : vector<2x64xf32>
    %65 = arith.addf %62, %64 : vector<2x64xf32>
    %cst_42 = arith.constant dense<0.000000e+00> : vector<2x64xf32>
    %66 = tpu.matmul %65, %38, %cst_42 {dimension_numbers = #tpu.dot_dimension_numbers<[1], [0], [0], [1], [0, 0, 1, 1], [], []>} : vector<2x64xf32>, vector<64x64xf32>, vector<2x64xf32> -> vector<2x64xf32>
    %cst_43 = arith.constant dense<0.000000e+00> : vector<2x64xf32>
    %67 = tpu.matmul %65, %40, %cst_43 {dimension_numbers = #tpu.dot_dimension_numbers<[1], [0], [0], [1], [0, 0, 1, 1], [], []>} : vector<2x64xf32>, vector<64x64xf32>, vector<2x64xf32> -> vector<2x64xf32>
    %cst_44 = arith.constant dense<0.000000e+00> : vector<2x64xf32>
    %68 = tpu.matmul %65, %42, %cst_44 {dimension_numbers = #tpu.dot_dimension_numbers<[1], [0], [0], [1], [0, 0, 1, 1], [], []>} : vector<2x64xf32>, vector<64x64xf32>, vector<2x64xf32> -> vector<2x64xf32>
    %69 = arith.addf %68, %36 : vector<2x64xf32>
    %70 = arith.addf %21, %66 : vector<2x64xf32>
    %71 = arith.negf %70 : vector<2x64xf32>
    %72 = math.exp %71 : vector<2x64xf32>
    %cst_45 = arith.constant 1.000000e+00 : f32
    %73 = vector.broadcast %cst_45 : f32 to vector<2x64xf32>
    %74 = arith.addf %73, %72 : vector<2x64xf32>
    %75 = arith.divf %73, %74 : vector<2x64xf32>
    %76 = arith.addf %27, %67 : vector<2x64xf32>
    %77 = arith.negf %76 : vector<2x64xf32>
    %78 = math.exp %77 : vector<2x64xf32>
    %cst_46 = arith.constant 1.000000e+00 : f32
    %79 = vector.broadcast %cst_46 : f32 to vector<2x64xf32>
    %80 = arith.addf %79, %78 : vector<2x64xf32>
    %81 = arith.divf %79, %80 : vector<2x64xf32>
    %82 = arith.mulf %75, %69 : vector<2x64xf32>
    %83 = arith.addf %33, %82 : vector<2x64xf32>
    %84 = math.tanh %83 : vector<2x64xf32>
    %85 = arith.subf %65, %84 : vector<2x64xf32>
    %86 = arith.mulf %81, %85 : vector<2x64xf32>
    %87 = arith.addf %84, %86 : vector<2x64xf32>
    %cst_47 = arith.constant dense<0.000000e+00> : vector<2x64xf32>
    %88 = tpu.matmul %87, %38, %cst_47 {dimension_numbers = #tpu.dot_dimension_numbers<[1], [0], [0], [1], [0, 0, 1, 1], [], []>} : vector<2x64xf32>, vector<64x64xf32>, vector<2x64xf32> -> vector<2x64xf32>
    %cst_48 = arith.constant dense<0.000000e+00> : vector<2x64xf32>
    %89 = tpu.matmul %87, %40, %cst_48 {dimension_numbers = #tpu.dot_dimension_numbers<[1], [0], [0], [1], [0, 0, 1, 1], [], []>} : vector<2x64xf32>, vector<64x64xf32>, vector<2x64xf32> -> vector<2x64xf32>
    %cst_49 = arith.constant dense<0.000000e+00> : vector<2x64xf32>
    %90 = tpu.matmul %87, %42, %cst_49 {dimension_numbers = #tpu.dot_dimension_numbers<[1], [0], [0], [1], [0, 0, 1, 1], [], []>} : vector<2x64xf32>, vector<64x64xf32>, vector<2x64xf32> -> vector<2x64xf32>
    %91 = arith.addf %90, %36 : vector<2x64xf32>
    %92 = arith.addf %21, %88 : vector<2x64xf32>
    %93 = arith.negf %92 : vector<2x64xf32>
    %94 = math.exp %93 : vector<2x64xf32>
    %cst_50 = arith.constant 1.000000e+00 : f32
    %95 = vector.broadcast %cst_50 : f32 to vector<2x64xf32>
    %96 = arith.addf %95, %94 : vector<2x64xf32>
    %97 = arith.divf %95, %96 : vector<2x64xf32>
    %98 = arith.addf %27, %89 : vector<2x64xf32>
    %99 = arith.negf %98 : vector<2x64xf32>
    %100 = math.exp %99 : vector<2x64xf32>
    %cst_51 = arith.constant 1.000000e+00 : f32
    %101 = vector.broadcast %cst_51 : f32 to vector<2x64xf32>
    %102 = arith.addf %101, %100 : vector<2x64xf32>
    %103 = arith.divf %101, %102 : vector<2x64xf32>
    %104 = arith.mulf %97, %91 : vector<2x64xf32>
    %105 = arith.addf %33, %104 : vector<2x64xf32>
    %106 = math.tanh %105 : vector<2x64xf32>
    %107 = arith.subf %87, %106 : vector<2x64xf32>
    %108 = arith.mulf %103, %107 : vector<2x64xf32>
    %109 = arith.addf %106, %108 : vector<2x64xf32>
    %cst_52 = arith.constant dense<0.000000e+00> : vector<2x64xf32>
    %110 = tpu.matmul %109, %38, %cst_52 {dimension_numbers = #tpu.dot_dimension_numbers<[1], [0], [0], [1], [0, 0, 1, 1], [], []>} : vector<2x64xf32>, vector<64x64xf32>, vector<2x64xf32> -> vector<2x64xf32>
    %cst_53 = arith.constant dense<0.000000e+00> : vector<2x64xf32>
    %111 = tpu.matmul %109, %40, %cst_53 {dimension_numbers = #tpu.dot_dimension_numbers<[1], [0], [0], [1], [0, 0, 1, 1], [], []>} : vector<2x64xf32>, vector<64x64xf32>, vector<2x64xf32> -> vector<2x64xf32>
    %cst_54 = arith.constant dense<0.000000e+00> : vector<2x64xf32>
    %112 = tpu.matmul %109, %42, %cst_54 {dimension_numbers = #tpu.dot_dimension_numbers<[1], [0], [0], [1], [0, 0, 1, 1], [], []>} : vector<2x64xf32>, vector<64x64xf32>, vector<2x64xf32> -> vector<2x64xf32>
    %113 = arith.addf %112, %36 : vector<2x64xf32>
    %114 = arith.addf %21, %110 : vector<2x64xf32>
    %115 = arith.negf %114 : vector<2x64xf32>
    %116 = math.exp %115 : vector<2x64xf32>
    %cst_55 = arith.constant 1.000000e+00 : f32
    %117 = vector.broadcast %cst_55 : f32 to vector<2x64xf32>
    %118 = arith.addf %117, %116 : vector<2x64xf32>
    %119 = arith.divf %117, %118 : vector<2x64xf32>
    %120 = arith.addf %27, %111 : vector<2x64xf32>
    %121 = arith.negf %120 : vector<2x64xf32>
    %122 = math.exp %121 : vector<2x64xf32>
    %cst_56 = arith.constant 1.000000e+00 : f32
    %123 = vector.broadcast %cst_56 : f32 to vector<2x64xf32>
    %124 = arith.addf %123, %122 : vector<2x64xf32>
    %125 = arith.divf %123, %124 : vector<2x64xf32>
    %126 = arith.mulf %119, %113 : vector<2x64xf32>
    %127 = arith.addf %33, %126 : vector<2x64xf32>
    %128 = math.tanh %127 : vector<2x64xf32>
    %129 = arith.subf %109, %128 : vector<2x64xf32>
    %130 = arith.mulf %125, %129 : vector<2x64xf32>
    %131 = arith.addf %128, %130 : vector<2x64xf32>
    %cst_57 = arith.constant dense<0.000000e+00> : vector<2x64xf32>
    %132 = tpu.matmul %131, %38, %cst_57 {dimension_numbers = #tpu.dot_dimension_numbers<[1], [0], [0], [1], [0, 0, 1, 1], [], []>} : vector<2x64xf32>, vector<64x64xf32>, vector<2x64xf32> -> vector<2x64xf32>
    %cst_58 = arith.constant dense<0.000000e+00> : vector<2x64xf32>
    %133 = tpu.matmul %131, %40, %cst_58 {dimension_numbers = #tpu.dot_dimension_numbers<[1], [0], [0], [1], [0, 0, 1, 1], [], []>} : vector<2x64xf32>, vector<64x64xf32>, vector<2x64xf32> -> vector<2x64xf32>
    %cst_59 = arith.constant dense<0.000000e+00> : vector<2x64xf32>
    %134 = tpu.matmul %131, %42, %cst_59 {dimension_numbers = #tpu.dot_dimension_numbers<[1], [0], [0], [1], [0, 0, 1, 1], [], []>} : vector<2x64xf32>, vector<64x64xf32>, vector<2x64xf32> -> vector<2x64xf32>
    %135 = arith.addf %134, %36 : vector<2x64xf32>
    %136 = arith.addf %21, %132 : vector<2x64xf32>
    %137 = arith.negf %136 : vector<2x64xf32>
    %138 = math.exp %137 : vector<2x64xf32>
    %cst_60 = arith.constant 1.000000e+00 : f32
    %139 = vector.broadcast %cst_60 : f32 to vector<2x64xf32>
    %140 = arith.addf %139, %138 : vector<2x64xf32>
    %141 = arith.divf %139, %140 : vector<2x64xf32>
    %142 = arith.addf %27, %133 : vector<2x64xf32>
    %143 = arith.negf %142 : vector<2x64xf32>
    %144 = math.exp %143 : vector<2x64xf32>
    %cst_61 = arith.constant 1.000000e+00 : f32
    %145 = vector.broadcast %cst_61 : f32 to vector<2x64xf32>
    %146 = arith.addf %145, %144 : vector<2x64xf32>
    %147 = arith.divf %145, %146 : vector<2x64xf32>
    %148 = arith.mulf %141, %135 : vector<2x64xf32>
    %149 = arith.addf %33, %148 : vector<2x64xf32>
    %150 = math.tanh %149 : vector<2x64xf32>
    %151 = arith.subf %131, %150 : vector<2x64xf32>
    %152 = arith.mulf %147, %151 : vector<2x64xf32>
    %153 = arith.addf %150, %152 : vector<2x64xf32>
    %cst_62 = arith.constant dense<0.000000e+00> : vector<2x64xf32>
    %154 = tpu.matmul %153, %38, %cst_62 {dimension_numbers = #tpu.dot_dimension_numbers<[1], [0], [0], [1], [0, 0, 1, 1], [], []>} : vector<2x64xf32>, vector<64x64xf32>, vector<2x64xf32> -> vector<2x64xf32>
    %cst_63 = arith.constant dense<0.000000e+00> : vector<2x64xf32>
    %155 = tpu.matmul %153, %40, %cst_63 {dimension_numbers = #tpu.dot_dimension_numbers<[1], [0], [0], [1], [0, 0, 1, 1], [], []>} : vector<2x64xf32>, vector<64x64xf32>, vector<2x64xf32> -> vector<2x64xf32>
    %cst_64 = arith.constant dense<0.000000e+00> : vector<2x64xf32>
    %156 = tpu.matmul %153, %42, %cst_64 {dimension_numbers = #tpu.dot_dimension_numbers<[1], [0], [0], [1], [0, 0, 1, 1], [], []>} : vector<2x64xf32>, vector<64x64xf32>, vector<2x64xf32> -> vector<2x64xf32>
    %157 = arith.addf %156, %36 : vector<2x64xf32>
    %158 = arith.addf %21, %154 : vector<2x64xf32>
    %159 = arith.negf %158 : vector<2x64xf32>
    %160 = math.exp %159 : vector<2x64xf32>
    %cst_65 = arith.constant 1.000000e+00 : f32
    %161 = vector.broadcast %cst_65 : f32 to vector<2x64xf32>
    %162 = arith.addf %161, %160 : vector<2x64xf32>
    %163 = arith.divf %161, %162 : vector<2x64xf32>
    %164 = arith.addf %27, %155 : vector<2x64xf32>
    %165 = arith.negf %164 : vector<2x64xf32>
    %166 = math.exp %165 : vector<2x64xf32>
    %cst_66 = arith.constant 1.000000e+00 : f32
    %167 = vector.broadcast %cst_66 : f32 to vector<2x64xf32>
    %168 = arith.addf %167, %166 : vector<2x64xf32>
    %169 = arith.divf %167, %168 : vector<2x64xf32>
    %170 = arith.mulf %163, %157 : vector<2x64xf32>
    %171 = arith.addf %33, %170 : vector<2x64xf32>
    %172 = math.tanh %171 : vector<2x64xf32>
    %173 = arith.subf %153, %172 : vector<2x64xf32>
    %174 = arith.mulf %169, %173 : vector<2x64xf32>
    %175 = arith.addf %172, %174 : vector<2x64xf32>
    %cst_67 = arith.constant dense<0.000000e+00> : vector<2x64xf32>
    %176 = tpu.matmul %175, %38, %cst_67 {dimension_numbers = #tpu.dot_dimension_numbers<[1], [0], [0], [1], [0, 0, 1, 1], [], []>} : vector<2x64xf32>, vector<64x64xf32>, vector<2x64xf32> -> vector<2x64xf32>
    %cst_68 = arith.constant dense<0.000000e+00> : vector<2x64xf32>
    %177 = tpu.matmul %175, %40, %cst_68 {dimension_numbers = #tpu.dot_dimension_numbers<[1], [0], [0], [1], [0, 0, 1, 1], [], []>} : vector<2x64xf32>, vector<64x64xf32>, vector<2x64xf32> -> vector<2x64xf32>
    %cst_69 = arith.constant dense<0.000000e+00> : vector<2x64xf32>
    %178 = tpu.matmul %175, %42, %cst_69 {dimension_numbers = #tpu.dot_dimension_numbers<[1], [0], [0], [1], [0, 0, 1, 1], [], []>} : vector<2x64xf32>, vector<64x64xf32>, vector<2x64xf32> -> vector<2x64xf32>
    %179 = arith.addf %178, %36 : vector<2x64xf32>
    %180 = arith.addf %21, %176 : vector<2x64xf32>
    %181 = arith.negf %180 : vector<2x64xf32>
    %182 = math.exp %181 : vector<2x64xf32>
    %cst_70 = arith.constant 1.000000e+00 : f32
    %183 = vector.broadcast %cst_70 : f32 to vector<2x64xf32>
    %184 = arith.addf %183, %182 : vector<2x64xf32>
    %185 = arith.divf %183, %184 : vector<2x64xf32>
    %186 = arith.addf %27, %177 : vector<2x64xf32>
    %187 = arith.negf %186 : vector<2x64xf32>
    %188 = math.exp %187 : vector<2x64xf32>
    %cst_71 = arith.constant 1.000000e+00 : f32
    %189 = vector.broadcast %cst_71 : f32 to vector<2x64xf32>
    %190 = arith.addf %189, %188 : vector<2x64xf32>
    %191 = arith.divf %189, %190 : vector<2x64xf32>
    %192 = arith.mulf %185, %179 : vector<2x64xf32>
    %193 = arith.addf %33, %192 : vector<2x64xf32>
    %194 = math.tanh %193 : vector<2x64xf32>
    %195 = arith.subf %175, %194 : vector<2x64xf32>
    %196 = arith.mulf %191, %195 : vector<2x64xf32>
    %197 = arith.addf %194, %196 : vector<2x64xf32>
    %cst_72 = arith.constant dense<0.000000e+00> : vector<2x64xf32>
    %198 = tpu.matmul %197, %38, %cst_72 {dimension_numbers = #tpu.dot_dimension_numbers<[1], [0], [0], [1], [0, 0, 1, 1], [], []>} : vector<2x64xf32>, vector<64x64xf32>, vector<2x64xf32> -> vector<2x64xf32>
    %cst_73 = arith.constant dense<0.000000e+00> : vector<2x64xf32>
    %199 = tpu.matmul %197, %40, %cst_73 {dimension_numbers = #tpu.dot_dimension_numbers<[1], [0], [0], [1], [0, 0, 1, 1], [], []>} : vector<2x64xf32>, vector<64x64xf32>, vector<2x64xf32> -> vector<2x64xf32>
    %cst_74 = arith.constant dense<0.000000e+00> : vector<2x64xf32>
    %200 = tpu.matmul %197, %42, %cst_74 {dimension_numbers = #tpu.dot_dimension_numbers<[1], [0], [0], [1], [0, 0, 1, 1], [], []>} : vector<2x64xf32>, vector<64x64xf32>, vector<2x64xf32> -> vector<2x64xf32>
    %201 = arith.addf %200, %36 : vector<2x64xf32>
    %202 = arith.addf %21, %198 : vector<2x64xf32>
    %203 = arith.negf %202 : vector<2x64xf32>
    %204 = math.exp %203 : vector<2x64xf32>
    %cst_75 = arith.constant 1.000000e+00 : f32
    %205 = vector.broadcast %cst_75 : f32 to vector<2x64xf32>
    %206 = arith.addf %205, %204 : vector<2x64xf32>
    %207 = arith.divf %205, %206 : vector<2x64xf32>
    %208 = arith.addf %27, %199 : vector<2x64xf32>
    %209 = arith.negf %208 : vector<2x64xf32>
    %210 = math.exp %209 : vector<2x64xf32>
    %cst_76 = arith.constant 1.000000e+00 : f32
    %211 = vector.broadcast %cst_76 : f32 to vector<2x64xf32>
    %212 = arith.addf %211, %210 : vector<2x64xf32>
    %213 = arith.divf %211, %212 : vector<2x64xf32>
    %214 = arith.mulf %207, %201 : vector<2x64xf32>
    %215 = arith.addf %33, %214 : vector<2x64xf32>
    %216 = math.tanh %215 : vector<2x64xf32>
    %217 = arith.subf %197, %216 : vector<2x64xf32>
    %218 = arith.mulf %213, %217 : vector<2x64xf32>
    %219 = arith.addf %216, %218 : vector<2x64xf32>
    %220 = vector.extract_strided_slice %65 {offsets = [0, 0], sizes = [2, 32], strides = [1, 1]} : vector<2x64xf32> to vector<2x32xf32>
    %221 = vector.extract_strided_slice %87 {offsets = [0, 0], sizes = [2, 32], strides = [1, 1]} : vector<2x64xf32> to vector<2x32xf32>
    %222 = vector.extract_strided_slice %109 {offsets = [0, 0], sizes = [2, 32], strides = [1, 1]} : vector<2x64xf32> to vector<2x32xf32>
    %223 = vector.extract_strided_slice %131 {offsets = [0, 0], sizes = [2, 32], strides = [1, 1]} : vector<2x64xf32> to vector<2x32xf32>
    %224 = vector.extract_strided_slice %153 {offsets = [0, 0], sizes = [2, 32], strides = [1, 1]} : vector<2x64xf32> to vector<2x32xf32>
    %225 = vector.extract_strided_slice %175 {offsets = [0, 0], sizes = [2, 32], strides = [1, 1]} : vector<2x64xf32> to vector<2x32xf32>
    %226 = vector.extract_strided_slice %197 {offsets = [0, 0], sizes = [2, 32], strides = [1, 1]} : vector<2x64xf32> to vector<2x32xf32>
    %227 = vector.extract_strided_slice %219 {offsets = [0, 0], sizes = [2, 32], strides = [1, 1]} : vector<2x64xf32> to vector<2x32xf32>
    %228 = tpu.concatenate %220, %221, %222, %223, %224, %225, %226, %227 in 0 : vector<2x32xf32>, vector<2x32xf32>, vector<2x32xf32>, vector<2x32xf32>, vector<2x32xf32>, vector<2x32xf32>, vector<2x32xf32>, vector<2x32xf32> -> vector<16x32xf32>
    %229 = vector.extract_strided_slice %219 {offsets = [0, 32], sizes = [2, 32], strides = [1, 1]} : vector<2x64xf32> to vector<2x32xf32>
    %230 = vector.extract_strided_slice %197 {offsets = [0, 32], sizes = [2, 32], strides = [1, 1]} : vector<2x64xf32> to vector<2x32xf32>
    %231 = vector.extract_strided_slice %175 {offsets = [0, 32], sizes = [2, 32], strides = [1, 1]} : vector<2x64xf32> to vector<2x32xf32>
    %232 = vector.extract_strided_slice %153 {offsets = [0, 32], sizes = [2, 32], strides = [1, 1]} : vector<2x64xf32> to vector<2x32xf32>
    %233 = vector.extract_strided_slice %131 {offsets = [0, 32], sizes = [2, 32], strides = [1, 1]} : vector<2x64xf32> to vector<2x32xf32>
    %234 = vector.extract_strided_slice %109 {offsets = [0, 32], sizes = [2, 32], strides = [1, 1]} : vector<2x64xf32> to vector<2x32xf32>
    %235 = vector.extract_strided_slice %87 {offsets = [0, 32], sizes = [2, 32], strides = [1, 1]} : vector<2x64xf32> to vector<2x32xf32>
    %236 = vector.extract_strided_slice %65 {offsets = [0, 32], sizes = [2, 32], strides = [1, 1]} : vector<2x64xf32> to vector<2x32xf32>
    %237 = tpu.concatenate %229, %230, %231, %232, %233, %234, %235, %236 in 0 : vector<2x32xf32>, vector<2x32xf32>, vector<2x32xf32>, vector<2x32xf32>, vector<2x32xf32>, vector<2x32xf32>, vector<2x32xf32>, vector<2x32xf32> -> vector<16x32xf32>
    %238 = tpu.concatenate %228, %237 in 1 : vector<16x32xf32>, vector<16x32xf32> -> vector<16x64xf32>
    %239 = vector.extract_strided_slice %219 {offsets = [0, 0], sizes = [2, 32], strides = [1, 1]} : vector<2x64xf32> to vector<2x32xf32>
    %240 = vector.extract_strided_slice %197 {offsets = [0, 0], sizes = [2, 32], strides = [1, 1]} : vector<2x64xf32> to vector<2x32xf32>
    %241 = vector.extract_strided_slice %175 {offsets = [0, 0], sizes = [2, 32], strides = [1, 1]} : vector<2x64xf32> to vector<2x32xf32>
    %242 = vector.extract_strided_slice %153 {offsets = [0, 0], sizes = [2, 32], strides = [1, 1]} : vector<2x64xf32> to vector<2x32xf32>
    %243 = vector.extract_strided_slice %131 {offsets = [0, 0], sizes = [2, 32], strides = [1, 1]} : vector<2x64xf32> to vector<2x32xf32>
    %244 = vector.extract_strided_slice %109 {offsets = [0, 0], sizes = [2, 32], strides = [1, 1]} : vector<2x64xf32> to vector<2x32xf32>
    %245 = vector.extract_strided_slice %87 {offsets = [0, 0], sizes = [2, 32], strides = [1, 1]} : vector<2x64xf32> to vector<2x32xf32>
    %246 = vector.extract_strided_slice %65 {offsets = [0, 0], sizes = [2, 32], strides = [1, 1]} : vector<2x64xf32> to vector<2x32xf32>
    %247 = tpu.concatenate %239, %240, %241, %242, %243, %244, %245, %246 in 0 : vector<2x32xf32>, vector<2x32xf32>, vector<2x32xf32>, vector<2x32xf32>, vector<2x32xf32>, vector<2x32xf32>, vector<2x32xf32>, vector<2x32xf32> -> vector<16x32xf32>
    %248 = vector.extract_strided_slice %65 {offsets = [0, 32], sizes = [2, 32], strides = [1, 1]} : vector<2x64xf32> to vector<2x32xf32>
    %249 = vector.extract_strided_slice %87 {offsets = [0, 32], sizes = [2, 32], strides = [1, 1]} : vector<2x64xf32> to vector<2x32xf32>
    %250 = vector.extract_strided_slice %109 {offsets = [0, 32], sizes = [2, 32], strides = [1, 1]} : vector<2x64xf32> to vector<2x32xf32>
    %251 = vector.extract_strided_slice %131 {offsets = [0, 32], sizes = [2, 32], strides = [1, 1]} : vector<2x64xf32> to vector<2x32xf32>
    %252 = vector.extract_strided_slice %153 {offsets = [0, 32], sizes = [2, 32], strides = [1, 1]} : vector<2x64xf32> to vector<2x32xf32>
    %253 = vector.extract_strided_slice %175 {offsets = [0, 32], sizes = [2, 32], strides = [1, 1]} : vector<2x64xf32> to vector<2x32xf32>
    %254 = vector.extract_strided_slice %197 {offsets = [0, 32], sizes = [2, 32], strides = [1, 1]} : vector<2x64xf32> to vector<2x32xf32>
    %255 = vector.extract_strided_slice %219 {offsets = [0, 32], sizes = [2, 32], strides = [1, 1]} : vector<2x64xf32> to vector<2x32xf32>
    %256 = tpu.concatenate %248, %249, %250, %251, %252, %253, %254, %255 in 0 : vector<2x32xf32>, vector<2x32xf32>, vector<2x32xf32>, vector<2x32xf32>, vector<2x32xf32>, vector<2x32xf32>, vector<2x32xf32>, vector<2x32xf32> -> vector<16x32xf32>
    %257 = tpu.concatenate %247, %256 in 1 : vector<16x32xf32>, vector<16x32xf32> -> vector<16x64xf32>
    %258 = tpu.concatenate %238, %257 in 1 : vector<16x64xf32>, vector<16x64xf32> -> vector<16x128xf32>
    %c11 = arith.constant 11 : index
    %c0_77 = arith.constant 0 : index
    %c0_78 = arith.constant 0 : index
    %259 = vector.load %arg2[%c11, %c0_77, %c0_78] : memref<15x128x64xf32, #tpu.memory_space<vmem>>, vector<1x128x64xf32>
    %260 = vector.shape_cast %259 : vector<1x128x64xf32> to vector<128x64xf32>
    %cst_79 = arith.constant dense<0.000000e+00> : vector<16x64xf32>
    %261 = tpu.matmul %258, %260, %cst_79 {dimension_numbers = #tpu.dot_dimension_numbers<[1], [0], [0], [1], [0, 0, 1, 1], [], []>} : vector<16x128xf32>, vector<128x64xf32>, vector<16x64xf32> -> vector<16x64xf32>
    %c6_80 = arith.constant 6 : index
    %c0_81 = arith.constant 0 : index
    %262 = vector.load %arg3[%c6_80, %c0_81] : memref<11x64xf32, #tpu.memory_space<vmem>>, vector<1x64xf32>
    %263 = vector.broadcast %262 : vector<1x64xf32> to vector<16x64xf32>
    %264 = arith.addf %261, %263 : vector<16x64xf32>
    %c12 = arith.constant 12 : index
    %c0_82 = arith.constant 0 : index
    %c0_83 = arith.constant 0 : index
    %265 = vector.load %arg2[%c12, %c0_82, %c0_83] : memref<15x128x64xf32, #tpu.memory_space<vmem>>, vector<1x128x64xf32>
    %266 = vector.shape_cast %265 : vector<1x128x64xf32> to vector<128x64xf32>
    %cst_84 = arith.constant dense<0.000000e+00> : vector<16x64xf32>
    %267 = tpu.matmul %258, %266, %cst_84 {dimension_numbers = #tpu.dot_dimension_numbers<[1], [0], [0], [1], [0, 0, 1, 1], [], []>} : vector<16x128xf32>, vector<128x64xf32>, vector<16x64xf32> -> vector<16x64xf32>
    %c7_85 = arith.constant 7 : index
    %c0_86 = arith.constant 0 : index
    %268 = vector.load %arg3[%c7_85, %c0_86] : memref<11x64xf32, #tpu.memory_space<vmem>>, vector<1x64xf32>
    %269 = vector.broadcast %268 : vector<1x64xf32> to vector<16x64xf32>
    %270 = arith.addf %267, %269 : vector<16x64xf32>
    %c13 = arith.constant 13 : index
    %c0_87 = arith.constant 0 : index
    %c0_88 = arith.constant 0 : index
    %271 = vector.load %arg2[%c13, %c0_87, %c0_88] : memref<15x128x64xf32, #tpu.memory_space<vmem>>, vector<1x128x64xf32>
    %272 = vector.shape_cast %271 : vector<1x128x64xf32> to vector<128x64xf32>
    %cst_89 = arith.constant dense<0.000000e+00> : vector<16x64xf32>
    %273 = tpu.matmul %258, %272, %cst_89 {dimension_numbers = #tpu.dot_dimension_numbers<[1], [0], [0], [1], [0, 0, 1, 1], [], []>} : vector<16x128xf32>, vector<128x64xf32>, vector<16x64xf32> -> vector<16x64xf32>
    %c8 = arith.constant 8 : index
    %c0_90 = arith.constant 0 : index
    %274 = vector.load %arg3[%c8, %c0_90] : memref<11x64xf32, #tpu.memory_space<vmem>>, vector<1x64xf32>
    %275 = vector.broadcast %274 : vector<1x64xf32> to vector<16x64xf32>
    %276 = arith.addf %273, %275 : vector<16x64xf32>
    %c9 = arith.constant 9 : index
    %c0_91 = arith.constant 0 : index
    %277 = vector.load %arg3[%c9, %c0_91] : memref<11x64xf32, #tpu.memory_space<vmem>>, vector<1x64xf32>
    %278 = vector.shape_cast %277 : vector<1x64xf32> to vector<1x64xf32>
    %279 = vector.broadcast %278 : vector<1x64xf32> to vector<2x64xf32>
    %c8_92 = arith.constant 8 : index
    %c0_93 = arith.constant 0 : index
    %c0_94 = arith.constant 0 : index
    %280 = vector.load %arg2[%c8_92, %c0_93, %c0_94] : memref<15x128x64xf32, #tpu.memory_space<vmem>>, vector<1x64x64xf32>
    %281 = vector.shape_cast %280 : vector<1x64x64xf32> to vector<64x64xf32>
    %c9_95 = arith.constant 9 : index
    %c0_96 = arith.constant 0 : index
    %c0_97 = arith.constant 0 : index
    %282 = vector.load %arg2[%c9_95, %c0_96, %c0_97] : memref<15x128x64xf32, #tpu.memory_space<vmem>>, vector<1x64x64xf32>
    %283 = vector.shape_cast %282 : vector<1x64x64xf32> to vector<64x64xf32>
    %c10 = arith.constant 10 : index
    %c0_98 = arith.constant 0 : index
    %c0_99 = arith.constant 0 : index
    %284 = vector.load %arg2[%c10, %c0_98, %c0_99] : memref<15x128x64xf32, #tpu.memory_space<vmem>>, vector<1x64x64xf32>
    %285 = vector.shape_cast %284 : vector<1x64x64xf32> to vector<64x64xf32>
    %286 = vector.extract_strided_slice %264 {offsets = [0, 0], sizes = [2, 64], strides = [1, 1]} : vector<16x64xf32> to vector<2x64xf32>
    %287 = vector.extract_strided_slice %270 {offsets = [0, 0], sizes = [2, 64], strides = [1, 1]} : vector<16x64xf32> to vector<2x64xf32>
    %288 = vector.extract_strided_slice %276 {offsets = [0, 0], sizes = [2, 64], strides = [1, 1]} : vector<16x64xf32> to vector<2x64xf32>
    %289 = vector.extract_strided_slice %264 {offsets = [2, 0], sizes = [2, 64], strides = [1, 1]} : vector<16x64xf32> to vector<2x64xf32>
    %290 = vector.extract_strided_slice %270 {offsets = [2, 0], sizes = [2, 64], strides = [1, 1]} : vector<16x64xf32> to vector<2x64xf32>
    %291 = vector.extract_strided_slice %276 {offsets = [2, 0], sizes = [2, 64], strides = [1, 1]} : vector<16x64xf32> to vector<2x64xf32>
    %292 = vector.extract_strided_slice %264 {offsets = [4, 0], sizes = [2, 64], strides = [1, 1]} : vector<16x64xf32> to vector<2x64xf32>
    %293 = vector.extract_strided_slice %270 {offsets = [4, 0], sizes = [2, 64], strides = [1, 1]} : vector<16x64xf32> to vector<2x64xf32>
    %294 = vector.extract_strided_slice %276 {offsets = [4, 0], sizes = [2, 64], strides = [1, 1]} : vector<16x64xf32> to vector<2x64xf32>
    %295 = vector.extract_strided_slice %264 {offsets = [6, 0], sizes = [2, 64], strides = [1, 1]} : vector<16x64xf32> to vector<2x64xf32>
    %296 = vector.extract_strided_slice %270 {offsets = [6, 0], sizes = [2, 64], strides = [1, 1]} : vector<16x64xf32> to vector<2x64xf32>
    %297 = vector.extract_strided_slice %276 {offsets = [6, 0], sizes = [2, 64], strides = [1, 1]} : vector<16x64xf32> to vector<2x64xf32>
    %298 = vector.extract_strided_slice %264 {offsets = [8, 0], sizes = [2, 64], strides = [1, 1]} : vector<16x64xf32> to vector<2x64xf32>
    %299 = vector.extract_strided_slice %270 {offsets = [8, 0], sizes = [2, 64], strides = [1, 1]} : vector<16x64xf32> to vector<2x64xf32>
    %300 = vector.extract_strided_slice %276 {offsets = [8, 0], sizes = [2, 64], strides = [1, 1]} : vector<16x64xf32> to vector<2x64xf32>
    %301 = vector.extract_strided_slice %264 {offsets = [10, 0], sizes = [2, 64], strides = [1, 1]} : vector<16x64xf32> to vector<2x64xf32>
    %302 = vector.extract_strided_slice %270 {offsets = [10, 0], sizes = [2, 64], strides = [1, 1]} : vector<16x64xf32> to vector<2x64xf32>
    %303 = vector.extract_strided_slice %276 {offsets = [10, 0], sizes = [2, 64], strides = [1, 1]} : vector<16x64xf32> to vector<2x64xf32>
    %304 = vector.extract_strided_slice %264 {offsets = [12, 0], sizes = [2, 64], strides = [1, 1]} : vector<16x64xf32> to vector<2x64xf32>
    %305 = vector.extract_strided_slice %270 {offsets = [12, 0], sizes = [2, 64], strides = [1, 1]} : vector<16x64xf32> to vector<2x64xf32>
    %306 = vector.extract_strided_slice %276 {offsets = [12, 0], sizes = [2, 64], strides = [1, 1]} : vector<16x64xf32> to vector<2x64xf32>
    %307 = vector.extract_strided_slice %264 {offsets = [14, 0], sizes = [2, 64], strides = [1, 1]} : vector<16x64xf32> to vector<2x64xf32>
    %308 = vector.extract_strided_slice %270 {offsets = [14, 0], sizes = [2, 64], strides = [1, 1]} : vector<16x64xf32> to vector<2x64xf32>
    %309 = vector.extract_strided_slice %276 {offsets = [14, 0], sizes = [2, 64], strides = [1, 1]} : vector<16x64xf32> to vector<2x64xf32>
    %cst_100 = arith.constant 0.000000e+00 : f32
    %310 = vector.broadcast %cst_100 : f32 to vector<2x64xf32>
    %cst_101 = arith.constant dense<0.000000e+00> : vector<2x64xf32>
    %311 = tpu.matmul %310, %281, %cst_101 {dimension_numbers = #tpu.dot_dimension_numbers<[1], [0], [0], [1], [0, 0, 1, 1], [], []>} : vector<2x64xf32>, vector<64x64xf32>, vector<2x64xf32> -> vector<2x64xf32>
    %cst_102 = arith.constant dense<0.000000e+00> : vector<2x64xf32>
    %312 = tpu.matmul %310, %283, %cst_102 {dimension_numbers = #tpu.dot_dimension_numbers<[1], [0], [0], [1], [0, 0, 1, 1], [], []>} : vector<2x64xf32>, vector<64x64xf32>, vector<2x64xf32> -> vector<2x64xf32>
    %cst_103 = arith.constant dense<0.000000e+00> : vector<2x64xf32>
    %313 = tpu.matmul %310, %285, %cst_103 {dimension_numbers = #tpu.dot_dimension_numbers<[1], [0], [0], [1], [0, 0, 1, 1], [], []>} : vector<2x64xf32>, vector<64x64xf32>, vector<2x64xf32> -> vector<2x64xf32>
    %314 = arith.addf %313, %279 : vector<2x64xf32>
    %315 = arith.addf %286, %311 : vector<2x64xf32>
    %316 = arith.negf %315 : vector<2x64xf32>
    %317 = math.exp %316 : vector<2x64xf32>
    %cst_104 = arith.constant 1.000000e+00 : f32
    %318 = vector.broadcast %cst_104 : f32 to vector<2x64xf32>
    %319 = arith.addf %318, %317 : vector<2x64xf32>
    %320 = arith.divf %318, %319 : vector<2x64xf32>
    %321 = arith.addf %287, %312 : vector<2x64xf32>
    %322 = arith.negf %321 : vector<2x64xf32>
    %323 = math.exp %322 : vector<2x64xf32>
    %cst_105 = arith.constant 1.000000e+00 : f32
    %324 = vector.broadcast %cst_105 : f32 to vector<2x64xf32>
    %325 = arith.addf %324, %323 : vector<2x64xf32>
    %326 = arith.divf %324, %325 : vector<2x64xf32>
    %327 = arith.mulf %320, %314 : vector<2x64xf32>
    %328 = arith.addf %288, %327 : vector<2x64xf32>
    %329 = math.tanh %328 : vector<2x64xf32>
    %330 = arith.subf %310, %329 : vector<2x64xf32>
    %331 = arith.mulf %326, %330 : vector<2x64xf32>
    %332 = arith.addf %329, %331 : vector<2x64xf32>
    %cst_106 = arith.constant dense<0.000000e+00> : vector<2x64xf32>
    %333 = tpu.matmul %332, %281, %cst_106 {dimension_numbers = #tpu.dot_dimension_numbers<[1], [0], [0], [1], [0, 0, 1, 1], [], []>} : vector<2x64xf32>, vector<64x64xf32>, vector<2x64xf32> -> vector<2x64xf32>
    %cst_107 = arith.constant dense<0.000000e+00> : vector<2x64xf32>
    %334 = tpu.matmul %332, %283, %cst_107 {dimension_numbers = #tpu.dot_dimension_numbers<[1], [0], [0], [1], [0, 0, 1, 1], [], []>} : vector<2x64xf32>, vector<64x64xf32>, vector<2x64xf32> -> vector<2x64xf32>
    %cst_108 = arith.constant dense<0.000000e+00> : vector<2x64xf32>
    %335 = tpu.matmul %332, %285, %cst_108 {dimension_numbers = #tpu.dot_dimension_numbers<[1], [0], [0], [1], [0, 0, 1, 1], [], []>} : vector<2x64xf32>, vector<64x64xf32>, vector<2x64xf32> -> vector<2x64xf32>
    %336 = arith.addf %335, %279 : vector<2x64xf32>
    %337 = arith.addf %289, %333 : vector<2x64xf32>
    %338 = arith.negf %337 : vector<2x64xf32>
    %339 = math.exp %338 : vector<2x64xf32>
    %cst_109 = arith.constant 1.000000e+00 : f32
    %340 = vector.broadcast %cst_109 : f32 to vector<2x64xf32>
    %341 = arith.addf %340, %339 : vector<2x64xf32>
    %342 = arith.divf %340, %341 : vector<2x64xf32>
    %343 = arith.addf %290, %334 : vector<2x64xf32>
    %344 = arith.negf %343 : vector<2x64xf32>
    %345 = math.exp %344 : vector<2x64xf32>
    %cst_110 = arith.constant 1.000000e+00 : f32
    %346 = vector.broadcast %cst_110 : f32 to vector<2x64xf32>
    %347 = arith.addf %346, %345 : vector<2x64xf32>
    %348 = arith.divf %346, %347 : vector<2x64xf32>
    %349 = arith.mulf %342, %336 : vector<2x64xf32>
    %350 = arith.addf %291, %349 : vector<2x64xf32>
    %351 = math.tanh %350 : vector<2x64xf32>
    %352 = arith.subf %332, %351 : vector<2x64xf32>
    %353 = arith.mulf %348, %352 : vector<2x64xf32>
    %354 = arith.addf %351, %353 : vector<2x64xf32>
    %cst_111 = arith.constant dense<0.000000e+00> : vector<2x64xf32>
    %355 = tpu.matmul %354, %281, %cst_111 {dimension_numbers = #tpu.dot_dimension_numbers<[1], [0], [0], [1], [0, 0, 1, 1], [], []>} : vector<2x64xf32>, vector<64x64xf32>, vector<2x64xf32> -> vector<2x64xf32>
    %cst_112 = arith.constant dense<0.000000e+00> : vector<2x64xf32>
    %356 = tpu.matmul %354, %283, %cst_112 {dimension_numbers = #tpu.dot_dimension_numbers<[1], [0], [0], [1], [0, 0, 1, 1], [], []>} : vector<2x64xf32>, vector<64x64xf32>, vector<2x64xf32> -> vector<2x64xf32>
    %cst_113 = arith.constant dense<0.000000e+00> : vector<2x64xf32>
    %357 = tpu.matmul %354, %285, %cst_113 {dimension_numbers = #tpu.dot_dimension_numbers<[1], [0], [0], [1], [0, 0, 1, 1], [], []>} : vector<2x64xf32>, vector<64x64xf32>, vector<2x64xf32> -> vector<2x64xf32>
    %358 = arith.addf %357, %279 : vector<2x64xf32>
    %359 = arith.addf %292, %355 : vector<2x64xf32>
    %360 = arith.negf %359 : vector<2x64xf32>
    %361 = math.exp %360 : vector<2x64xf32>
    %cst_114 = arith.constant 1.000000e+00 : f32
    %362 = vector.broadcast %cst_114 : f32 to vector<2x64xf32>
    %363 = arith.addf %362, %361 : vector<2x64xf32>
    %364 = arith.divf %362, %363 : vector<2x64xf32>
    %365 = arith.addf %293, %356 : vector<2x64xf32>
    %366 = arith.negf %365 : vector<2x64xf32>
    %367 = math.exp %366 : vector<2x64xf32>
    %cst_115 = arith.constant 1.000000e+00 : f32
    %368 = vector.broadcast %cst_115 : f32 to vector<2x64xf32>
    %369 = arith.addf %368, %367 : vector<2x64xf32>
    %370 = arith.divf %368, %369 : vector<2x64xf32>
    %371 = arith.mulf %364, %358 : vector<2x64xf32>
    %372 = arith.addf %294, %371 : vector<2x64xf32>
    %373 = math.tanh %372 : vector<2x64xf32>
    %374 = arith.subf %354, %373 : vector<2x64xf32>
    %375 = arith.mulf %370, %374 : vector<2x64xf32>
    %376 = arith.addf %373, %375 : vector<2x64xf32>
    %cst_116 = arith.constant dense<0.000000e+00> : vector<2x64xf32>
    %377 = tpu.matmul %376, %281, %cst_116 {dimension_numbers = #tpu.dot_dimension_numbers<[1], [0], [0], [1], [0, 0, 1, 1], [], []>} : vector<2x64xf32>, vector<64x64xf32>, vector<2x64xf32> -> vector<2x64xf32>
    %cst_117 = arith.constant dense<0.000000e+00> : vector<2x64xf32>
    %378 = tpu.matmul %376, %283, %cst_117 {dimension_numbers = #tpu.dot_dimension_numbers<[1], [0], [0], [1], [0, 0, 1, 1], [], []>} : vector<2x64xf32>, vector<64x64xf32>, vector<2x64xf32> -> vector<2x64xf32>
    %cst_118 = arith.constant dense<0.000000e+00> : vector<2x64xf32>
    %379 = tpu.matmul %376, %285, %cst_118 {dimension_numbers = #tpu.dot_dimension_numbers<[1], [0], [0], [1], [0, 0, 1, 1], [], []>} : vector<2x64xf32>, vector<64x64xf32>, vector<2x64xf32> -> vector<2x64xf32>
    %380 = arith.addf %379, %279 : vector<2x64xf32>
    %381 = arith.addf %295, %377 : vector<2x64xf32>
    %382 = arith.negf %381 : vector<2x64xf32>
    %383 = math.exp %382 : vector<2x64xf32>
    %cst_119 = arith.constant 1.000000e+00 : f32
    %384 = vector.broadcast %cst_119 : f32 to vector<2x64xf32>
    %385 = arith.addf %384, %383 : vector<2x64xf32>
    %386 = arith.divf %384, %385 : vector<2x64xf32>
    %387 = arith.addf %296, %378 : vector<2x64xf32>
    %388 = arith.negf %387 : vector<2x64xf32>
    %389 = math.exp %388 : vector<2x64xf32>
    %cst_120 = arith.constant 1.000000e+00 : f32
    %390 = vector.broadcast %cst_120 : f32 to vector<2x64xf32>
    %391 = arith.addf %390, %389 : vector<2x64xf32>
    %392 = arith.divf %390, %391 : vector<2x64xf32>
    %393 = arith.mulf %386, %380 : vector<2x64xf32>
    %394 = arith.addf %297, %393 : vector<2x64xf32>
    %395 = math.tanh %394 : vector<2x64xf32>
    %396 = arith.subf %376, %395 : vector<2x64xf32>
    %397 = arith.mulf %392, %396 : vector<2x64xf32>
    %398 = arith.addf %395, %397 : vector<2x64xf32>
    %cst_121 = arith.constant dense<0.000000e+00> : vector<2x64xf32>
    %399 = tpu.matmul %398, %281, %cst_121 {dimension_numbers = #tpu.dot_dimension_numbers<[1], [0], [0], [1], [0, 0, 1, 1], [], []>} : vector<2x64xf32>, vector<64x64xf32>, vector<2x64xf32> -> vector<2x64xf32>
    %cst_122 = arith.constant dense<0.000000e+00> : vector<2x64xf32>
    %400 = tpu.matmul %398, %283, %cst_122 {dimension_numbers = #tpu.dot_dimension_numbers<[1], [0], [0], [1], [0, 0, 1, 1], [], []>} : vector<2x64xf32>, vector<64x64xf32>, vector<2x64xf32> -> vector<2x64xf32>
    %cst_123 = arith.constant dense<0.000000e+00> : vector<2x64xf32>
    %401 = tpu.matmul %398, %285, %cst_123 {dimension_numbers = #tpu.dot_dimension_numbers<[1], [0], [0], [1], [0, 0, 1, 1], [], []>} : vector<2x64xf32>, vector<64x64xf32>, vector<2x64xf32> -> vector<2x64xf32>
    %402 = arith.addf %401, %279 : vector<2x64xf32>
    %403 = arith.addf %298, %399 : vector<2x64xf32>
    %404 = arith.negf %403 : vector<2x64xf32>
    %405 = math.exp %404 : vector<2x64xf32>
    %cst_124 = arith.constant 1.000000e+00 : f32
    %406 = vector.broadcast %cst_124 : f32 to vector<2x64xf32>
    %407 = arith.addf %406, %405 : vector<2x64xf32>
    %408 = arith.divf %406, %407 : vector<2x64xf32>
    %409 = arith.addf %299, %400 : vector<2x64xf32>
    %410 = arith.negf %409 : vector<2x64xf32>
    %411 = math.exp %410 : vector<2x64xf32>
    %cst_125 = arith.constant 1.000000e+00 : f32
    %412 = vector.broadcast %cst_125 : f32 to vector<2x64xf32>
    %413 = arith.addf %412, %411 : vector<2x64xf32>
    %414 = arith.divf %412, %413 : vector<2x64xf32>
    %415 = arith.mulf %408, %402 : vector<2x64xf32>
    %416 = arith.addf %300, %415 : vector<2x64xf32>
    %417 = math.tanh %416 : vector<2x64xf32>
    %418 = arith.subf %398, %417 : vector<2x64xf32>
    %419 = arith.mulf %414, %418 : vector<2x64xf32>
    %420 = arith.addf %417, %419 : vector<2x64xf32>
    %cst_126 = arith.constant dense<0.000000e+00> : vector<2x64xf32>
    %421 = tpu.matmul %420, %281, %cst_126 {dimension_numbers = #tpu.dot_dimension_numbers<[1], [0], [0], [1], [0, 0, 1, 1], [], []>} : vector<2x64xf32>, vector<64x64xf32>, vector<2x64xf32> -> vector<2x64xf32>
    %cst_127 = arith.constant dense<0.000000e+00> : vector<2x64xf32>
    %422 = tpu.matmul %420, %283, %cst_127 {dimension_numbers = #tpu.dot_dimension_numbers<[1], [0], [0], [1], [0, 0, 1, 1], [], []>} : vector<2x64xf32>, vector<64x64xf32>, vector<2x64xf32> -> vector<2x64xf32>
    %cst_128 = arith.constant dense<0.000000e+00> : vector<2x64xf32>
    %423 = tpu.matmul %420, %285, %cst_128 {dimension_numbers = #tpu.dot_dimension_numbers<[1], [0], [0], [1], [0, 0, 1, 1], [], []>} : vector<2x64xf32>, vector<64x64xf32>, vector<2x64xf32> -> vector<2x64xf32>
    %424 = arith.addf %423, %279 : vector<2x64xf32>
    %425 = arith.addf %301, %421 : vector<2x64xf32>
    %426 = arith.negf %425 : vector<2x64xf32>
    %427 = math.exp %426 : vector<2x64xf32>
    %cst_129 = arith.constant 1.000000e+00 : f32
    %428 = vector.broadcast %cst_129 : f32 to vector<2x64xf32>
    %429 = arith.addf %428, %427 : vector<2x64xf32>
    %430 = arith.divf %428, %429 : vector<2x64xf32>
    %431 = arith.addf %302, %422 : vector<2x64xf32>
    %432 = arith.negf %431 : vector<2x64xf32>
    %433 = math.exp %432 : vector<2x64xf32>
    %cst_130 = arith.constant 1.000000e+00 : f32
    %434 = vector.broadcast %cst_130 : f32 to vector<2x64xf32>
    %435 = arith.addf %434, %433 : vector<2x64xf32>
    %436 = arith.divf %434, %435 : vector<2x64xf32>
    %437 = arith.mulf %430, %424 : vector<2x64xf32>
    %438 = arith.addf %303, %437 : vector<2x64xf32>
    %439 = math.tanh %438 : vector<2x64xf32>
    %440 = arith.subf %420, %439 : vector<2x64xf32>
    %441 = arith.mulf %436, %440 : vector<2x64xf32>
    %442 = arith.addf %439, %441 : vector<2x64xf32>
    %cst_131 = arith.constant dense<0.000000e+00> : vector<2x64xf32>
    %443 = tpu.matmul %442, %281, %cst_131 {dimension_numbers = #tpu.dot_dimension_numbers<[1], [0], [0], [1], [0, 0, 1, 1], [], []>} : vector<2x64xf32>, vector<64x64xf32>, vector<2x64xf32> -> vector<2x64xf32>
    %cst_132 = arith.constant dense<0.000000e+00> : vector<2x64xf32>
    %444 = tpu.matmul %442, %283, %cst_132 {dimension_numbers = #tpu.dot_dimension_numbers<[1], [0], [0], [1], [0, 0, 1, 1], [], []>} : vector<2x64xf32>, vector<64x64xf32>, vector<2x64xf32> -> vector<2x64xf32>
    %cst_133 = arith.constant dense<0.000000e+00> : vector<2x64xf32>
    %445 = tpu.matmul %442, %285, %cst_133 {dimension_numbers = #tpu.dot_dimension_numbers<[1], [0], [0], [1], [0, 0, 1, 1], [], []>} : vector<2x64xf32>, vector<64x64xf32>, vector<2x64xf32> -> vector<2x64xf32>
    %446 = arith.addf %445, %279 : vector<2x64xf32>
    %447 = arith.addf %304, %443 : vector<2x64xf32>
    %448 = arith.negf %447 : vector<2x64xf32>
    %449 = math.exp %448 : vector<2x64xf32>
    %cst_134 = arith.constant 1.000000e+00 : f32
    %450 = vector.broadcast %cst_134 : f32 to vector<2x64xf32>
    %451 = arith.addf %450, %449 : vector<2x64xf32>
    %452 = arith.divf %450, %451 : vector<2x64xf32>
    %453 = arith.addf %305, %444 : vector<2x64xf32>
    %454 = arith.negf %453 : vector<2x64xf32>
    %455 = math.exp %454 : vector<2x64xf32>
    %cst_135 = arith.constant 1.000000e+00 : f32
    %456 = vector.broadcast %cst_135 : f32 to vector<2x64xf32>
    %457 = arith.addf %456, %455 : vector<2x64xf32>
    %458 = arith.divf %456, %457 : vector<2x64xf32>
    %459 = arith.mulf %452, %446 : vector<2x64xf32>
    %460 = arith.addf %306, %459 : vector<2x64xf32>
    %461 = math.tanh %460 : vector<2x64xf32>
    %462 = arith.subf %442, %461 : vector<2x64xf32>
    %463 = arith.mulf %458, %462 : vector<2x64xf32>
    %464 = arith.addf %461, %463 : vector<2x64xf32>
    %cst_136 = arith.constant dense<0.000000e+00> : vector<2x64xf32>
    %465 = tpu.matmul %464, %281, %cst_136 {dimension_numbers = #tpu.dot_dimension_numbers<[1], [0], [0], [1], [0, 0, 1, 1], [], []>} : vector<2x64xf32>, vector<64x64xf32>, vector<2x64xf32> -> vector<2x64xf32>
    %cst_137 = arith.constant dense<0.000000e+00> : vector<2x64xf32>
    %466 = tpu.matmul %464, %283, %cst_137 {dimension_numbers = #tpu.dot_dimension_numbers<[1], [0], [0], [1], [0, 0, 1, 1], [], []>} : vector<2x64xf32>, vector<64x64xf32>, vector<2x64xf32> -> vector<2x64xf32>
    %cst_138 = arith.constant dense<0.000000e+00> : vector<2x64xf32>
    %467 = tpu.matmul %464, %285, %cst_138 {dimension_numbers = #tpu.dot_dimension_numbers<[1], [0], [0], [1], [0, 0, 1, 1], [], []>} : vector<2x64xf32>, vector<64x64xf32>, vector<2x64xf32> -> vector<2x64xf32>
    %468 = arith.addf %467, %279 : vector<2x64xf32>
    %469 = arith.addf %307, %465 : vector<2x64xf32>
    %470 = arith.negf %469 : vector<2x64xf32>
    %471 = math.exp %470 : vector<2x64xf32>
    %cst_139 = arith.constant 1.000000e+00 : f32
    %472 = vector.broadcast %cst_139 : f32 to vector<2x64xf32>
    %473 = arith.addf %472, %471 : vector<2x64xf32>
    %474 = arith.divf %472, %473 : vector<2x64xf32>
    %475 = arith.addf %308, %466 : vector<2x64xf32>
    %476 = arith.negf %475 : vector<2x64xf32>
    %477 = math.exp %476 : vector<2x64xf32>
    %cst_140 = arith.constant 1.000000e+00 : f32
    %478 = vector.broadcast %cst_140 : f32 to vector<2x64xf32>
    %479 = arith.addf %478, %477 : vector<2x64xf32>
    %480 = arith.divf %478, %479 : vector<2x64xf32>
    %481 = arith.mulf %474, %468 : vector<2x64xf32>
    %482 = arith.addf %309, %481 : vector<2x64xf32>
    %483 = math.tanh %482 : vector<2x64xf32>
    %484 = arith.subf %464, %483 : vector<2x64xf32>
    %485 = arith.mulf %480, %484 : vector<2x64xf32>
    %486 = arith.addf %483, %485 : vector<2x64xf32>
    %487 = vector.extract_strided_slice %332 {offsets = [0, 0], sizes = [2, 32], strides = [1, 1]} : vector<2x64xf32> to vector<2x32xf32>
    %488 = vector.extract_strided_slice %354 {offsets = [0, 0], sizes = [2, 32], strides = [1, 1]} : vector<2x64xf32> to vector<2x32xf32>
    %489 = vector.extract_strided_slice %376 {offsets = [0, 0], sizes = [2, 32], strides = [1, 1]} : vector<2x64xf32> to vector<2x32xf32>
    %490 = vector.extract_strided_slice %398 {offsets = [0, 0], sizes = [2, 32], strides = [1, 1]} : vector<2x64xf32> to vector<2x32xf32>
    %491 = vector.extract_strided_slice %420 {offsets = [0, 0], sizes = [2, 32], strides = [1, 1]} : vector<2x64xf32> to vector<2x32xf32>
    %492 = vector.extract_strided_slice %442 {offsets = [0, 0], sizes = [2, 32], strides = [1, 1]} : vector<2x64xf32> to vector<2x32xf32>
    %493 = vector.extract_strided_slice %464 {offsets = [0, 0], sizes = [2, 32], strides = [1, 1]} : vector<2x64xf32> to vector<2x32xf32>
    %494 = vector.extract_strided_slice %486 {offsets = [0, 0], sizes = [2, 32], strides = [1, 1]} : vector<2x64xf32> to vector<2x32xf32>
    %495 = tpu.concatenate %487, %488, %489, %490, %491, %492, %493, %494 in 0 : vector<2x32xf32>, vector<2x32xf32>, vector<2x32xf32>, vector<2x32xf32>, vector<2x32xf32>, vector<2x32xf32>, vector<2x32xf32>, vector<2x32xf32> -> vector<16x32xf32>
    %496 = vector.extract_strided_slice %486 {offsets = [0, 32], sizes = [2, 32], strides = [1, 1]} : vector<2x64xf32> to vector<2x32xf32>
    %497 = vector.extract_strided_slice %464 {offsets = [0, 32], sizes = [2, 32], strides = [1, 1]} : vector<2x64xf32> to vector<2x32xf32>
    %498 = vector.extract_strided_slice %442 {offsets = [0, 32], sizes = [2, 32], strides = [1, 1]} : vector<2x64xf32> to vector<2x32xf32>
    %499 = vector.extract_strided_slice %420 {offsets = [0, 32], sizes = [2, 32], strides = [1, 1]} : vector<2x64xf32> to vector<2x32xf32>
    %500 = vector.extract_strided_slice %398 {offsets = [0, 32], sizes = [2, 32], strides = [1, 1]} : vector<2x64xf32> to vector<2x32xf32>
    %501 = vector.extract_strided_slice %376 {offsets = [0, 32], sizes = [2, 32], strides = [1, 1]} : vector<2x64xf32> to vector<2x32xf32>
    %502 = vector.extract_strided_slice %354 {offsets = [0, 32], sizes = [2, 32], strides = [1, 1]} : vector<2x64xf32> to vector<2x32xf32>
    %503 = vector.extract_strided_slice %332 {offsets = [0, 32], sizes = [2, 32], strides = [1, 1]} : vector<2x64xf32> to vector<2x32xf32>
    %504 = tpu.concatenate %496, %497, %498, %499, %500, %501, %502, %503 in 0 : vector<2x32xf32>, vector<2x32xf32>, vector<2x32xf32>, vector<2x32xf32>, vector<2x32xf32>, vector<2x32xf32>, vector<2x32xf32>, vector<2x32xf32> -> vector<16x32xf32>
    %c14 = arith.constant 14 : index
    %c0_141 = arith.constant 0 : index
    %c0_142 = arith.constant 0 : index
    %505 = vector.load %arg2[%c14, %c0_141, %c0_142] : memref<15x128x64xf32, #tpu.memory_space<vmem>>, vector<1x64x32xf32>
    %506 = vector.shape_cast %505 : vector<1x64x32xf32> to vector<64x32xf32>
    %507 = vector.extract_strided_slice %506 {offsets = [0, 0], sizes = [32, 32], strides = [1, 1]} : vector<64x32xf32> to vector<32x32xf32>
    %cst_143 = arith.constant dense<0.000000e+00> : vector<16x32xf32>
    %508 = tpu.matmul %495, %507, %cst_143 {dimension_numbers = #tpu.dot_dimension_numbers<[1], [0], [0], [1], [0, 0, 1, 1], [], []>} : vector<16x32xf32>, vector<32x32xf32>, vector<16x32xf32> -> vector<16x32xf32>
    %509 = vector.extract_strided_slice %506 {offsets = [32, 0], sizes = [32, 32], strides = [1, 1]} : vector<64x32xf32> to vector<32x32xf32>
    %cst_144 = arith.constant dense<0.000000e+00> : vector<16x32xf32>
    %510 = tpu.matmul %504, %509, %cst_144 {dimension_numbers = #tpu.dot_dimension_numbers<[1], [0], [0], [1], [0, 0, 1, 1], [], []>} : vector<16x32xf32>, vector<32x32xf32>, vector<16x32xf32> -> vector<16x32xf32>
    %511 = arith.addf %508, %510 : vector<16x32xf32>
    %c10_145 = arith.constant 10 : index
    %c0_146 = arith.constant 0 : index
    %512 = vector.load %arg3[%c10_145, %c0_146] : memref<11x64xf32, #tpu.memory_space<vmem>>, vector<1x32xf32>
    %513 = vector.broadcast %512 : vector<1x32xf32> to vector<16x32xf32>
    %514 = arith.addf %511, %513 : vector<16x32xf32>
    %c0_147 = arith.constant 0 : index
    %c0_148 = arith.constant 0 : index
    %515 = vector.load %arg4[%c0_147, %c0_148] : memref<16x32xf32, #tpu.memory_space<vmem>>, vector<16x32xf32>
    tpu.vector_store %arg4[%c0_147, %c0_148], %514 {strides = array<i32>} : memref<16x32xf32, #tpu.memory_space<vmem>>, vector<16x32xf32>,
    return
  }
}

</mosaic_0001>

<llo_original>
// kernel: dismix_decoder_forward.1
$region0: #{dismix_decoder_forward.1}
  #allocation0 [shape = 'u32[]', space=smem, size = 0x4, offset = 0x4, fixed_abs, tag = 'smem constant byte address 0x4 - core index']
  #allocation1 [shape = 'u32[72,128]{1,0:T(1,128)}', space=vmem, size = 0x9000, scoped, tag = 'internal scratch']
  %s0 = inlined_call_operand.vmem [shape: f32[2,16], index: 0, kind: input, shape index: {}]
  %s1 = inlined_call_operand.vmem [shape: f32[2,16], index: 1, kind: input, shape index: {}]
  %s2 = inlined_call_operand.vmem [shape: f32[15,128,64], index: 2, kind: input, shape index: {}]
  %s3 = inlined_call_operand.vmem [shape: f32[11,64], index: 3, kind: input, shape index: {}]
  %s4 = inlined_call_operand.vmem [shape: f32[16,32], index: 4, kind: output, shape index: {}]
  %s5 = sld [smem:[#allocation0]]
  $region26: #{dismix_decoder_forward.1} parent=0
    _
  %s7 = ssub.s32 1, %s5
  %s8 = scalar_select 0, %s7, %s5
  // Predicated region
  $region2: #{dismix_decoder_forward.1} parent=0 // pred_check
    _
  $region3: #{dismix_decoder_forward.1} parent=0 // pred_check_branch
    %10 = sbr.rel (0) target = $region5
  $region4: #{dismix_decoder_forward.1} parent=0 // pred_region
    _
  $region5: #{dismix_decoder_forward.1} parent=0 // pred_fallthru
    _
  // Predicated region
  $region6: #{dismix_decoder_forward.1} parent=0 // pred_check
    _
  $region7: #{dismix_decoder_forward.1} parent=0 // pred_check_branch
    %12 = sbr.rel (0) target = $region9
  $region8: #{dismix_decoder_forward.1} parent=0 // pred_region
    _
  $region9: #{dismix_decoder_forward.1} parent=0 // pred_fallthru
    _
  // Predicated region
  $region10: #{dismix_decoder_forward.1} parent=0 // pred_check
    _
  $region11: #{dismix_decoder_forward.1} parent=0 // pred_check_branch
    %14 = sbr.rel (0) target = $region13
  $region12: #{dismix_decoder_forward.1} parent=0 // pred_region
    _
  $region13: #{dismix_decoder_forward.1} parent=0 // pred_fallthru
    _
  // Predicated region
  $region14: #{dismix_decoder_forward.1} parent=0 // pred_check
    _
  $region15: #{dismix_decoder_forward.1} parent=0 // pred_check_branch
    %16 = sbr.rel (0) target = $region17
  $region16: #{dismix_decoder_forward.1} parent=0 // pred_region
    _
  $region17: #{dismix_decoder_forward.1} parent=0 // pred_fallthru
    _
  %v17 = vld [vmem:[%s0] sm:$0x3]
  %v18 = vld [vmem:[%s1] sm:$0x3]
  %v19 = vld [vmem:[%s2] sm:$0xff]
  %v20 = vld [vmem:[%s2 + $0x8] sm:$0xff]
  %v21 = vld [vmem:[%s3] sm:$0x1]
  %v22 = vperm.slane %v21, 0
  %vm23 = vcmask 130048
  %v25 = vsel %vm23, %v18, 0
  %27 = vmatpush.msra.mxu0 0.0
  %28 = vmatpush.msra.mxu0 0.0
  %29 = vmatpush.msra.mxu0 0.0
  %30 = vmatpush.msra.mxu0 0.0
  %31 = vmatpush.msra.mxu0 0.0
  %32 = vmatpush.msra.mxu0 0.0
  %33 = vmatpush.msra.mxu0 0.0
  %34 = vmatpush.msra.mxu0 0.0
  %35 = vmatpush.msra.mxu0 0.0
  %36 = vmatpush.msra.mxu0 0.0
  %37 = vmatpush.msra.mxu0 0.0
  %38 = vmatpush.msra.mxu0 0.0
  %39 = vmatpush.msra.mxu0 0.0
  %40 = vmatpush.msra.mxu0 0.0
  %41 = vmatpush.msra.mxu0 %v20
  %42 = vmatpush.msra.mxu0 %v19
  %43 = vmatmul.f32.gmra.mxu0 %v25
  %v44 = vpop.f32.mrf.mxu0
  %v45 = vadd.f32 %v22, %v44
  %46 = vdwg.mxu0
  %s47 = scalar_lea.vmem %s2, 128
  %v48 = vld [vmem:[%s47] sm:$0xff]
  %v49 = vld [vmem:[%s47 + $0x8] sm:$0xff]
  %v50 = vld [vmem:[%s3 + $0x1] sm:$0x1]
  %v51 = vperm.slane %v50, 0
  %52 = vmatpush.msra.mxu0 0.0
  %53 = vmatpush.msra.mxu0 0.0
  %54 = vmatpush.msra.mxu0 0.0
  %55 = vmatpush.msra.mxu0 0.0
  %56 = vmatpush.msra.mxu0 0.0
  %57 = vmatpush.msra.mxu0 0.0
  %58 = vmatpush.msra.mxu0 0.0
  %59 = vmatpush.msra.mxu0 0.0
  %60 = vmatpush.msra.mxu0 0.0
  %61 = vmatpush.msra.mxu0 0.0
  %62 = vmatpush.msra.mxu0 0.0
  %63 = vmatpush.msra.mxu0 0.0
  %64 = vmatpush.msra.mxu0 0.0
  %65 = vmatpush.msra.mxu0 0.0
  %66 = vmatpush.msra.mxu0 %v49
  %67 = vmatpush.msra.mxu0 %v48
  %68 = vmatmul.f32.gmra.mxu0 %v25
  %v69 = vpop.f32.mrf.mxu0
  %v70 = vadd.f32 %v51, %v69
  %71 = vdwg.mxu0
  %v72 = vmul.f32 %v45, %v17
  %v73 = vadd.f32 %v72, %v70
  %s74 = scalar_lea.vmem %s2, 256
  %v75 = vld [vmem:[%s74] sm:$0xff]
  %v76 = vld [vmem:[%s74 + $0x8] sm:$0xff]
  %v77 = vld [vmem:[%s3 + $0x2] sm:$0x1]
  %v78 = vperm.slane %v77, 0
  %v80 = vsel %vm23, %v73, 0
  %82 = vmatpush.msra.mxu0 0.0
  %83 = vmatpush.msra.mxu0 0.0
  %84 = vmatpush.msra.mxu0 0.0
  %85 = vmatpush.msra.mxu0 0.0
  %86 = vmatpush.msra.mxu0 0.0
  %87 = vmatpush.msra.mxu0 0.0
  %88 = vmatpush.msra.mxu0 0.0
  %89 = vmatpush.msra.mxu0 0.0
  %90 = vmatpush.msra.mxu0 0.0
  %91 = vmatpush.msra.mxu0 0.0
  %92 = vmatpush.msra.mxu0 0.0
  %93 = vmatpush.msra.mxu0 0.0
  %94 = vmatpush.msra.mxu0 0.0
  %95 = vmatpush.msra.mxu0 0.0
  %96 = vmatpush.msra.mxu0 %v76
  %97 = vmatpush.msra.mxu0 %v75
  %98 = vmatmul.f32.gmra.mxu0 %v80
  %v99 = vpop.f32.mrf.mxu0
  %v100 = vadd.f32 %v78, %v99
  %101 = vdwg.mxu0
  %s102 = scalar_lea.vmem %s2, 384
  %v103 = vld [vmem:[%s102] sm:$0xff]
  %v104 = vld [vmem:[%s102 + $0x8] sm:$0xff]
  %v105 = vld [vmem:[%s3 + $0x3] sm:$0x1]
  %v106 = vperm.slane %v105, 0
  %107 = vmatpush.msra.mxu0 0.0
  %108 = vmatpush.msra.mxu0 0.0
  %109 = vmatpush.msra.mxu0 0.0
  %110 = vmatpush.msra.mxu0 0.0
  %111 = vmatpush.msra.mxu0 0.0
  %112 = vmatpush.msra.mxu0 0.0
  %113 = vmatpush.msra.mxu0 0.0
  %114 = vmatpush.msra.mxu0 0.0
  %115 = vmatpush.msra.mxu0 0.0
  %116 = vmatpush.msra.mxu0 0.0
  %117 = vmatpush.msra.mxu0 0.0
  %118 = vmatpush.msra.mxu0 0.0
  %119 = vmatpush.msra.mxu0 0.0
  %120 = vmatpush.msra.mxu0 0.0
  %121 = vmatpush.msra.mxu0 %v104
  %122 = vmatpush.msra.mxu0 %v103
  %123 = vmatmul.f32.gmra.mxu0 %v80
  %v124 = vpop.f32.mrf.mxu0
  %v125 = vadd.f32 %v106, %v124
  %126 = vdwg.mxu0
  %s127 = scalar_lea.vmem %s2, 512
  %v128 = vld [vmem:[%s127] sm:$0xff]
  %v129 = vld [vmem:[%s127 + $0x8] sm:$0xff]
  %v130 = vld [vmem:[%s3 + $0x4] sm:$0x1]
  %v131 = vperm.slane %v130, 0
  %132 = vmatpush.msra.mxu0 0.0
  %133 = vmatpush.msra.mxu0 0.0
  %134 = vmatpush.msra.mxu0 0.0
  %135 = vmatpush.msra.mxu0 0.0
  %136 = vmatpush.msra.mxu0 0.0
  %137 = vmatpush.msra.mxu0 0.0
  %138 = vmatpush.msra.mxu0 0.0
  %139 = vmatpush.msra.mxu0 0.0
  %140 = vmatpush.msra.mxu0 0.0
  %141 = vmatpush.msra.mxu0 0.0
  %142 = vmatpush.msra.mxu0 0.0
  %143 = vmatpush.msra.mxu0 0.0
  %144 = vmatpush.msra.mxu0 0.0
  %145 = vmatpush.msra.mxu0 0.0
  %146 = vmatpush.msra.mxu0 %v129
  %147 = vmatpush.msra.mxu0 %v128
  %148 = vmatmul.f32.gmra.mxu0 %v80
  %v149 = vpop.f32.mrf.mxu0
  %v150 = vadd.f32 %v131, %v149
  %151 = vdwg.mxu0
  %v152 = vld [vmem:[%s3 + $0x5] sm:$0x1]
  %v153 = vperm.slane %v152, 0
  %s154 = scalar_lea.vmem %s2, 640
  %v155 = vld [vmem:[%s154] sm:$0xff]
  %v156 = vld [vmem:[%s154 + $0x8] sm:$0xff]
  %v157 = vld [vmem:[%s154 + $0x10] sm:$0xff]
  %v158 = vld [vmem:[%s154 + $0x18] sm:$0xff]
  %v159 = vld [vmem:[%s154 + $0x20] sm:$0xff]
  %v160 = vld [vmem:[%s154 + $0x28] sm:$0xff]
  %v161 = vld [vmem:[%s154 + $0x30] sm:$0xff]
  %v162 = vld [vmem:[%s154 + $0x38] sm:$0xff]
  %s163 = scalar_lea.vmem %s2, 768
  %v164 = vld [vmem:[%s163] sm:$0xff]
  %v165 = vld [vmem:[%s163 + $0x8] sm:$0xff]
  %v166 = vld [vmem:[%s163 + $0x10] sm:$0xff]
  %v167 = vld [vmem:[%s163 + $0x18] sm:$0xff]
  %v168 = vld [vmem:[%s163 + $0x20] sm:$0xff]
  %v169 = vld [vmem:[%s163 + $0x28] sm:$0xff]
  %v170 = vld [vmem:[%s163 + $0x30] sm:$0xff]
  %v171 = vld [vmem:[%s163 + $0x38] sm:$0xff]
  %s172 = scalar_lea.vmem %s2, 896
  %v173 = vld [vmem:[%s172] sm:$0xff]
  %v174 = vld [vmem:[%s172 + $0x8] sm:$0xff]
  %v175 = vld [vmem:[%s172 + $0x10] sm:$0xff]
  %v176 = vld [vmem:[%s172 + $0x18] sm:$0xff]
  %v177 = vld [vmem:[%s172 + $0x20] sm:$0xff]
  %v178 = vld [vmem:[%s172 + $0x28] sm:$0xff]
  %v179 = vld [vmem:[%s172 + $0x30] sm:$0xff]
  %v180 = vld [vmem:[%s172 + $0x38] sm:$0xff]
  %vm181 = vcmask 523264
  %v183 = vsel %vm181, 0.0, 0
  %185 = vmatpush.msra.mxu0 0.0
  %186 = vmatpush.msra.mxu0 0.0
  %187 = vmatpush.msra.mxu0 0.0
  %188 = vmatpush.msra.mxu0 0.0
  %189 = vmatpush.msra.mxu0 0.0
  %190 = vmatpush.msra.mxu0 0.0
  %191 = vmatpush.msra.mxu0 0.0
  %192 = vmatpush.msra.mxu0 0.0
  %193 = vmatpush.msra.mxu0 %v162
  %194 = vmatpush.msra.mxu0 %v161
  %195 = vmatpush.msra.mxu0 %v160
  %196 = vmatpush.msra.mxu0 %v159
  %197 = vmatpush.msra.mxu0 %v158
  %198 = vmatpush.msra.mxu0 %v157
  %199 = vmatpush.msra.mxu0 %v156
  %200 = vmatpush.msra.mxu0 %v155
  %201 = vmatmul.f32.gmra.mxu0 %v183
  %v202 = vpop.f32.mrf.mxu0
  %v203 = vadd.f32 0.0, %v202
  %204 = vdwg.mxu0
  %205 = vmatpush.msra.mxu0 0.0
  %206 = vmatpush.msra.mxu0 0.0
  %207 = vmatpush.msra.mxu0 0.0
  %208 = vmatpush.msra.mxu0 0.0
  %209 = vmatpush.msra.mxu0 0.0
  %210 = vmatpush.msra.mxu0 0.0
  %211 = vmatpush.msra.mxu0 0.0
  %212 = vmatpush.msra.mxu0 0.0
  %213 = vmatpush.msra.mxu0 %v171
  %214 = vmatpush.msra.mxu0 %v170
  %215 = vmatpush.msra.mxu0 %v169
  %216 = vmatpush.msra.mxu0 %v168
  %217 = vmatpush.msra.mxu0 %v167
  %218 = vmatpush.msra.mxu0 %v166
  %219 = vmatpush.msra.mxu0 %v165
  %220 = vmatpush.msra.mxu0 %v164
  %221 = vmatmul.f32.gmra.mxu0 %v183
  %v222 = vpop.f32.mrf.mxu0
  %v223 = vadd.f32 0.0, %v222
  %224 = vdwg.mxu0
  %225 = vmatpush.msra.mxu0 0.0
  %226 = vmatpush.msra.mxu0 0.0
  %227 = vmatpush.msra.mxu0 0.0
  %228 = vmatpush.msra.mxu0 0.0
  %229 = vmatpush.msra.mxu0 0.0
  %230 = vmatpush.msra.mxu0 0.0
  %231 = vmatpush.msra.mxu0 0.0
  %232 = vmatpush.msra.mxu0 0.0
  %233 = vmatpush.msra.mxu0 %v180
  %234 = vmatpush.msra.mxu0 %v179
  %235 = vmatpush.msra.mxu0 %v178
  %236 = vmatpush.msra.mxu0 %v177
  %237 = vmatpush.msra.mxu0 %v176
  %238 = vmatpush.msra.mxu0 %v175
  %239 = vmatpush.msra.mxu0 %v174
  %240 = vmatpush.msra.mxu0 %v173
  %241 = vmatmul.f32.gmra.mxu0 %v183
  %v242 = vpop.f32.mrf.mxu0
  %v243 = vadd.f32 %v153, %v242
  %244 = vdwg.mxu0
  %v245 = vadd.f32 %v100, %v203
  %v246 = vxor.u32 %v245, 2147483648
  %v247 = vmul.f32 %v246, 1.442695
  %v248 = vpow.pop %v247
  %v249 = vadd.f32 %v248, 1.0
  %v250 = vrcp.pop %v249
  %v251 = vmul.f32 %v249, %v250
  %v252 = vsub.f32 1.0, %v251
  %v253 = vmul.f32 %v250, %v252
  %v254 = vadd.f32 %v250, %v253
  %vm255 = vweird.f32 %v249
  %vm256 = vweird.f32 %v250
  %vm257 = vmor %vm255, %vm256
  %v258 = vsel %vm257, %v250, %v254
  %v259 = vand.u32 2147483647, %v249
  %vm260 = vcmp.eq.f32.partialorder %v259, 8.507059e+37
  %v261 = vand.u32 %v249, 2147483648
  %v262 = vor.u32 1.1754944e-38, %v261
  %v263 = vsel %vm260, %v262, %v258
  %v264 = vmul.f32 1.0, %v263
  %v265 = vadd.f32 %v125, %v223
  %v266 = vxor.u32 %v265, 2147483648
  %v267 = vmul.f32 %v266, 1.442695
  %v268 = vpow.pop %v267
  %v269 = vadd.f32 %v268, 1.0
  %v270 = vrcp.pop %v269
  %v271 = vmul.f32 %v269, %v270
  %v272 = vsub.f32 1.0, %v271
  %v273 = vmul.f32 %v270, %v272
  %v274 = vadd.f32 %v270, %v273
  %vm275 = vweird.f32 %v269
  %vm276 = vweird.f32 %v270
  %vm277 = vmor %vm275, %vm276
  %v278 = vsel %vm277, %v270, %v274
  %v279 = vand.u32 2147483647, %v269
  %vm280 = vcmp.eq.f32.partialorder %v279, 8.507059e+37
  %v281 = vand.u32 %v269, 2147483648
  %v282 = vor.u32 1.1754944e-38, %v281
  %v283 = vsel %vm280, %v282, %v278
  %v284 = vmul.f32 1.0, %v283
  %v285 = vmul.f32 %v264, %v243
  %v286 = vadd.f32 %v150, %v285
  %v287 = vtanh.pop %v286
  %v288 = vsub.f32 0.0, %v287
  %v289 = vmul.f32 %v284, %v288
  %v290 = vadd.f32 %v287, %v289
  %v292 = vsel %vm181, %v290, 0
  %294 = vmatpush.msra.mxu0 0.0
  %295 = vmatpush.msra.mxu0 0.0
  %296 = vmatpush.msra.mxu0 0.0
  %297 = vmatpush.msra.mxu0 0.0
  %298 = vmatpush.msra.mxu0 0.0
  %299 = vmatpush.msra.mxu0 0.0
  %300 = vmatpush.msra.mxu0 0.0
  %301 = vmatpush.msra.mxu0 0.0
  %302 = vmatpush.msra.mxu0 %v162
  %303 = vmatpush.msra.mxu0 %v161
  %304 = vmatpush.msra.mxu0 %v160
  %305 = vmatpush.msra.mxu0 %v159
  %306 = vmatpush.msra.mxu0 %v158
  %307 = vmatpush.msra.mxu0 %v157
  %308 = vmatpush.msra.mxu0 %v156
  %309 = vmatpush.msra.mxu0 %v155
  %310 = vmatmul.f32.gmra.mxu0 %v292
  %v311 = vpop.f32.mrf.mxu0
  %v312 = vadd.f32 0.0, %v311
  %313 = vdwg.mxu0
  %314 = vmatpush.msra.mxu0 0.0
  %315 = vmatpush.msra.mxu0 0.0
  %316 = vmatpush.msra.mxu0 0.0
  %317 = vmatpush.msra.mxu0 0.0
  %318 = vmatpush.msra.mxu0 0.0
  %319 = vmatpush.msra.mxu0 0.0
  %320 = vmatpush.msra.mxu0 0.0
  %321 = vmatpush.msra.mxu0 0.0
  %322 = vmatpush.msra.mxu0 %v171
  %323 = vmatpush.msra.mxu0 %v170
  %324 = vmatpush.msra.mxu0 %v169
  %325 = vmatpush.msra.mxu0 %v168
  %326 = vmatpush.msra.mxu0 %v167
  %327 = vmatpush.msra.mxu0 %v166
  %328 = vmatpush.msra.mxu0 %v165
  %329 = vmatpush.msra.mxu0 %v164
  %330 = vmatmul.f32.gmra.mxu0 %v292
  %v331 = vpop.f32.mrf.mxu0
  %v332 = vadd.f32 0.0, %v331
  %333 = vdwg.mxu0
  %334 = vmatpush.msra.mxu0 0.0
  %335 = vmatpush.msra.mxu0 0.0
  %336 = vmatpush.msra.mxu0 0.0
  %337 = vmatpush.msra.mxu0 0.0
  %338 = vmatpush.msra.mxu0 0.0
  %339 = vmatpush.msra.mxu0 0.0
  %340 = vmatpush.msra.mxu0 0.0
  %341 = vmatpush.msra.mxu0 0.0
  %342 = vmatpush.msra.mxu0 %v180
  %343 = vmatpush.msra.mxu0 %v179
  %344 = vmatpush.msra.mxu0 %v178
  %345 = vmatpush.msra.mxu0 %v177
  %346 = vmatpush.msra.mxu0 %v176
  %347 = vmatpush.msra.mxu0 %v175
  %348 = vmatpush.msra.mxu0 %v174
  %349 = vmatpush.msra.mxu0 %v173
  %350 = vmatmul.f32.gmra.mxu0 %v292
  %v351 = vpop.f32.mrf.mxu0
  %v352 = vadd.f32 %v153, %v351
  %353 = vdwg.mxu0
  %v354 = vadd.f32 %v100, %v312
  %v355 = vxor.u32 %v354, 2147483648
  %v356 = vmul.f32 %v355, 1.442695
  %v357 = vpow.pop %v356
  %v358 = vadd.f32 %v357, 1.0
  %v359 = vrcp.pop %v358
  %v360 = vmul.f32 %v358, %v359
  %v361 = vsub.f32 1.0, %v360
  %v362 = vmul.f32 %v359, %v361
  %v363 = vadd.f32 %v359, %v362
  %vm364 = vweird.f32 %v358
  %vm365 = vweird.f32 %v359
  %vm366 = vmor %vm364, %vm365
  %v367 = vsel %vm366, %v359, %v363
  %v368 = vand.u32 2147483647, %v358
  %vm369 = vcmp.eq.f32.partialorder %v368, 8.507059e+37
  %v370 = vand.u32 %v358, 2147483648
  %v371 = vor.u32 1.1754944e-38, %v370
  %v372 = vsel %vm369, %v371, %v367
  %v373 = vmul.f32 1.0, %v372
  %v374 = vadd.f32 %v125, %v332
  %v375 = vxor.u32 %v374, 2147483648
  %v376 = vmul.f32 %v375, 1.442695
  %v377 = vpow.pop %v376
  %v378 = vadd.f32 %v377, 1.0
  %v379 = vrcp.pop %v378
  %v380 = vmul.f32 %v378, %v379
  %v381 = vsub.f32 1.0, %v380
  %v382 = vmul.f32 %v379, %v381
  %v383 = vadd.f32 %v379, %v382
  %vm384 = vweird.f32 %v378
  %vm385 = vweird.f32 %v379
  %vm386 = vmor %vm384, %vm385
  %v387 = vsel %vm386, %v379, %v383
  %v388 = vand.u32 2147483647, %v378
  %vm389 = vcmp.eq.f32.partialorder %v388, 8.507059e+37
  %v390 = vand.u32 %v378, 2147483648
  %v391 = vor.u32 1.1754944e-38, %v390
  %v392 = vsel %vm389, %v391, %v387
  %v393 = vmul.f32 1.0, %v392
  %v394 = vmul.f32 %v373, %v352
  %v395 = vadd.f32 %v150, %v394
  %v396 = vtanh.pop %v395
  %v397 = vsub.f32 %v290, %v396
  %v398 = vmul.f32 %v393, %v397
  %v399 = vadd.f32 %v396, %v398
  %v401 = vsel %vm181, %v399, 0
  %403 = vmatpush.msra.mxu0 0.0
  %404 = vmatpush.msra.mxu0 0.0
  %405 = vmatpush.msra.mxu0 0.0
  %406 = vmatpush.msra.mxu0 0.0
  %407 = vmatpush.msra.mxu0 0.0
  %408 = vmatpush.msra.mxu0 0.0
  %409 = vmatpush.msra.mxu0 0.0
  %410 = vmatpush.msra.mxu0 0.0
  %411 = vmatpush.msra.mxu0 %v162
  %412 = vmatpush.msra.mxu0 %v161
  %413 = vmatpush.msra.mxu0 %v160
  %414 = vmatpush.msra.mxu0 %v159
  %415 = vmatpush.msra.mxu0 %v158
  %416 = vmatpush.msra.mxu0 %v157
  %417 = vmatpush.msra.mxu0 %v156
  %418 = vmatpush.msra.mxu0 %v155
  %419 = vmatmul.f32.gmra.mxu0 %v401
  %v420 = vpop.f32.mrf.mxu0
  %v421 = vadd.f32 0.0, %v420
  %422 = vdwg.mxu0
  %423 = vmatpush.msra.mxu0 0.0
  %424 = vmatpush.msra.mxu0 0.0
  %425 = vmatpush.msra.mxu0 0.0
  %426 = vmatpush.msra.mxu0 0.0
  %427 = vmatpush.msra.mxu0 0.0
  %428 = vmatpush.msra.mxu0 0.0
  %429 = vmatpush.msra.mxu0 0.0
  %430 = vmatpush.msra.mxu0 0.0
  %431 = vmatpush.msra.mxu0 %v171
  %432 = vmatpush.msra.mxu0 %v170
  %433 = vmatpush.msra.mxu0 %v169
  %434 = vmatpush.msra.mxu0 %v168
  %435 = vmatpush.msra.mxu0 %v167
  %436 = vmatpush.msra.mxu0 %v166
  %437 = vmatpush.msra.mxu0 %v165
  %438 = vmatpush.msra.mxu0 %v164
  %439 = vmatmul.f32.gmra.mxu0 %v401
  %v440 = vpop.f32.mrf.mxu0
  %v441 = vadd.f32 0.0, %v440
  %442 = vdwg.mxu0
  %443 = vmatpush.msra.mxu0 0.0
  %444 = vmatpush.msra.mxu0 0.0
  %445 = vmatpush.msra.mxu0 0.0
  %446 = vmatpush.msra.mxu0 0.0
  %447 = vmatpush.msra.mxu0 0.0
  %448 = vmatpush.msra.mxu0 0.0
  %449 = vmatpush.msra.mxu0 0.0
  %450 = vmatpush.msra.mxu0 0.0
  %451 = vmatpush.msra.mxu0 %v180
  %452 = vmatpush.msra.mxu0 %v179
  %453 = vmatpush.msra.mxu0 %v178
  %454 = vmatpush.msra.mxu0 %v177
  %455 = vmatpush.msra.mxu0 %v176
  %456 = vmatpush.msra.mxu0 %v175
  %457 = vmatpush.msra.mxu0 %v174
  %458 = vmatpush.msra.mxu0 %v173
  %459 = vmatmul.f32.gmra.mxu0 %v401
  %v460 = vpop.f32.mrf.mxu0
  %v461 = vadd.f32 %v153, %v460
  %462 = vdwg.mxu0
  %v463 = vadd.f32 %v100, %v421
  %v464 = vxor.u32 %v463, 2147483648
  %v465 = vmul.f32 %v464, 1.442695
  %v466 = vpow.pop %v465
  %v467 = vadd.f32 %v466, 1.0
  %v468 = vrcp.pop %v467
  %v469 = vmul.f32 %v467, %v468
  %v470 = vsub.f32 1.0, %v469
  %v471 = vmul.f32 %v468, %v470
  %v472 = vadd.f32 %v468, %v471
  %vm473 = vweird.f32 %v467
  %vm474 = vweird.f32 %v468
  %vm475 = vmor %vm473, %vm474
  %v476 = vsel %vm475, %v468, %v472
  %v477 = vand.u32 2147483647, %v467
  %vm478 = vcmp.eq.f32.partialorder %v477, 8.507059e+37
  %v479 = vand.u32 %v467, 2147483648
  %v480 = vor.u32 1.1754944e-38, %v479
  %v481 = vsel %vm478, %v480, %v476
  %v482 = vmul.f32 1.0, %v481
  %v483 = vadd.f32 %v125, %v441
  %v484 = vxor.u32 %v483, 2147483648
  %v485 = vmul.f32 %v484, 1.442695
  %v486 = vpow.pop %v485
  %v487 = vadd.f32 %v486, 1.0
  %v488 = vrcp.pop %v487
  %v489 = vmul.f32 %v487, %v488
  %v490 = vsub.f32 1.0, %v489
  %v491 = vmul.f32 %v488, %v490
  %v492 = vadd.f32 %v488, %v491
  %vm493 = vweird.f32 %v487
  %vm494 = vweird.f32 %v488
  %vm495 = vmor %vm493, %vm494
  %v496 = vsel %vm495, %v488, %v492
  %v497 = vand.u32 2147483647, %v487
  %vm498 = vcmp.eq.f32.partialorder %v497, 8.507059e+37
  %v499 = vand.u32 %v487, 2147483648
  %v500 = vor.u32 1.1754944e-38, %v499
  %v501 = vsel %vm498, %v500, %v496
  %v502 = vmul.f32 1.0, %v501
  %v503 = vmul.f32 %v482, %v461
  %v504 = vadd.f32 %v150, %v503
  %v505 = vtanh.pop %v504
  %v506 = vsub.f32 %v399, %v505
  %v507 = vmul.f32 %v502, %v506
  %v508 = vadd.f32 %v505, %v507
  %v510 = vsel %vm181, %v508, 0
  %512 = vmatpush.msra.mxu0 0.0
  %513 = vmatpush.msra.mxu0 0.0
  %514 = vmatpush.msra.mxu0 0.0
  %515 = vmatpush.msra.mxu0 0.0
  %516 = vmatpush.msra.mxu0 0.0
  %517 = vmatpush.msra.mxu0 0.0
  %518 = vmatpush.msra.mxu0 0.0
  %519 = vmatpush.msra.mxu0 0.0
  %520 = vmatpush.msra.mxu0 %v162
  %521 = vmatpush.msra.mxu0 %v161
  %522 = vmatpush.msra.mxu0 %v160
  %523 = vmatpush.msra.mxu0 %v159
  %524 = vmatpush.msra.mxu0 %v158
  %525 = vmatpush.msra.mxu0 %v157
  %526 = vmatpush.msra.mxu0 %v156
  %527 = vmatpush.msra.mxu0 %v155
  %528 = vmatmul.f32.gmra.mxu0 %v510
  %v529 = vpop.f32.mrf.mxu0
  %v530 = vadd.f32 0.0, %v529
  %531 = vdwg.mxu0
  %532 = vmatpush.msra.mxu0 0.0
  %533 = vmatpush.msra.mxu0 0.0
  %534 = vmatpush.msra.mxu0 0.0
  %535 = vmatpush.msra.mxu0 0.0
  %536 = vmatpush.msra.mxu0 0.0
  %537 = vmatpush.msra.mxu0 0.0
  %538 = vmatpush.msra.mxu0 0.0
  %539 = vmatpush.msra.mxu0 0.0
  %540 = vmatpush.msra.mxu0 %v171
  %541 = vmatpush.msra.mxu0 %v170
  %542 = vmatpush.msra.mxu0 %v169
  %543 = vmatpush.msra.mxu0 %v168
  %544 = vmatpush.msra.mxu0 %v167
  %545 = vmatpush.msra.mxu0 %v166
  %546 = vmatpush.msra.mxu0 %v165
  %547 = vmatpush.msra.mxu0 %v164
  %548 = vmatmul.f32.gmra.mxu0 %v510
  %v549 = vpop.f32.mrf.mxu0
  %v550 = vadd.f32 0.0, %v549
  %551 = vdwg.mxu0
  %552 = vmatpush.msra.mxu0 0.0
  %553 = vmatpush.msra.mxu0 0.0
  %554 = vmatpush.msra.mxu0 0.0
  %555 = vmatpush.msra.mxu0 0.0
  %556 = vmatpush.msra.mxu0 0.0
  %557 = vmatpush.msra.mxu0 0.0
  %558 = vmatpush.msra.mxu0 0.0
  %559 = vmatpush.msra.mxu0 0.0
  %560 = vmatpush.msra.mxu0 %v180
  %561 = vmatpush.msra.mxu0 %v179
  %562 = vmatpush.msra.mxu0 %v178
  %563 = vmatpush.msra.mxu0 %v177
  %564 = vmatpush.msra.mxu0 %v176
  %565 = vmatpush.msra.mxu0 %v175
  %566 = vmatpush.msra.mxu0 %v174
  %567 = vmatpush.msra.mxu0 %v173
  %568 = vmatmul.f32.gmra.mxu0 %v510
  %v569 = vpop.f32.mrf.mxu0
  %v570 = vadd.f32 %v153, %v569
  %571 = vdwg.mxu0
  %v572 = vadd.f32 %v100, %v530
  %v573 = vxor.u32 %v572, 2147483648
  %v574 = vmul.f32 %v573, 1.442695
  %v575 = vpow.pop %v574
  %v576 = vadd.f32 %v575, 1.0
  %v577 = vrcp.pop %v576
  %v578 = vmul.f32 %v576, %v577
  %v579 = vsub.f32 1.0, %v578
  %v580 = vmul.f32 %v577, %v579
  %v581 = vadd.f32 %v577, %v580
  %vm582 = vweird.f32 %v576
  %vm583 = vweird.f32 %v577
  %vm584 = vmor %vm582, %vm583
  %v585 = vsel %vm584, %v577, %v581
  %v586 = vand.u32 2147483647, %v576
  %vm587 = vcmp.eq.f32.partialorder %v586, 8.507059e+37
  %v588 = vand.u32 %v576, 2147483648
  %v589 = vor.u32 1.1754944e-38, %v588
  %v590 = vsel %vm587, %v589, %v585
  %v591 = vmul.f32 1.0, %v590
  %v592 = vadd.f32 %v125, %v550
  %v593 = vxor.u32 %v592, 2147483648
  %v594 = vmul.f32 %v593, 1.442695
  %v595 = vpow.pop %v594
  %v596 = vadd.f32 %v595, 1.0
  %v597 = vrcp.pop %v596
  %v598 = vmul.f32 %v596, %v597
  %v599 = vsub.f32 1.0, %v598
  %v600 = vmul.f32 %v597, %v599
  %v601 = vadd.f32 %v597, %v600
  %vm602 = vweird.f32 %v596
  %vm603 = vweird.f32 %v597
  %vm604 = vmor %vm602, %vm603
  %v605 = vsel %vm604, %v597, %v601
  %v606 = vand.u32 2147483647, %v596
  %vm607 = vcmp.eq.f32.partialorder %v606, 8.507059e+37
  %v608 = vand.u32 %v596, 2147483648
  %v609 = vor.u32 1.1754944e-38, %v608
  %v610 = vsel %vm607, %v609, %v605
  %v611 = vmul.f32 1.0, %v610
  %v612 = vmul.f32 %v591, %v570
  %v613 = vadd.f32 %v150, %v612
  %v614 = vtanh.pop %v613
  %v615 = vsub.f32 %v508, %v614
  %v616 = vmul.f32 %v611, %v615
  %v617 = vadd.f32 %v614, %v616
  %v619 = vsel %vm181, %v617, 0
  %621 = vmatpush.msra.mxu0 0.0
  %622 = vmatpush.msra.mxu0 0.0
  %623 = vmatpush.msra.mxu0 0.0
  %624 = vmatpush.msra.mxu0 0.0
  %625 = vmatpush.msra.mxu0 0.0
  %626 = vmatpush.msra.mxu0 0.0
  %627 = vmatpush.msra.mxu0 0.0
  %628 = vmatpush.msra.mxu0 0.0
  %629 = vmatpush.msra.mxu0 %v162
  %630 = vmatpush.msra.mxu0 %v161
  %631 = vmatpush.msra.mxu0 %v160
  %632 = vmatpush.msra.mxu0 %v159
  %633 = vmatpush.msra.mxu0 %v158
  %634 = vmatpush.msra.mxu0 %v157
  %635 = vmatpush.msra.mxu0 %v156
  %636 = vmatpush.msra.mxu0 %v155
  %637 = vmatmul.f32.gmra.mxu0 %v619
  %v638 = vpop.f32.mrf.mxu0
  %v639 = vadd.f32 0.0, %v638
  %640 = vdwg.mxu0
  %641 = vmatpush.msra.mxu0 0.0
  %642 = vmatpush.msra.mxu0 0.0
  %643 = vmatpush.msra.mxu0 0.0
  %644 = vmatpush.msra.mxu0 0.0
  %645 = vmatpush.msra.mxu0 0.0
  %646 = vmatpush.msra.mxu0 0.0
  %647 = vmatpush.msra.mxu0 0.0
  %648 = vmatpush.msra.mxu0 0.0
  %649 = vmatpush.msra.mxu0 %v171
  %650 = vmatpush.msra.mxu0 %v170
  %651 = vmatpush.msra.mxu0 %v169
  %652 = vmatpush.msra.mxu0 %v168
  %653 = vmatpush.msra.mxu0 %v167
  %654 = vmatpush.msra.mxu0 %v166
  %655 = vmatpush.msra.mxu0 %v165
  %656 = vmatpush.msra.mxu0 %v164
  %657 = vmatmul.f32.gmra.mxu0 %v619
  %v658 = vpop.f32.mrf.mxu0
  %v659 = vadd.f32 0.0, %v658
  %660 = vdwg.mxu0
  %661 = vmatpush.msra.mxu0 0.0
  %662 = vmatpush.msra.mxu0 0.0
  %663 = vmatpush.msra.mxu0 0.0
  %664 = vmatpush.msra.mxu0 0.0
  %665 = vmatpush.msra.mxu0 0.0
  %666 = vmatpush.msra.mxu0 0.0
  %667 = vmatpush.msra.mxu0 0.0
  %668 = vmatpush.msra.mxu0 0.0
  %669 = vmatpush.msra.mxu0 %v180
  %670 = vmatpush.msra.mxu0 %v179
  %671 = vmatpush.msra.mxu0 %v178
  %672 = vmatpush.msra.mxu0 %v177
  %673 = vmatpush.msra.mxu0 %v176
  %674 = vmatpush.msra.mxu0 %v175
  %675 = vmatpush.msra.mxu0 %v174
  %676 = vmatpush.msra.mxu0 %v173
  %677 = vmatmul.f32.gmra.mxu0 %v619
  %v678 = vpop.f32.mrf.mxu0
  %v679 = vadd.f32 %v153, %v678
  %680 = vdwg.mxu0
  %v681 = vadd.f32 %v100, %v639
  %v682 = vxor.u32 %v681, 2147483648
  %v683 = vmul.f32 %v682, 1.442695
  %v684 = vpow.pop %v683
  %v685 = vadd.f32 %v684, 1.0
  %v686 = vrcp.pop %v685
  %v687 = vmul.f32 %v685, %v686
  %v688 = vsub.f32 1.0, %v687
  %v689 = vmul.f32 %v686, %v688
  %v690 = vadd.f32 %v686, %v689
  %vm691 = vweird.f32 %v685
  %vm692 = vweird.f32 %v686
  %vm693 = vmor %vm691, %vm692
  %v694 = vsel %vm693, %v686, %v690
  %v695 = vand.u32 2147483647, %v685
  %vm696 = vcmp.eq.f32.partialorder %v695, 8.507059e+37
  %v697 = vand.u32 %v685, 2147483648
  %v698 = vor.u32 1.1754944e-38, %v697
  %v699 = vsel %vm696, %v698, %v694
  %v700 = vmul.f32 1.0, %v699
  %v701 = vadd.f32 %v125, %v659
  %v702 = vxor.u32 %v701, 2147483648
  %v703 = vmul.f32 %v702, 1.442695
  %v704 = vpow.pop %v703
  %v705 = vadd.f32 %v704, 1.0
  %v706 = vrcp.pop %v705
  %v707 = vmul.f32 %v705, %v706
  %v708 = vsub.f32 1.0, %v707
  %v709 = vmul.f32 %v706, %v708
  %v710 = vadd.f32 %v706, %v709
  %vm711 = vweird.f32 %v705
  %vm712 = vweird.f32 %v706
  %vm713 = vmor %vm711, %vm712
  %v714 = vsel %vm713, %v706, %v710
  %v715 = vand.u32 2147483647, %v705
  %vm716 = vcmp.eq.f32.partialorder %v715, 8.507059e+37
  %v717 = vand.u32 %v705, 2147483648
  %v718 = vor.u32 1.1754944e-38, %v717
  %v719 = vsel %vm716, %v718, %v714
  %v720 = vmul.f32 1.0, %v719
  %v721 = vmul.f32 %v700, %v679
  %v722 = vadd.f32 %v150, %v721
  %v723 = vtanh.pop %v722
  %v724 = vsub.f32 %v617, %v723
  %v725 = vmul.f32 %v720, %v724
  %v726 = vadd.f32 %v723, %v725
  %v728 = vsel %vm181, %v726, 0
  %730 = vmatpush.msra.mxu0 0.0
  %731 = vmatpush.msra.mxu0 0.0
  %732 = vmatpush.msra.mxu0 0.0
  %733 = vmatpush.msra.mxu0 0.0
  %734 = vmatpush.msra.mxu0 0.0
  %735 = vmatpush.msra.mxu0 0.0
  %736 = vmatpush.msra.mxu0 0.0
  %737 = vmatpush.msra.mxu0 0.0
  %738 = vmatpush.msra.mxu0 %v162
  %739 = vmatpush.msra.mxu0 %v161
  %740 = vmatpush.msra.mxu0 %v160
  %741 = vmatpush.msra.mxu0 %v159
  %742 = vmatpush.msra.mxu0 %v158
  %743 = vmatpush.msra.mxu0 %v157
  %744 = vmatpush.msra.mxu0 %v156
  %745 = vmatpush.msra.mxu0 %v155
  %746 = vmatmul.f32.gmra.mxu0 %v728
  %v747 = vpop.f32.mrf.mxu0
  %v748 = vadd.f32 0.0, %v747
  %749 = vdwg.mxu0
  %750 = vmatpush.msra.mxu0 0.0
  %751 = vmatpush.msra.mxu0 0.0
  %752 = vmatpush.msra.mxu0 0.0
  %753 = vmatpush.msra.mxu0 0.0
  %754 = vmatpush.msra.mxu0 0.0
  %755 = vmatpush.msra.mxu0 0.0
  %756 = vmatpush.msra.mxu0 0.0
  %757 = vmatpush.msra.mxu0 0.0
  %758 = vmatpush.msra.mxu0 %v171
  %759 = vmatpush.msra.mxu0 %v170
  %760 = vmatpush.msra.mxu0 %v169
  %761 = vmatpush.msra.mxu0 %v168
  %762 = vmatpush.msra.mxu0 %v167
  %763 = vmatpush.msra.mxu0 %v166
  %764 = vmatpush.msra.mxu0 %v165
  %765 = vmatpush.msra.mxu0 %v164
  %766 = vmatmul.f32.gmra.mxu0 %v728
  %v767 = vpop.f32.mrf.mxu0
  %v768 = vadd.f32 0.0, %v767
  %769 = vdwg.mxu0
  %770 = vmatpush.msra.mxu0 0.0
  %771 = vmatpush.msra.mxu0 0.0
  %772 = vmatpush.msra.mxu0 0.0
  %773 = vmatpush.msra.mxu0 0.0
  %774 = vmatpush.msra.mxu0 0.0
  %775 = vmatpush.msra.mxu0 0.0
  %776 = vmatpush.msra.mxu0 0.0
  %777 = vmatpush.msra.mxu0 0.0
  %778 = vmatpush.msra.mxu0 %v180
  %779 = vmatpush.msra.mxu0 %v179
  %780 = vmatpush.msra.mxu0 %v178
  %781 = vmatpush.msra.mxu0 %v177
  %782 = vmatpush.msra.mxu0 %v176
  %783 = vmatpush.msra.mxu0 %v175
  %784 = vmatpush.msra.mxu0 %v174
  %785 = vmatpush.msra.mxu0 %v173
  %786 = vmatmul.f32.gmra.mxu0 %v728
  %v787 = vpop.f32.mrf.mxu0
  %v788 = vadd.f32 %v153, %v787
  %789 = vdwg.mxu0
  %v790 = vadd.f32 %v100, %v748
  %v791 = vxor.u32 %v790, 2147483648
  %v792 = vmul.f32 %v791, 1.442695
  %v793 = vpow.pop %v792
  %v794 = vadd.f32 %v793, 1.0
  %v795 = vrcp.pop %v794
  %v796 = vmul.f32 %v794, %v795
  %v797 = vsub.f32 1.0, %v796
  %v798 = vmul.f32 %v795, %v797
  %v799 = vadd.f32 %v795, %v798
  %vm800 = vweird.f32 %v794
  %vm801 = vweird.f32 %v795
  %vm802 = vmor %vm800, %vm801
  %v803 = vsel %vm802, %v795, %v799
  %v804 = vand.u32 2147483647, %v794
  %vm805 = vcmp.eq.f32.partialorder %v804, 8.507059e+37
  %v806 = vand.u32 %v794, 2147483648
  %v807 = vor.u32 1.1754944e-38, %v806
  %v808 = vsel %vm805, %v807, %v803
  %v809 = vmul.f32 1.0, %v808
  %v810 = vadd.f32 %v125, %v768
  %v811 = vxor.u32 %v810, 2147483648
  %v812 = vmul.f32 %v811, 1.442695
  %v813 = vpow.pop %v812
  %v814 = vadd.f32 %v813, 1.0
  %v815 = vrcp.pop %v814
  %v816 = vmul.f32 %v814, %v815
  %v817 = vsub.f32 1.0, %v816
  %v818 = vmul.f32 %v815, %v817
  %v819 = vadd.f32 %v815, %v818
  %vm820 = vweird.f32 %v814
  %vm821 = vweird.f32 %v815
  %vm822 = vmor %vm820, %vm821
  %v823 = vsel %vm822, %v815, %v819
  %v824 = vand.u32 2147483647, %v814
  %vm825 = vcmp.eq.f32.partialorder %v824, 8.507059e+37
  %v826 = vand.u32 %v814, 2147483648
  %v827 = vor.u32 1.1754944e-38, %v826
  %v828 = vsel %vm825, %v827, %v823
  %v829 = vmul.f32 1.0, %v828
  %v830 = vmul.f32 %v809, %v788
  %v831 = vadd.f32 %v150, %v830
  %v832 = vtanh.pop %v831
  %v833 = vsub.f32 %v726, %v832
  %v834 = vmul.f32 %v829, %v833
  %v835 = vadd.f32 %v832, %v834
  %v837 = vsel %vm181, %v835, 0
  %839 = vmatpush.msra.mxu0 0.0
  %840 = vmatpush.msra.mxu0 0.0
  %841 = vmatpush.msra.mxu0 0.0
  %842 = vmatpush.msra.mxu0 0.0
  %843 = vmatpush.msra.mxu0 0.0
  %844 = vmatpush.msra.mxu0 0.0
  %845 = vmatpush.msra.mxu0 0.0
  %846 = vmatpush.msra.mxu0 0.0
  %847 = vmatpush.msra.mxu0 %v162
  %848 = vmatpush.msra.mxu0 %v161
  %849 = vmatpush.msra.mxu0 %v160
  %850 = vmatpush.msra.mxu0 %v159
  %851 = vmatpush.msra.mxu0 %v158
  %852 = vmatpush.msra.mxu0 %v157
  %853 = vmatpush.msra.mxu0 %v156
  %854 = vmatpush.msra.mxu0 %v155
  %855 = vmatmul.f32.gmra.mxu0 %v837
  %v856 = vpop.f32.mrf.mxu0
  %v857 = vadd.f32 0.0, %v856
  %858 = vdwg.mxu0
  %859 = vmatpush.msra.mxu0 0.0
  %860 = vmatpush.msra.mxu0 0.0
  %861 = vmatpush.msra.mxu0 0.0
  %862 = vmatpush.msra.mxu0 0.0
  %863 = vmatpush.msra.mxu0 0.0
  %864 = vmatpush.msra.mxu0 0.0
  %865 = vmatpush.msra.mxu0 0.0
  %866 = vmatpush.msra.mxu0 0.0
  %867 = vmatpush.msra.mxu0 %v171
  %868 = vmatpush.msra.mxu0 %v170
  %869 = vmatpush.msra.mxu0 %v169
  %870 = vmatpush.msra.mxu0 %v168
  %871 = vmatpush.msra.mxu0 %v167
  %872 = vmatpush.msra.mxu0 %v166
  %873 = vmatpush.msra.mxu0 %v165
  %874 = vmatpush.msra.mxu0 %v164
  %875 = vmatmul.f32.gmra.mxu0 %v837
  %v876 = vpop.f32.mrf.mxu0
  %v877 = vadd.f32 0.0, %v876
  %878 = vdwg.mxu0
  %879 = vmatpush.msra.mxu0 0.0
  %880 = vmatpush.msra.mxu0 0.0
  %881 = vmatpush.msra.mxu0 0.0
  %882 = vmatpush.msra.mxu0 0.0
  %883 = vmatpush.msra.mxu0 0.0
  %884 = vmatpush.msra.mxu0 0.0
  %885 = vmatpush.msra.mxu0 0.0
  %886 = vmatpush.msra.mxu0 0.0
  %887 = vmatpush.msra.mxu0 %v180
  %888 = vmatpush.msra.mxu0 %v179
  %889 = vmatpush.msra.mxu0 %v178
  %890 = vmatpush.msra.mxu0 %v177
  %891 = vmatpush.msra.mxu0 %v176
  %892 = vmatpush.msra.mxu0 %v175
  %893 = vmatpush.msra.mxu0 %v174
  %894 = vmatpush.msra.mxu0 %v173
  %895 = vmatmul.f32.gmra.mxu0 %v837
  %v896 = vpop.f32.mrf.mxu0
  %v897 = vadd.f32 %v153, %v896
  %898 = vdwg.mxu0
  %v899 = vadd.f32 %v100, %v857
  %v900 = vxor.u32 %v899, 2147483648
  %v901 = vmul.f32 %v900, 1.442695
  %v902 = vpow.pop %v901
  %v903 = vadd.f32 %v902, 1.0
  %v904 = vrcp.pop %v903
  %v905 = vmul.f32 %v903, %v904
  %v906 = vsub.f32 1.0, %v905
  %v907 = vmul.f32 %v904, %v906
  %v908 = vadd.f32 %v904, %v907
  %vm909 = vweird.f32 %v903
  %vm910 = vweird.f32 %v904
  %vm911 = vmor %vm909, %vm910
  %v912 = vsel %vm911, %v904, %v908
  %v913 = vand.u32 2147483647, %v903
  %vm914 = vcmp.eq.f32.partialorder %v913, 8.507059e+37
  %v915 = vand.u32 %v903, 2147483648
  %v916 = vor.u32 1.1754944e-38, %v915
  %v917 = vsel %vm914, %v916, %v912
  %v918 = vmul.f32 1.0, %v917
  %v919 = vadd.f32 %v125, %v877
  %v920 = vxor.u32 %v919, 2147483648
  %v921 = vmul.f32 %v920, 1.442695
  %v922 = vpow.pop %v921
  %v923 = vadd.f32 %v922, 1.0
  %v924 = vrcp.pop %v923
  %v925 = vmul.f32 %v923, %v924
  %v926 = vsub.f32 1.0, %v925
  %v927 = vmul.f32 %v924, %v926
  %v928 = vadd.f32 %v924, %v927
  %vm929 = vweird.f32 %v923
  %vm930 = vweird.f32 %v924
  %vm931 = vmor %vm929, %vm930
  %v932 = vsel %vm931, %v924, %v928
  %v933 = vand.u32 2147483647, %v923
  %vm934 = vcmp.eq.f32.partialorder %v933, 8.507059e+37
  %v935 = vand.u32 %v923, 2147483648
  %v936 = vor.u32 1.1754944e-38, %v935
  %v937 = vsel %vm934, %v936, %v932
  %v938 = vmul.f32 1.0, %v937
  %v939 = vmul.f32 %v918, %v897
  %v940 = vadd.f32 %v150, %v939
  %v941 = vtanh.pop %v940
  %v942 = vsub.f32 %v835, %v941
  %v943 = vmul.f32 %v938, %v942
  %v944 = vadd.f32 %v941, %v943
  %v946 = vsel %vm181, %v944, 0
  %948 = vmatpush.msra.mxu0 0.0
  %949 = vmatpush.msra.mxu0 0.0
  %950 = vmatpush.msra.mxu0 0.0
  %951 = vmatpush.msra.mxu0 0.0
  %952 = vmatpush.msra.mxu0 0.0
  %953 = vmatpush.msra.mxu0 0.0
  %954 = vmatpush.msra.mxu0 0.0
  %955 = vmatpush.msra.mxu0 0.0
  %956 = vmatpush.msra.mxu0 %v162
  %957 = vmatpush.msra.mxu0 %v161
  %958 = vmatpush.msra.mxu0 %v160
  %959 = vmatpush.msra.mxu0 %v159
  %960 = vmatpush.msra.mxu0 %v158
  %961 = vmatpush.msra.mxu0 %v157
  %962 = vmatpush.msra.mxu0 %v156
  %963 = vmatpush.msra.mxu0 %v155
  %964 = vmatmul.f32.gmra.mxu0 %v946
  %v965 = vpop.f32.mrf.mxu0
  %v966 = vadd.f32 0.0, %v965
  %967 = vdwg.mxu0
  %968 = vmatpush.msra.mxu0 0.0
  %969 = vmatpush.msra.mxu0 0.0
  %970 = vmatpush.msra.mxu0 0.0
  %971 = vmatpush.msra.mxu0 0.0
  %972 = vmatpush.msra.mxu0 0.0
  %973 = vmatpush.msra.mxu0 0.0
  %974 = vmatpush.msra.mxu0 0.0
  %975 = vmatpush.msra.mxu0 0.0
  %976 = vmatpush.msra.mxu0 %v171
  %977 = vmatpush.msra.mxu0 %v170
  %978 = vmatpush.msra.mxu0 %v169
  %979 = vmatpush.msra.mxu0 %v168
  %980 = vmatpush.msra.mxu0 %v167
  %981 = vmatpush.msra.mxu0 %v166
  %982 = vmatpush.msra.mxu0 %v165
  %983 = vmatpush.msra.mxu0 %v164
  %984 = vmatmul.f32.gmra.mxu0 %v946
  %v985 = vpop.f32.mrf.mxu0
  %v986 = vadd.f32 0.0, %v985
  %987 = vdwg.mxu0
  %988 = vmatpush.msra.mxu0 0.0
  %989 = vmatpush.msra.mxu0 0.0
  %990 = vmatpush.msra.mxu0 0.0
  %991 = vmatpush.msra.mxu0 0.0
  %992 = vmatpush.msra.mxu0 0.0
  %993 = vmatpush.msra.mxu0 0.0
  %994 = vmatpush.msra.mxu0 0.0
  %995 = vmatpush.msra.mxu0 0.0
  %996 = vmatpush.msra.mxu0 %v180
  %997 = vmatpush.msra.mxu0 %v179
  %998 = vmatpush.msra.mxu0 %v178
  %999 = vmatpush.msra.mxu0 %v177
  %1000 = vmatpush.msra.mxu0 %v176
  %1001 = vmatpush.msra.mxu0 %v175
  %1002 = vmatpush.msra.mxu0 %v174
  %1003 = vmatpush.msra.mxu0 %v173
  %1004 = vmatmul.f32.gmra.mxu0 %v946
  %v1005 = vpop.f32.mrf.mxu0
  %v1006 = vadd.f32 %v153, %v1005
  %1007 = vdwg.mxu0
  %v1008 = vadd.f32 %v100, %v966
  %v1009 = vxor.u32 %v1008, 2147483648
  %v1010 = vmul.f32 %v1009, 1.442695
  %v1011 = vpow.pop %v1010
  %v1012 = vadd.f32 %v1011, 1.0
  %v1013 = vrcp.pop %v1012
  %v1014 = vmul.f32 %v1012, %v1013
  %v1015 = vsub.f32 1.0, %v1014
  %v1016 = vmul.f32 %v1013, %v1015
  %v1017 = vadd.f32 %v1013, %v1016
  %vm1018 = vweird.f32 %v1012
  %vm1019 = vweird.f32 %v1013
  %vm1020 = vmor %vm1018, %vm1019
  %v1021 = vsel %vm1020, %v1013, %v1017
  %v1022 = vand.u32 2147483647, %v1012
  %vm1023 = vcmp.eq.f32.partialorder %v1022, 8.507059e+37
  %v1024 = vand.u32 %v1012, 2147483648
  %v1025 = vor.u32 1.1754944e-38, %v1024
  %v1026 = vsel %vm1023, %v1025, %v1021
  %v1027 = vmul.f32 1.0, %v1026
  %v1028 = vadd.f32 %v125, %v986
  %v1029 = vxor.u32 %v1028, 2147483648
  %v1030 = vmul.f32 %v1029, 1.442695
  %v1031 = vpow.pop %v1030
  %v1032 = vadd.f32 %v1031, 1.0
  %v1033 = vrcp.pop %v1032
  %v1034 = vmul.f32 %v1032, %v1033
  %v1035 = vsub.f32 1.0, %v1034
  %v1036 = vmul.f32 %v1033, %v1035
  %v1037 = vadd.f32 %v1033, %v1036
  %vm1038 = vweird.f32 %v1032
  %vm1039 = vweird.f32 %v1033
  %vm1040 = vmor %vm1038, %vm1039
  %v1041 = vsel %vm1040, %v1033, %v1037
  %v1042 = vand.u32 2147483647, %v1032
  %vm1043 = vcmp.eq.f32.partialorder %v1042, 8.507059e+37
  %v1044 = vand.u32 %v1032, 2147483648
  %v1045 = vor.u32 1.1754944e-38, %v1044
  %v1046 = vsel %vm1043, %v1045, %v1041
  %v1047 = vmul.f32 1.0, %v1046
  %v1048 = vmul.f32 %v1027, %v1006
  %v1049 = vadd.f32 %v150, %v1048
  %v1050 = vtanh.pop %v1049
  %v1051 = vsub.f32 %v944, %v1050
  %v1052 = vmul.f32 %v1047, %v1051
  %v1053 = vadd.f32 %v1050, %v1052
  %v1054 = vrot.slane %v399, 6
  %v1056 = vrot.slane %v508, 4
  %v1058 = vrot.slane %v617, 2
  %v1060 = vrot.slane %v835, 6
  %v1062 = vrot.slane %v944, 4
  %v1065 = vrot.slane %v1053, 2
  %vm1067 = vcmask 1041408
  %v1068 = vsel %vm1067, %v290, %v1054
  %vm1069 = vcmask 1043456
  %v1070 = vsel %vm1069, %v1068, %v1056
  %vm1071 = vcmask 1045504
  %v1072 = vsel %vm1071, %v1070, %v1058
  %v1073 = vsel %vm1067, %v726, %v1060
  %v1074 = vsel %vm1069, %v1073, %v1062
  %v1075 = vsel %vm1071, %v1074, %v1065
  %v1076 = vrot.slane %v944, 6
  %v1078 = vrot.slane %v835, 4
  %v1080 = vrot.slane %v726, 2
  %v1082 = vrot.slane %v508, 6
  %v1084 = vrot.slane %v399, 4
  %v1086 = vrot.slane %v290, 2
  %v1088 = vsel %vm1067, %v1053, %v1076
  %v1089 = vsel %vm1069, %v1088, %v1078
  %v1090 = vsel %vm1071, %v1089, %v1080
  %v1091 = vsel %vm1067, %v617, %v1082
  %v1092 = vsel %vm1069, %v1091, %v1084
  %v1093 = vsel %vm1071, %v1092, %v1086
  %vm1094 = vcmask 261120
  %v1095 = vsel %vm1094, %v1072, %v1090
  %v1096 = vsel %vm1094, %v1075, %v1093
  %v1097 = vsel %vm1094, %v1090, %v1072
  %v1098 = vsel %vm1094, %v1093, %v1075
  %1101 = vrot.lane.b32.xlu0 %v1097, 64
  %v1102 = vpop.permute.xlu0 %1101
  %1103 = vrot.lane.b32.xlu0 %v1098, 64
  %v1104 = vpop.permute.xlu0 %1103
  %v1107 = vsel %vm181, %v1095, %v1102
  %v1108 = vsel %vm181, %v1096, %v1104
  %s1109 = scalar_lea.vmem %s2, 1408
  %v1110 = vld [vmem:[%s1109] sm:$0xff]
  %v1111 = vld [vmem:[%s1109 + $0x8] sm:$0xff]
  %v1112 = vld [vmem:[%s1109 + $0x10] sm:$0xff]
  %v1113 = vld [vmem:[%s1109 + $0x18] sm:$0xff]
  %v1114 = vld [vmem:[%s1109 + $0x20] sm:$0xff]
  %v1115 = vld [vmem:[%s1109 + $0x28] sm:$0xff]
  %v1116 = vld [vmem:[%s1109 + $0x30] sm:$0xff]
  %v1117 = vld [vmem:[%s1109 + $0x38] sm:$0xff]
  %v1118 = vld [vmem:[%s1109 + $0x40] sm:$0xff]
  %v1119 = vld [vmem:[%s1109 + $0x48] sm:$0xff]
  %v1120 = vld [vmem:[%s1109 + $0x50] sm:$0xff]
  %v1121 = vld [vmem:[%s1109 + $0x58] sm:$0xff]
  %v1122 = vld [vmem:[%s1109 + $0x60] sm:$0xff]
  %v1123 = vld [vmem:[%s1109 + $0x68] sm:$0xff]
  %v1124 = vld [vmem:[%s1109 + $0x70] sm:$0xff]
  %v1125 = vld [vmem:[%s1109 + $0x78] sm:$0xff]
  %v1126 = vld [vmem:[%s3 + $0x6] sm:$0x1]
  %v1127 = vperm.slane %v1126, 0
  %1128 = vmatpush.msra.mxu0 %v1125
  %1129 = vmatpush.msra.mxu0 %v1124
  %1130 = vmatpush.msra.mxu0 %v1123
  %1131 = vmatpush.msra.mxu0 %v1122
  %1132 = vmatpush.msra.mxu0 %v1121
  %1133 = vmatpush.msra.mxu0 %v1120
  %1134 = vmatpush.msra.mxu0 %v1119
  %1135 = vmatpush.msra.mxu0 %v1118
  %1136 = vmatpush.msra.mxu0 %v1117
  %1137 = vmatpush.msra.mxu0 %v1116
  %1138 = vmatpush.msra.mxu0 %v1115
  %1139 = vmatpush.msra.mxu0 %v1114
  %1140 = vmatpush.msra.mxu0 %v1113
  %1141 = vmatpush.msra.mxu0 %v1112
  %1142 = vmatpush.msra.mxu0 %v1111
  %1143 = vmatpush.msra.mxu0 %v1110
  %1144 = vmatmul.f32.gmra.mxu0 %v1107
  %v1145 = vpop.f32.mrf.mxu0
  %v1146 = vadd.f32 %v1127, %v1145
  %1147 = vmatmul.f32.gmra.mxu0 %v1108
  %v1148 = vpop.f32.mrf.mxu0
  %v1149 = vadd.f32 %v1127, %v1148
  %1150 = vdwg.mxu0
  %s1151 = scalar_lea.vmem %s2, 1536
  %v1152 = vld [vmem:[%s1151] sm:$0xff]
  %v1153 = vld [vmem:[%s1151 + $0x8] sm:$0xff]
  %v1154 = vld [vmem:[%s1151 + $0x10] sm:$0xff]
  %v1155 = vld [vmem:[%s1151 + $0x18] sm:$0xff]
  %v1156 = vld [vmem:[%s1151 + $0x20] sm:$0xff]
  %v1157 = vld [vmem:[%s1151 + $0x28] sm:$0xff]
  %v1158 = vld [vmem:[%s1151 + $0x30] sm:$0xff]
  %v1159 = vld [vmem:[%s1151 + $0x38] sm:$0xff]
  %v1160 = vld [vmem:[%s1151 + $0x40] sm:$0xff]
  %v1161 = vld [vmem:[%s1151 + $0x48] sm:$0xff]
  %v1162 = vld [vmem:[%s1151 + $0x50] sm:$0xff]
  %v1163 = vld [vmem:[%s1151 + $0x58] sm:$0xff]
  %v1164 = vld [vmem:[%s1151 + $0x60] sm:$0xff]
  %v1165 = vld [vmem:[%s1151 + $0x68] sm:$0xff]
  %v1166 = vld [vmem:[%s1151 + $0x70] sm:$0xff]
  %v1167 = vld [vmem:[%s1151 + $0x78] sm:$0xff]
  %v1168 = vld [vmem:[%s3 + $0x7] sm:$0x1]
  %v1169 = vperm.slane %v1168, 0
  %1170 = vmatpush.msra.mxu0 %v1167
  %1171 = vmatpush.msra.mxu0 %v1166
  %1172 = vmatpush.msra.mxu0 %v1165
  %1173 = vmatpush.msra.mxu0 %v1164
  %1174 = vmatpush.msra.mxu0 %v1163
  %1175 = vmatpush.msra.mxu0 %v1162
  %1176 = vmatpush.msra.mxu0 %v1161
  %1177 = vmatpush.msra.mxu0 %v1160
  %1178 = vmatpush.msra.mxu0 %v1159
  %1179 = vmatpush.msra.mxu0 %v1158
  %1180 = vmatpush.msra.mxu0 %v1157
  %1181 = vmatpush.msra.mxu0 %v1156
  %1182 = vmatpush.msra.mxu0 %v1155
  %1183 = vmatpush.msra.mxu0 %v1154
  %1184 = vmatpush.msra.mxu0 %v1153
  %1185 = vmatpush.msra.mxu0 %v1152
  %1186 = vmatmul.f32.gmra.mxu0 %v1107
  %v1187 = vpop.f32.mrf.mxu0
  %v1188 = vadd.f32 %v1169, %v1187
  %1189 = vmatmul.f32.gmra.mxu0 %v1108
  %v1190 = vpop.f32.mrf.mxu0
  %v1191 = vadd.f32 %v1169, %v1190
  %1192 = vdwg.mxu0
  %s1193 = scalar_lea.vmem %s2, 1664
  %v1194 = vld [vmem:[%s1193] sm:$0xff]
  %v1195 = vld [vmem:[%s1193 + $0x8] sm:$0xff]
  %v1196 = vld [vmem:[%s1193 + $0x10] sm:$0xff]
  %v1197 = vld [vmem:[%s1193 + $0x18] sm:$0xff]
  %v1198 = vld [vmem:[%s1193 + $0x20] sm:$0xff]
  %v1199 = vld [vmem:[%s1193 + $0x28] sm:$0xff]
  %v1200 = vld [vmem:[%s1193 + $0x30] sm:$0xff]
  %v1201 = vld [vmem:[%s1193 + $0x38] sm:$0xff]
  %v1202 = vld [vmem:[%s1193 + $0x40] sm:$0xff]
  %v1203 = vld [vmem:[%s1193 + $0x48] sm:$0xff]
  %v1204 = vld [vmem:[%s1193 + $0x50] sm:$0xff]
  %v1205 = vld [vmem:[%s1193 + $0x58] sm:$0xff]
  %v1206 = vld [vmem:[%s1193 + $0x60] sm:$0xff]
  %v1207 = vld [vmem:[%s1193 + $0x68] sm:$0xff]
  %v1208 = vld [vmem:[%s1193 + $0x70] sm:$0xff]
  %v1209 = vld [vmem:[%s1193 + $0x78] sm:$0xff]
  %v1210 = vld [vmem:[%s3 + $0x8] sm:$0x1]
  %v1211 = vperm.slane %v1210, 0
  %1212 = vmatpush.msra.mxu0 %v1209
  %1213 = vmatpush.msra.mxu0 %v1208
  %1214 = vmatpush.msra.mxu0 %v1207
  %1215 = vmatpush.msra.mxu0 %v1206
  %1216 = vmatpush.msra.mxu0 %v1205
  %1217 = vmatpush.msra.mxu0 %v1204
  %1218 = vmatpush.msra.mxu0 %v1203
  %1219 = vmatpush.msra.mxu0 %v1202
  %1220 = vmatpush.msra.mxu0 %v1201
  %1221 = vmatpush.msra.mxu0 %v1200
  %1222 = vmatpush.msra.mxu0 %v1199
  %1223 = vmatpush.msra.mxu0 %v1198
  %1224 = vmatpush.msra.mxu0 %v1197
  %1225 = vmatpush.msra.mxu0 %v1196
  %1226 = vmatpush.msra.mxu0 %v1195
  %1227 = vmatpush.msra.mxu0 %v1194
  %1228 = vmatmul.f32.gmra.mxu0 %v1107
  %v1229 = vpop.f32.mrf.mxu0
  %v1230 = vadd.f32 %v1211, %v1229
  %1231 = vmatmul.f32.gmra.mxu0 %v1108
  %v1232 = vpop.f32.mrf.mxu0
  %v1233 = vadd.f32 %v1211, %v1232
  %1234 = vdwg.mxu0
  %v1235 = vld [vmem:[%s3 + $0x9] sm:$0x1]
  %v1236 = vperm.slane %v1235, 0
  %s1237 = scalar_lea.vmem %s2, 1024
  %v1238 = vld [vmem:[%s1237] sm:$0xff]
  %v1239 = vld [vmem:[%s1237 + $0x8] sm:$0xff]
  %v1240 = vld [vmem:[%s1237 + $0x10] sm:$0xff]
  %v1241 = vld [vmem:[%s1237 + $0x18] sm:$0xff]
  %v1242 = vld [vmem:[%s1237 + $0x20] sm:$0xff]
  %v1243 = vld [vmem:[%s1237 + $0x28] sm:$0xff]
  %v1244 = vld [vmem:[%s1237 + $0x30] sm:$0xff]
  %v1245 = vld [vmem:[%s1237 + $0x38] sm:$0xff]
  %s1246 = scalar_lea.vmem %s2, 1152
  %v1247 = vld [vmem:[%s1246] sm:$0xff]
  %v1248 = vld [vmem:[%s1246 + $0x8] sm:$0xff]
  %v1249 = vld [vmem:[%s1246 + $0x10] sm:$0xff]
  %v1250 = vld [vmem:[%s1246 + $0x18] sm:$0xff]
  %v1251 = vld [vmem:[%s1246 + $0x20] sm:$0xff]
  %v1252 = vld [vmem:[%s1246 + $0x28] sm:$0xff]
  %v1253 = vld [vmem:[%s1246 + $0x30] sm:$0xff]
  %v1254 = vld [vmem:[%s1246 + $0x38] sm:$0xff]
  %s1255 = scalar_lea.vmem %s2, 1280
  %v1256 = vld [vmem:[%s1255] sm:$0xff]
  %v1257 = vld [vmem:[%s1255 + $0x8] sm:$0xff]
  %v1258 = vld [vmem:[%s1255 + $0x10] sm:$0xff]
  %v1259 = vld [vmem:[%s1255 + $0x18] sm:$0xff]
  %v1260 = vld [vmem:[%s1255 + $0x20] sm:$0xff]
  %v1261 = vld [vmem:[%s1255 + $0x28] sm:$0xff]
  %v1262 = vld [vmem:[%s1255 + $0x30] sm:$0xff]
  %v1263 = vld [vmem:[%s1255 + $0x38] sm:$0xff]
  %1264 = vmatpush.msra.mxu0 0.0
  %1265 = vmatpush.msra.mxu0 0.0
  %1266 = vmatpush.msra.mxu0 0.0
  %1267 = vmatpush.msra.mxu0 0.0
  %1268 = vmatpush.msra.mxu0 0.0
  %1269 = vmatpush.msra.mxu0 0.0
  %1270 = vmatpush.msra.mxu0 0.0
  %1271 = vmatpush.msra.mxu0 0.0
  %1272 = vmatpush.msra.mxu0 %v1245
  %1273 = vmatpush.msra.mxu0 %v1244
  %1274 = vmatpush.msra.mxu0 %v1243
  %1275 = vmatpush.msra.mxu0 %v1242
  %1276 = vmatpush.msra.mxu0 %v1241
  %1277 = vmatpush.msra.mxu0 %v1240
  %1278 = vmatpush.msra.mxu0 %v1239
  %1279 = vmatpush.msra.mxu0 %v1238
  %1280 = vmatmul.f32.gmra.mxu0 %v183
  %v1281 = vpop.f32.mrf.mxu0
  %v1282 = vadd.f32 0.0, %v1281
  %1283 = vdwg.mxu0
  %1284 = vmatpush.msra.mxu0 0.0
  %1285 = vmatpush.msra.mxu0 0.0
  %1286 = vmatpush.msra.mxu0 0.0
  %1287 = vmatpush.msra.mxu0 0.0
  %1288 = vmatpush.msra.mxu0 0.0
  %1289 = vmatpush.msra.mxu0 0.0
  %1290 = vmatpush.msra.mxu0 0.0
  %1291 = vmatpush.msra.mxu0 0.0
  %1292 = vmatpush.msra.mxu0 %v1254
  %1293 = vmatpush.msra.mxu0 %v1253
  %1294 = vmatpush.msra.mxu0 %v1252
  %1295 = vmatpush.msra.mxu0 %v1251
  %1296 = vmatpush.msra.mxu0 %v1250
  %1297 = vmatpush.msra.mxu0 %v1249
  %1298 = vmatpush.msra.mxu0 %v1248
  %1299 = vmatpush.msra.mxu0 %v1247
  %1300 = vmatmul.f32.gmra.mxu0 %v183
  %v1301 = vpop.f32.mrf.mxu0
  %v1302 = vadd.f32 0.0, %v1301
  %1303 = vdwg.mxu0
  %1304 = vmatpush.msra.mxu0 0.0
  %1305 = vmatpush.msra.mxu0 0.0
  %1306 = vmatpush.msra.mxu0 0.0
  %1307 = vmatpush.msra.mxu0 0.0
  %1308 = vmatpush.msra.mxu0 0.0
  %1309 = vmatpush.msra.mxu0 0.0
  %1310 = vmatpush.msra.mxu0 0.0
  %1311 = vmatpush.msra.mxu0 0.0
  %1312 = vmatpush.msra.mxu0 %v1263
  %1313 = vmatpush.msra.mxu0 %v1262
  %1314 = vmatpush.msra.mxu0 %v1261
  %1315 = vmatpush.msra.mxu0 %v1260
  %1316 = vmatpush.msra.mxu0 %v1259
  %1317 = vmatpush.msra.mxu0 %v1258
  %1318 = vmatpush.msra.mxu0 %v1257
  %1319 = vmatpush.msra.mxu0 %v1256
  %1320 = vmatmul.f32.gmra.mxu0 %v183
  %v1321 = vpop.f32.mrf.mxu0
  %v1322 = vadd.f32 %v1236, %v1321
  %1323 = vdwg.mxu0
  %v1324 = vadd.f32 %v1146, %v1282
  %v1325 = vxor.u32 %v1324, 2147483648
  %v1326 = vmul.f32 %v1325, 1.442695
  %v1327 = vpow.pop %v1326
  %v1328 = vadd.f32 %v1327, 1.0
  %v1329 = vrcp.pop %v1328
  %v1330 = vmul.f32 %v1328, %v1329
  %v1331 = vsub.f32 1.0, %v1330
  %v1332 = vmul.f32 %v1329, %v1331
  %v1333 = vadd.f32 %v1329, %v1332
  %vm1334 = vweird.f32 %v1328
  %vm1335 = vweird.f32 %v1329
  %vm1336 = vmor %vm1334, %vm1335
  %v1337 = vsel %vm1336, %v1329, %v1333
  %v1338 = vand.u32 2147483647, %v1328
  %vm1339 = vcmp.eq.f32.partialorder %v1338, 8.507059e+37
  %v1340 = vand.u32 %v1328, 2147483648
  %v1341 = vor.u32 1.1754944e-38, %v1340
  %v1342 = vsel %vm1339, %v1341, %v1337
  %v1343 = vmul.f32 1.0, %v1342
  %v1344 = vadd.f32 %v1188, %v1302
  %v1345 = vxor.u32 %v1344, 2147483648
  %v1346 = vmul.f32 %v1345, 1.442695
  %v1347 = vpow.pop %v1346
  %v1348 = vadd.f32 %v1347, 1.0
  %v1349 = vrcp.pop %v1348
  %v1350 = vmul.f32 %v1348, %v1349
  %v1351 = vsub.f32 1.0, %v1350
  %v1352 = vmul.f32 %v1349, %v1351
  %v1353 = vadd.f32 %v1349, %v1352
  %vm1354 = vweird.f32 %v1348
  %vm1355 = vweird.f32 %v1349
  %vm1356 = vmor %vm1354, %vm1355
  %v1357 = vsel %vm1356, %v1349, %v1353
  %v1358 = vand.u32 2147483647, %v1348
  %vm1359 = vcmp.eq.f32.partialorder %v1358, 8.507059e+37
  %v1360 = vand.u32 %v1348, 2147483648
  %v1361 = vor.u32 1.1754944e-38, %v1360
  %v1362 = vsel %vm1359, %v1361, %v1357
  %v1363 = vmul.f32 1.0, %v1362
  %v1364 = vmul.f32 %v1343, %v1322
  %v1365 = vadd.f32 %v1230, %v1364
  %v1366 = vtanh.pop %v1365
  %v1367 = vsub.f32 0.0, %v1366
  %v1368 = vmul.f32 %v1363, %v1367
  %v1369 = vadd.f32 %v1366, %v1368
  %v1371 = vsel %vm181, %v1369, 0
  %1373 = vmatpush.msra.mxu0 0.0
  %1374 = vmatpush.msra.mxu0 0.0
  %1375 = vmatpush.msra.mxu0 0.0
  %1376 = vmatpush.msra.mxu0 0.0
  %1377 = vmatpush.msra.mxu0 0.0
  %1378 = vmatpush.msra.mxu0 0.0
  %1379 = vmatpush.msra.mxu0 0.0
  %1380 = vmatpush.msra.mxu0 0.0
  %1381 = vmatpush.msra.mxu0 %v1245
  %1382 = vmatpush.msra.mxu0 %v1244
  %1383 = vmatpush.msra.mxu0 %v1243
  %1384 = vmatpush.msra.mxu0 %v1242
  %1385 = vmatpush.msra.mxu0 %v1241
  %1386 = vmatpush.msra.mxu0 %v1240
  %1387 = vmatpush.msra.mxu0 %v1239
  %1388 = vmatpush.msra.mxu0 %v1238
  %1389 = vmatmul.f32.gmra.mxu0 %v1371
  %v1390 = vpop.f32.mrf.mxu0
  %v1391 = vadd.f32 0.0, %v1390
  %1392 = vdwg.mxu0
  %1393 = vmatpush.msra.mxu0 0.0
  %1394 = vmatpush.msra.mxu0 0.0
  %1395 = vmatpush.msra.mxu0 0.0
  %1396 = vmatpush.msra.mxu0 0.0
  %1397 = vmatpush.msra.mxu0 0.0
  %1398 = vmatpush.msra.mxu0 0.0
  %1399 = vmatpush.msra.mxu0 0.0
  %1400 = vmatpush.msra.mxu0 0.0
  %1401 = vmatpush.msra.mxu0 %v1254
  %1402 = vmatpush.msra.mxu0 %v1253
  %1403 = vmatpush.msra.mxu0 %v1252
  %1404 = vmatpush.msra.mxu0 %v1251
  %1405 = vmatpush.msra.mxu0 %v1250
  %1406 = vmatpush.msra.mxu0 %v1249
  %1407 = vmatpush.msra.mxu0 %v1248
  %1408 = vmatpush.msra.mxu0 %v1247
  %1409 = vmatmul.f32.gmra.mxu0 %v1371
  %v1410 = vpop.f32.mrf.mxu0
  %v1411 = vadd.f32 0.0, %v1410
  %1412 = vdwg.mxu0
  %1413 = vmatpush.msra.mxu0 0.0
  %1414 = vmatpush.msra.mxu0 0.0
  %1415 = vmatpush.msra.mxu0 0.0
  %1416 = vmatpush.msra.mxu0 0.0
  %1417 = vmatpush.msra.mxu0 0.0
  %1418 = vmatpush.msra.mxu0 0.0
  %1419 = vmatpush.msra.mxu0 0.0
  %1420 = vmatpush.msra.mxu0 0.0
  %1421 = vmatpush.msra.mxu0 %v1263
  %1422 = vmatpush.msra.mxu0 %v1262
  %1423 = vmatpush.msra.mxu0 %v1261
  %1424 = vmatpush.msra.mxu0 %v1260
  %1425 = vmatpush.msra.mxu0 %v1259
  %1426 = vmatpush.msra.mxu0 %v1258
  %1427 = vmatpush.msra.mxu0 %v1257
  %1428 = vmatpush.msra.mxu0 %v1256
  %1429 = vmatmul.f32.gmra.mxu0 %v1371
  %v1430 = vpop.f32.mrf.mxu0
  %v1431 = vadd.f32 %v1236, %v1430
  %1432 = vdwg.mxu0
  %v1434 = vrot.slane %v1391, 6
  %v1436 = vadd.f32 %v1146, %v1434
  %v1437 = vxor.u32 %v1436, 2147483648
  %v1438 = vmul.f32 %v1437, 1.442695
  %v1439 = vpow.pop %v1438
  %v1440 = vadd.f32 %v1439, 1.0
  %v1441 = vrcp.pop %v1440
  %v1442 = vmul.f32 %v1440, %v1441
  %v1443 = vsub.f32 1.0, %v1442
  %v1444 = vmul.f32 %v1441, %v1443
  %v1445 = vadd.f32 %v1441, %v1444
  %vm1446 = vweird.f32 %v1440
  %vm1447 = vweird.f32 %v1441
  %vm1448 = vmor %vm1446, %vm1447
  %v1449 = vsel %vm1448, %v1441, %v1445
  %v1450 = vand.u32 2147483647, %v1440
  %vm1451 = vcmp.eq.f32.partialorder %v1450, 8.507059e+37
  %v1452 = vand.u32 %v1440, 2147483648
  %v1453 = vor.u32 1.1754944e-38, %v1452
  %v1454 = vsel %vm1451, %v1453, %v1449
  %v1455 = vmul.f32 1.0, %v1454
  %v1457 = vrot.slane %v1411, 6
  %v1459 = vadd.f32 %v1188, %v1457
  %v1460 = vxor.u32 %v1459, 2147483648
  %v1461 = vmul.f32 %v1460, 1.442695
  %v1462 = vpow.pop %v1461
  %v1463 = vadd.f32 %v1462, 1.0
  %v1464 = vrcp.pop %v1463
  %v1465 = vmul.f32 %v1463, %v1464
  %v1466 = vsub.f32 1.0, %v1465
  %v1467 = vmul.f32 %v1464, %v1466
  %v1468 = vadd.f32 %v1464, %v1467
  %vm1469 = vweird.f32 %v1463
  %vm1470 = vweird.f32 %v1464
  %vm1471 = vmor %vm1469, %vm1470
  %v1472 = vsel %vm1471, %v1464, %v1468
  %v1473 = vand.u32 2147483647, %v1463
  %vm1474 = vcmp.eq.f32.partialorder %v1473, 8.507059e+37
  %v1475 = vand.u32 %v1463, 2147483648
  %v1476 = vor.u32 1.1754944e-38, %v1475
  %v1477 = vsel %vm1474, %v1476, %v1472
  %v1478 = vmul.f32 1.0, %v1477
  %v1480 = vrot.slane %v1431, 6
  %v1482 = vmul.f32 %v1455, %v1480
  %v1483 = vadd.f32 %v1230, %v1482
  %v1484 = vtanh.pop %v1483
  %v1486 = vrot.slane %v1484, 2
  %v1488 = vsub.f32 %v1369, %v1486
  %v1490 = vrot.slane %v1488, 6
  %v1492 = vmul.f32 %v1478, %v1490
  %v1493 = vadd.f32 %v1484, %v1492
  %v1495 = vrot.slane %v1493, 2
  %v1496 = vsel %vm181, %v1495, 0
  %1498 = vmatpush.msra.mxu0 0.0
  %1499 = vmatpush.msra.mxu0 0.0
  %1500 = vmatpush.msra.mxu0 0.0
  %1501 = vmatpush.msra.mxu0 0.0
  %1502 = vmatpush.msra.mxu0 0.0
  %1503 = vmatpush.msra.mxu0 0.0
  %1504 = vmatpush.msra.mxu0 0.0
  %1505 = vmatpush.msra.mxu0 0.0
  %1506 = vmatpush.msra.mxu0 %v1245
  %1507 = vmatpush.msra.mxu0 %v1244
  %1508 = vmatpush.msra.mxu0 %v1243
  %1509 = vmatpush.msra.mxu0 %v1242
  %1510 = vmatpush.msra.mxu0 %v1241
  %1511 = vmatpush.msra.mxu0 %v1240
  %1512 = vmatpush.msra.mxu0 %v1239
  %1513 = vmatpush.msra.mxu0 %v1238
  %1514 = vmatmul.f32.gmra.mxu0 %v1496
  %v1515 = vpop.f32.mrf.mxu0
  %v1516 = vadd.f32 0.0, %v1515
  %1517 = vdwg.mxu0
  %1518 = vmatpush.msra.mxu0 0.0
  %1519 = vmatpush.msra.mxu0 0.0
  %1520 = vmatpush.msra.mxu0 0.0
  %1521 = vmatpush.msra.mxu0 0.0
  %1522 = vmatpush.msra.mxu0 0.0
  %1523 = vmatpush.msra.mxu0 0.0
  %1524 = vmatpush.msra.mxu0 0.0
  %1525 = vmatpush.msra.mxu0 0.0
  %1526 = vmatpush.msra.mxu0 %v1254
  %1527 = vmatpush.msra.mxu0 %v1253
  %1528 = vmatpush.msra.mxu0 %v1252
  %1529 = vmatpush.msra.mxu0 %v1251
  %1530 = vmatpush.msra.mxu0 %v1250
  %1531 = vmatpush.msra.mxu0 %v1249
  %1532 = vmatpush.msra.mxu0 %v1248
  %1533 = vmatpush.msra.mxu0 %v1247
  %1534 = vmatmul.f32.gmra.mxu0 %v1496
  %v1535 = vpop.f32.mrf.mxu0
  %v1536 = vadd.f32 0.0, %v1535
  %1537 = vdwg.mxu0
  %1538 = vmatpush.msra.mxu0 0.0
  %1539 = vmatpush.msra.mxu0 0.0
  %1540 = vmatpush.msra.mxu0 0.0
  %1541 = vmatpush.msra.mxu0 0.0
  %1542 = vmatpush.msra.mxu0 0.0
  %1543 = vmatpush.msra.mxu0 0.0
  %1544 = vmatpush.msra.mxu0 0.0
  %1545 = vmatpush.msra.mxu0 0.0
  %1546 = vmatpush.msra.mxu0 %v1263
  %1547 = vmatpush.msra.mxu0 %v1262
  %1548 = vmatpush.msra.mxu0 %v1261
  %1549 = vmatpush.msra.mxu0 %v1260
  %1550 = vmatpush.msra.mxu0 %v1259
  %1551 = vmatpush.msra.mxu0 %v1258
  %1552 = vmatpush.msra.mxu0 %v1257
  %1553 = vmatpush.msra.mxu0 %v1256
  %1554 = vmatmul.f32.gmra.mxu0 %v1496
  %v1555 = vpop.f32.mrf.mxu0
  %v1556 = vadd.f32 %v1236, %v1555
  %1557 = vdwg.mxu0
  %v1559 = vrot.slane %v1516, 4
  %v1561 = vadd.f32 %v1146, %v1559
  %v1562 = vxor.u32 %v1561, 2147483648
  %v1563 = vmul.f32 %v1562, 1.442695
  %v1564 = vpow.pop %v1563
  %v1565 = vadd.f32 %v1564, 1.0
  %v1566 = vrcp.pop %v1565
  %v1567 = vmul.f32 %v1565, %v1566
  %v1568 = vsub.f32 1.0, %v1567
  %v1569 = vmul.f32 %v1566, %v1568
  %v1570 = vadd.f32 %v1566, %v1569
  %vm1571 = vweird.f32 %v1565
  %vm1572 = vweird.f32 %v1566
  %vm1573 = vmor %vm1571, %vm1572
  %v1574 = vsel %vm1573, %v1566, %v1570
  %v1575 = vand.u32 2147483647, %v1565
  %vm1576 = vcmp.eq.f32.partialorder %v1575, 8.507059e+37
  %v1577 = vand.u32 %v1565, 2147483648
  %v1578 = vor.u32 1.1754944e-38, %v1577
  %v1579 = vsel %vm1576, %v1578, %v1574
  %v1580 = vmul.f32 1.0, %v1579
  %v1582 = vrot.slane %v1536, 4
  %v1584 = vadd.f32 %v1188, %v1582
  %v1585 = vxor.u32 %v1584, 2147483648
  %v1586 = vmul.f32 %v1585, 1.442695
  %v1587 = vpow.pop %v1586
  %v1588 = vadd.f32 %v1587, 1.0
  %v1589 = vrcp.pop %v1588
  %v1590 = vmul.f32 %v1588, %v1589
  %v1591 = vsub.f32 1.0, %v1590
  %v1592 = vmul.f32 %v1589, %v1591
  %v1593 = vadd.f32 %v1589, %v1592
  %vm1594 = vweird.f32 %v1588
  %vm1595 = vweird.f32 %v1589
  %vm1596 = vmor %vm1594, %vm1595
  %v1597 = vsel %vm1596, %v1589, %v1593
  %v1598 = vand.u32 2147483647, %v1588
  %vm1599 = vcmp.eq.f32.partialorder %v1598, 8.507059e+37
  %v1600 = vand.u32 %v1588, 2147483648
  %v1601 = vor.u32 1.1754944e-38, %v1600
  %v1602 = vsel %vm1599, %v1601, %v1597
  %v1603 = vmul.f32 1.0, %v1602
  %v1605 = vrot.slane %v1556, 4
  %v1607 = vmul.f32 %v1580, %v1605
  %v1608 = vadd.f32 %v1230, %v1607
  %v1609 = vtanh.pop %v1608
  %v1611 = vrot.slane %v1609, 2
  %v1613 = vsub.f32 %v1493, %v1611
  %v1615 = vrot.slane %v1613, 6
  %v1617 = vmul.f32 %v1603, %v1615
  %v1618 = vadd.f32 %v1609, %v1617
  %v1620 = vrot.slane %v1618, 4
  %v1621 = vsel %vm181, %v1620, 0
  %1623 = vmatpush.msra.mxu0 0.0
  %1624 = vmatpush.msra.mxu0 0.0
  %1625 = vmatpush.msra.mxu0 0.0
  %1626 = vmatpush.msra.mxu0 0.0
  %1627 = vmatpush.msra.mxu0 0.0
  %1628 = vmatpush.msra.mxu0 0.0
  %1629 = vmatpush.msra.mxu0 0.0
  %1630 = vmatpush.msra.mxu0 0.0
  %1631 = vmatpush.msra.mxu0 %v1245
  %1632 = vmatpush.msra.mxu0 %v1244
  %1633 = vmatpush.msra.mxu0 %v1243
  %1634 = vmatpush.msra.mxu0 %v1242
  %1635 = vmatpush.msra.mxu0 %v1241
  %1636 = vmatpush.msra.mxu0 %v1240
  %1637 = vmatpush.msra.mxu0 %v1239
  %1638 = vmatpush.msra.mxu0 %v1238
  %1639 = vmatmul.f32.gmra.mxu0 %v1621
  %v1640 = vpop.f32.mrf.mxu0
  %v1641 = vadd.f32 0.0, %v1640
  %1642 = vdwg.mxu0
  %1643 = vmatpush.msra.mxu0 0.0
  %1644 = vmatpush.msra.mxu0 0.0
  %1645 = vmatpush.msra.mxu0 0.0
  %1646 = vmatpush.msra.mxu0 0.0
  %1647 = vmatpush.msra.mxu0 0.0
  %1648 = vmatpush.msra.mxu0 0.0
  %1649 = vmatpush.msra.mxu0 0.0
  %1650 = vmatpush.msra.mxu0 0.0
  %1651 = vmatpush.msra.mxu0 %v1254
  %1652 = vmatpush.msra.mxu0 %v1253
  %1653 = vmatpush.msra.mxu0 %v1252
  %1654 = vmatpush.msra.mxu0 %v1251
  %1655 = vmatpush.msra.mxu0 %v1250
  %1656 = vmatpush.msra.mxu0 %v1249
  %1657 = vmatpush.msra.mxu0 %v1248
  %1658 = vmatpush.msra.mxu0 %v1247
  %1659 = vmatmul.f32.gmra.mxu0 %v1621
  %v1660 = vpop.f32.mrf.mxu0
  %v1661 = vadd.f32 0.0, %v1660
  %1662 = vdwg.mxu0
  %1663 = vmatpush.msra.mxu0 0.0
  %1664 = vmatpush.msra.mxu0 0.0
  %1665 = vmatpush.msra.mxu0 0.0
  %1666 = vmatpush.msra.mxu0 0.0
  %1667 = vmatpush.msra.mxu0 0.0
  %1668 = vmatpush.msra.mxu0 0.0
  %1669 = vmatpush.msra.mxu0 0.0
  %1670 = vmatpush.msra.mxu0 0.0
  %1671 = vmatpush.msra.mxu0 %v1263
  %1672 = vmatpush.msra.mxu0 %v1262
  %1673 = vmatpush.msra.mxu0 %v1261
  %1674 = vmatpush.msra.mxu0 %v1260
  %1675 = vmatpush.msra.mxu0 %v1259
  %1676 = vmatpush.msra.mxu0 %v1258
  %1677 = vmatpush.msra.mxu0 %v1257
  %1678 = vmatpush.msra.mxu0 %v1256
  %1679 = vmatmul.f32.gmra.mxu0 %v1621
  %v1680 = vpop.f32.mrf.mxu0
  %v1681 = vadd.f32 %v1236, %v1680
  %1682 = vdwg.mxu0
  %v1684 = vrot.slane %v1641, 2
  %v1686 = vadd.f32 %v1146, %v1684
  %v1687 = vxor.u32 %v1686, 2147483648
  %v1688 = vmul.f32 %v1687, 1.442695
  %v1689 = vpow.pop %v1688
  %v1690 = vadd.f32 %v1689, 1.0
  %v1691 = vrcp.pop %v1690
  %v1692 = vmul.f32 %v1690, %v1691
  %v1693 = vsub.f32 1.0, %v1692
  %v1694 = vmul.f32 %v1691, %v1693
  %v1695 = vadd.f32 %v1691, %v1694
  %vm1696 = vweird.f32 %v1690
  %vm1697 = vweird.f32 %v1691
  %vm1698 = vmor %vm1696, %vm1697
  %v1699 = vsel %vm1698, %v1691, %v1695
  %v1700 = vand.u32 2147483647, %v1690
  %vm1701 = vcmp.eq.f32.partialorder %v1700, 8.507059e+37
  %v1702 = vand.u32 %v1690, 2147483648
  %v1703 = vor.u32 1.1754944e-38, %v1702
  %v1704 = vsel %vm1701, %v1703, %v1699
  %v1705 = vmul.f32 1.0, %v1704
  %v1707 = vrot.slane %v1661, 2
  %v1709 = vadd.f32 %v1188, %v1707
  %v1710 = vxor.u32 %v1709, 2147483648
  %v1711 = vmul.f32 %v1710, 1.442695
  %v1712 = vpow.pop %v1711
  %v1713 = vadd.f32 %v1712, 1.0
  %v1714 = vrcp.pop %v1713
  %v1715 = vmul.f32 %v1713, %v1714
  %v1716 = vsub.f32 1.0, %v1715
  %v1717 = vmul.f32 %v1714, %v1716
  %v1718 = vadd.f32 %v1714, %v1717
  %vm1719 = vweird.f32 %v1713
  %vm1720 = vweird.f32 %v1714
  %vm1721 = vmor %vm1719, %vm1720
  %v1722 = vsel %vm1721, %v1714, %v1718
  %v1723 = vand.u32 2147483647, %v1713
  %vm1724 = vcmp.eq.f32.partialorder %v1723, 8.507059e+37
  %v1725 = vand.u32 %v1713, 2147483648
  %v1726 = vor.u32 1.1754944e-38, %v1725
  %v1727 = vsel %vm1724, %v1726, %v1722
  %v1728 = vmul.f32 1.0, %v1727
  %v1730 = vrot.slane %v1681, 2
  %v1732 = vmul.f32 %v1705, %v1730
  %v1733 = vadd.f32 %v1230, %v1732
  %v1734 = vtanh.pop %v1733
  %v1736 = vrot.slane %v1734, 2
  %v1738 = vsub.f32 %v1618, %v1736
  %v1740 = vrot.slane %v1738, 6
  %v1742 = vmul.f32 %v1728, %v1740
  %v1743 = vadd.f32 %v1734, %v1742
  %v1745 = vrot.slane %v1743, 6
  %v1746 = vsel %vm181, %v1745, 0
  %1748 = vmatpush.msra.mxu0 0.0
  %1749 = vmatpush.msra.mxu0 0.0
  %1750 = vmatpush.msra.mxu0 0.0
  %1751 = vmatpush.msra.mxu0 0.0
  %1752 = vmatpush.msra.mxu0 0.0
  %1753 = vmatpush.msra.mxu0 0.0
  %1754 = vmatpush.msra.mxu0 0.0
  %1755 = vmatpush.msra.mxu0 0.0
  %1756 = vmatpush.msra.mxu0 %v1245
  %1757 = vmatpush.msra.mxu0 %v1244
  %1758 = vmatpush.msra.mxu0 %v1243
  %1759 = vmatpush.msra.mxu0 %v1242
  %1760 = vmatpush.msra.mxu0 %v1241
  %1761 = vmatpush.msra.mxu0 %v1240
  %1762 = vmatpush.msra.mxu0 %v1239
  %1763 = vmatpush.msra.mxu0 %v1238
  %1764 = vmatmul.f32.gmra.mxu0 %v1746
  %v1765 = vpop.f32.mrf.mxu0
  %v1766 = vadd.f32 0.0, %v1765
  %1767 = vdwg.mxu0
  %1768 = vmatpush.msra.mxu0 0.0
  %1769 = vmatpush.msra.mxu0 0.0
  %1770 = vmatpush.msra.mxu0 0.0
  %1771 = vmatpush.msra.mxu0 0.0
  %1772 = vmatpush.msra.mxu0 0.0
  %1773 = vmatpush.msra.mxu0 0.0
  %1774 = vmatpush.msra.mxu0 0.0
  %1775 = vmatpush.msra.mxu0 0.0
  %1776 = vmatpush.msra.mxu0 %v1254
  %1777 = vmatpush.msra.mxu0 %v1253
  %1778 = vmatpush.msra.mxu0 %v1252
  %1779 = vmatpush.msra.mxu0 %v1251
  %1780 = vmatpush.msra.mxu0 %v1250
  %1781 = vmatpush.msra.mxu0 %v1249
  %1782 = vmatpush.msra.mxu0 %v1248
  %1783 = vmatpush.msra.mxu0 %v1247
  %1784 = vmatmul.f32.gmra.mxu0 %v1746
  %v1785 = vpop.f32.mrf.mxu0
  %v1786 = vadd.f32 0.0, %v1785
  %1787 = vdwg.mxu0
  %1788 = vmatpush.msra.mxu0 0.0
  %1789 = vmatpush.msra.mxu0 0.0
  %1790 = vmatpush.msra.mxu0 0.0
  %1791 = vmatpush.msra.mxu0 0.0
  %1792 = vmatpush.msra.mxu0 0.0
  %1793 = vmatpush.msra.mxu0 0.0
  %1794 = vmatpush.msra.mxu0 0.0
  %1795 = vmatpush.msra.mxu0 0.0
  %1796 = vmatpush.msra.mxu0 %v1263
  %1797 = vmatpush.msra.mxu0 %v1262
  %1798 = vmatpush.msra.mxu0 %v1261
  %1799 = vmatpush.msra.mxu0 %v1260
  %1800 = vmatpush.msra.mxu0 %v1259
  %1801 = vmatpush.msra.mxu0 %v1258
  %1802 = vmatpush.msra.mxu0 %v1257
  %1803 = vmatpush.msra.mxu0 %v1256
  %1804 = vmatmul.f32.gmra.mxu0 %v1746
  %v1805 = vpop.f32.mrf.mxu0
  %v1806 = vadd.f32 %v1236, %v1805
  %1807 = vdwg.mxu0
  %v1808 = vadd.f32 %v1149, %v1766
  %v1809 = vxor.u32 %v1808, 2147483648
  %v1810 = vmul.f32 %v1809, 1.442695
  %v1811 = vpow.pop %v1810
  %v1812 = vadd.f32 %v1811, 1.0
  %v1813 = vrcp.pop %v1812
  %v1814 = vmul.f32 %v1812, %v1813
  %v1815 = vsub.f32 1.0, %v1814
  %v1816 = vmul.f32 %v1813, %v1815
  %v1817 = vadd.f32 %v1813, %v1816
  %vm1818 = vweird.f32 %v1812
  %vm1819 = vweird.f32 %v1813
  %vm1820 = vmor %vm1818, %vm1819
  %v1821 = vsel %vm1820, %v1813, %v1817
  %v1822 = vand.u32 2147483647, %v1812
  %vm1823 = vcmp.eq.f32.partialorder %v1822, 8.507059e+37
  %v1824 = vand.u32 %v1812, 2147483648
  %v1825 = vor.u32 1.1754944e-38, %v1824
  %v1826 = vsel %vm1823, %v1825, %v1821
  %v1827 = vmul.f32 1.0, %v1826
  %v1828 = vadd.f32 %v1191, %v1786
  %v1829 = vxor.u32 %v1828, 2147483648
  %v1830 = vmul.f32 %v1829, 1.442695
  %v1831 = vpow.pop %v1830
  %v1832 = vadd.f32 %v1831, 1.0
  %v1833 = vrcp.pop %v1832
  %v1834 = vmul.f32 %v1832, %v1833
  %v1835 = vsub.f32 1.0, %v1834
  %v1836 = vmul.f32 %v1833, %v1835
  %v1837 = vadd.f32 %v1833, %v1836
  %vm1838 = vweird.f32 %v1832
  %vm1839 = vweird.f32 %v1833
  %vm1840 = vmor %vm1838, %vm1839
  %v1841 = vsel %vm1840, %v1833, %v1837
  %v1842 = vand.u32 2147483647, %v1832
  %vm1843 = vcmp.eq.f32.partialorder %v1842, 8.507059e+37
  %v1844 = vand.u32 %v1832, 2147483648
  %v1845 = vor.u32 1.1754944e-38, %v1844
  %v1846 = vsel %vm1843, %v1845, %v1841
  %v1847 = vmul.f32 1.0, %v1846
  %v1848 = vmul.f32 %v1827, %v1806
  %v1849 = vadd.f32 %v1233, %v1848
  %v1850 = vtanh.pop %v1849
  %v1852 = vrot.slane %v1850, 2
  %v1854 = vsub.f32 %v1743, %v1852
  %v1856 = vrot.slane %v1854, 6
  %v1858 = vmul.f32 %v1847, %v1856
  %v1859 = vadd.f32 %v1850, %v1858
  %v1861 = vsel %vm181, %v1859, 0
  %1863 = vmatpush.msra.mxu0 0.0
  %1864 = vmatpush.msra.mxu0 0.0
  %1865 = vmatpush.msra.mxu0 0.0
  %1866 = vmatpush.msra.mxu0 0.0
  %1867 = vmatpush.msra.mxu0 0.0
  %1868 = vmatpush.msra.mxu0 0.0
  %1869 = vmatpush.msra.mxu0 0.0
  %1870 = vmatpush.msra.mxu0 0.0
  %1871 = vmatpush.msra.mxu0 %v1245
  %1872 = vmatpush.msra.mxu0 %v1244
  %1873 = vmatpush.msra.mxu0 %v1243
  %1874 = vmatpush.msra.mxu0 %v1242
  %1875 = vmatpush.msra.mxu0 %v1241
  %1876 = vmatpush.msra.mxu0 %v1240
  %1877 = vmatpush.msra.mxu0 %v1239
  %1878 = vmatpush.msra.mxu0 %v1238
  %1879 = vmatmul.f32.gmra.mxu0 %v1861
  %v1880 = vpop.f32.mrf.mxu0
  %v1881 = vadd.f32 0.0, %v1880
  %1882 = vdwg.mxu0
  %1883 = vmatpush.msra.mxu0 0.0
  %1884 = vmatpush.msra.mxu0 0.0
  %1885 = vmatpush.msra.mxu0 0.0
  %1886 = vmatpush.msra.mxu0 0.0
  %1887 = vmatpush.msra.mxu0 0.0
  %1888 = vmatpush.msra.mxu0 0.0
  %1889 = vmatpush.msra.mxu0 0.0
  %1890 = vmatpush.msra.mxu0 0.0
  %1891 = vmatpush.msra.mxu0 %v1254
  %1892 = vmatpush.msra.mxu0 %v1253
  %1893 = vmatpush.msra.mxu0 %v1252
  %1894 = vmatpush.msra.mxu0 %v1251
  %1895 = vmatpush.msra.mxu0 %v1250
  %1896 = vmatpush.msra.mxu0 %v1249
  %1897 = vmatpush.msra.mxu0 %v1248
  %1898 = vmatpush.msra.mxu0 %v1247
  %1899 = vmatmul.f32.gmra.mxu0 %v1861
  %v1900 = vpop.f32.mrf.mxu0
  %v1901 = vadd.f32 0.0, %v1900
  %1902 = vdwg.mxu0
  %1903 = vmatpush.msra.mxu0 0.0
  %1904 = vmatpush.msra.mxu0 0.0
  %1905 = vmatpush.msra.mxu0 0.0
  %1906 = vmatpush.msra.mxu0 0.0
  %1907 = vmatpush.msra.mxu0 0.0
  %1908 = vmatpush.msra.mxu0 0.0
  %1909 = vmatpush.msra.mxu0 0.0
  %1910 = vmatpush.msra.mxu0 0.0
  %1911 = vmatpush.msra.mxu0 %v1263
  %1912 = vmatpush.msra.mxu0 %v1262
  %1913 = vmatpush.msra.mxu0 %v1261
  %1914 = vmatpush.msra.mxu0 %v1260
  %1915 = vmatpush.msra.mxu0 %v1259
  %1916 = vmatpush.msra.mxu0 %v1258
  %1917 = vmatpush.msra.mxu0 %v1257
  %1918 = vmatpush.msra.mxu0 %v1256
  %1919 = vmatmul.f32.gmra.mxu0 %v1861
  %v1920 = vpop.f32.mrf.mxu0
  %v1921 = vadd.f32 %v1236, %v1920
  %1922 = vdwg.mxu0
  %v1924 = vrot.slane %v1881, 6
  %v1926 = vadd.f32 %v1149, %v1924
  %v1927 = vxor.u32 %v1926, 2147483648
  %v1928 = vmul.f32 %v1927, 1.442695
  %v1929 = vpow.pop %v1928
  %v1930 = vadd.f32 %v1929, 1.0
  %v1931 = vrcp.pop %v1930
  %v1932 = vmul.f32 %v1930, %v1931
  %v1933 = vsub.f32 1.0, %v1932
  %v1934 = vmul.f32 %v1931, %v1933
  %v1935 = vadd.f32 %v1931, %v1934
  %vm1936 = vweird.f32 %v1930
  %vm1937 = vweird.f32 %v1931
  %vm1938 = vmor %vm1936, %vm1937
  %v1939 = vsel %vm1938, %v1931, %v1935
  %v1940 = vand.u32 2147483647, %v1930
  %vm1941 = vcmp.eq.f32.partialorder %v1940, 8.507059e+37
  %v1942 = vand.u32 %v1930, 2147483648
  %v1943 = vor.u32 1.1754944e-38, %v1942
  %v1944 = vsel %vm1941, %v1943, %v1939
  %v1945 = vmul.f32 1.0, %v1944
  %v1947 = vrot.slane %v1901, 6
  %v1949 = vadd.f32 %v1191, %v1947
  %v1950 = vxor.u32 %v1949, 2147483648
  %v1951 = vmul.f32 %v1950, 1.442695
  %v1952 = vpow.pop %v1951
  %v1953 = vadd.f32 %v1952, 1.0
  %v1954 = vrcp.pop %v1953
  %v1955 = vmul.f32 %v1953, %v1954
  %v1956 = vsub.f32 1.0, %v1955
  %v1957 = vmul.f32 %v1954, %v1956
  %v1958 = vadd.f32 %v1954, %v1957
  %vm1959 = vweird.f32 %v1953
  %vm1960 = vweird.f32 %v1954
  %vm1961 = vmor %vm1959, %vm1960
  %v1962 = vsel %vm1961, %v1954, %v1958
  %v1963 = vand.u32 2147483647, %v1953
  %vm1964 = vcmp.eq.f32.partialorder %v1963, 8.507059e+37
  %v1965 = vand.u32 %v1953, 2147483648
  %v1966 = vor.u32 1.1754944e-38, %v1965
  %v1967 = vsel %vm1964, %v1966, %v1962
  %v1968 = vmul.f32 1.0, %v1967
  %v1970 = vrot.slane %v1921, 6
  %v1972 = vmul.f32 %v1945, %v1970
  %v1973 = vadd.f32 %v1233, %v1972
  %v1974 = vtanh.pop %v1973
  %v1976 = vrot.slane %v1974, 2
  %v1978 = vsub.f32 %v1859, %v1976
  %v1980 = vrot.slane %v1978, 6
  %v1982 = vmul.f32 %v1968, %v1980
  %v1983 = vadd.f32 %v1974, %v1982
  %v1985 = vrot.slane %v1983, 2
  %v1986 = vsel %vm181, %v1985, 0
  %1988 = vmatpush.msra.mxu0 0.0
  %1989 = vmatpush.msra.mxu0 0.0
  %1990 = vmatpush.msra.mxu0 0.0
  %1991 = vmatpush.msra.mxu0 0.0
  %1992 = vmatpush.msra.mxu0 0.0
  %1993 = vmatpush.msra.mxu0 0.0
  %1994 = vmatpush.msra.mxu0 0.0
  %1995 = vmatpush.msra.mxu0 0.0
  %1996 = vmatpush.msra.mxu0 %v1245
  %1997 = vmatpush.msra.mxu0 %v1244
  %1998 = vmatpush.msra.mxu0 %v1243
  %1999 = vmatpush.msra.mxu0 %v1242
  %2000 = vmatpush.msra.mxu0 %v1241
  %2001 = vmatpush.msra.mxu0 %v1240
  %2002 = vmatpush.msra.mxu0 %v1239
  %2003 = vmatpush.msra.mxu0 %v1238
  %2004 = vmatmul.f32.gmra.mxu0 %v1986
  %v2005 = vpop.f32.mrf.mxu0
  %v2006 = vadd.f32 0.0, %v2005
  %2007 = vdwg.mxu0
  %2008 = vmatpush.msra.mxu0 0.0
  %2009 = vmatpush.msra.mxu0 0.0
  %2010 = vmatpush.msra.mxu0 0.0
  %2011 = vmatpush.msra.mxu0 0.0
  %2012 = vmatpush.msra.mxu0 0.0
  %2013 = vmatpush.msra.mxu0 0.0
  %2014 = vmatpush.msra.mxu0 0.0
  %2015 = vmatpush.msra.mxu0 0.0
  %2016 = vmatpush.msra.mxu0 %v1254
  %2017 = vmatpush.msra.mxu0 %v1253
  %2018 = vmatpush.msra.mxu0 %v1252
  %2019 = vmatpush.msra.mxu0 %v1251
  %2020 = vmatpush.msra.mxu0 %v1250
  %2021 = vmatpush.msra.mxu0 %v1249
  %2022 = vmatpush.msra.mxu0 %v1248
  %2023 = vmatpush.msra.mxu0 %v1247
  %2024 = vmatmul.f32.gmra.mxu0 %v1986
  %v2025 = vpop.f32.mrf.mxu0
  %v2026 = vadd.f32 0.0, %v2025
  %2027 = vdwg.mxu0
  %2028 = vmatpush.msra.mxu0 0.0
  %2029 = vmatpush.msra.mxu0 0.0
  %2030 = vmatpush.msra.mxu0 0.0
  %2031 = vmatpush.msra.mxu0 0.0
  %2032 = vmatpush.msra.mxu0 0.0
  %2033 = vmatpush.msra.mxu0 0.0
  %2034 = vmatpush.msra.mxu0 0.0
  %2035 = vmatpush.msra.mxu0 0.0
  %2036 = vmatpush.msra.mxu0 %v1263
  %2037 = vmatpush.msra.mxu0 %v1262
  %2038 = vmatpush.msra.mxu0 %v1261
  %2039 = vmatpush.msra.mxu0 %v1260
  %2040 = vmatpush.msra.mxu0 %v1259
  %2041 = vmatpush.msra.mxu0 %v1258
  %2042 = vmatpush.msra.mxu0 %v1257
  %2043 = vmatpush.msra.mxu0 %v1256
  %2044 = vmatmul.f32.gmra.mxu0 %v1986
  %v2045 = vpop.f32.mrf.mxu0
  %v2046 = vadd.f32 %v1236, %v2045
  %2047 = vdwg.mxu0
  %v2049 = vrot.slane %v2006, 4
  %v2051 = vadd.f32 %v1149, %v2049
  %v2052 = vxor.u32 %v2051, 2147483648
  %v2053 = vmul.f32 %v2052, 1.442695
  %v2054 = vpow.pop %v2053
  %v2055 = vadd.f32 %v2054, 1.0
  %v2056 = vrcp.pop %v2055
  %v2057 = vmul.f32 %v2055, %v2056
  %v2058 = vsub.f32 1.0, %v2057
  %v2059 = vmul.f32 %v2056, %v2058
  %v2060 = vadd.f32 %v2056, %v2059
  %vm2061 = vweird.f32 %v2055
  %vm2062 = vweird.f32 %v2056
  %vm2063 = vmor %vm2061, %vm2062
  %v2064 = vsel %vm2063, %v2056, %v2060
  %v2065 = vand.u32 2147483647, %v2055
  %vm2066 = vcmp.eq.f32.partialorder %v2065, 8.507059e+37
  %v2067 = vand.u32 %v2055, 2147483648
  %v2068 = vor.u32 1.1754944e-38, %v2067
  %v2069 = vsel %vm2066, %v2068, %v2064
  %v2070 = vmul.f32 1.0, %v2069
  %v2072 = vrot.slane %v2026, 4
  %v2074 = vadd.f32 %v1191, %v2072
  %v2075 = vxor.u32 %v2074, 2147483648
  %v2076 = vmul.f32 %v2075, 1.442695
  %v2077 = vpow.pop %v2076
  %v2078 = vadd.f32 %v2077, 1.0
  %v2079 = vrcp.pop %v2078
  %v2080 = vmul.f32 %v2078, %v2079
  %v2081 = vsub.f32 1.0, %v2080
  %v2082 = vmul.f32 %v2079, %v2081
  %v2083 = vadd.f32 %v2079, %v2082
  %vm2084 = vweird.f32 %v2078
  %vm2085 = vweird.f32 %v2079
  %vm2086 = vmor %vm2084, %vm2085
  %v2087 = vsel %vm2086, %v2079, %v2083
  %v2088 = vand.u32 2147483647, %v2078
  %vm2089 = vcmp.eq.f32.partialorder %v2088, 8.507059e+37
  %v2090 = vand.u32 %v2078, 2147483648
  %v2091 = vor.u32 1.1754944e-38, %v2090
  %v2092 = vsel %vm2089, %v2091, %v2087
  %v2093 = vmul.f32 1.0, %v2092
  %v2095 = vrot.slane %v2046, 4
  %v2097 = vmul.f32 %v2070, %v2095
  %v2098 = vadd.f32 %v1233, %v2097
  %v2099 = vtanh.pop %v2098
  %v2101 = vrot.slane %v2099, 2
  %v2103 = vsub.f32 %v1983, %v2101
  %v2105 = vrot.slane %v2103, 6
  %v2107 = vmul.f32 %v2093, %v2105
  %v2108 = vadd.f32 %v2099, %v2107
  %v2110 = vrot.slane %v2108, 4
  %v2111 = vsel %vm181, %v2110, 0
  %2113 = vmatpush.msra.mxu0 0.0
  %2114 = vmatpush.msra.mxu0 0.0
  %2115 = vmatpush.msra.mxu0 0.0
  %2116 = vmatpush.msra.mxu0 0.0
  %2117 = vmatpush.msra.mxu0 0.0
  %2118 = vmatpush.msra.mxu0 0.0
  %2119 = vmatpush.msra.mxu0 0.0
  %2120 = vmatpush.msra.mxu0 0.0
  %2121 = vmatpush.msra.mxu0 %v1245
  %2122 = vmatpush.msra.mxu0 %v1244
  %2123 = vmatpush.msra.mxu0 %v1243
  %2124 = vmatpush.msra.mxu0 %v1242
  %2125 = vmatpush.msra.mxu0 %v1241
  %2126 = vmatpush.msra.mxu0 %v1240
  %2127 = vmatpush.msra.mxu0 %v1239
  %2128 = vmatpush.msra.mxu0 %v1238
  %2129 = vmatmul.f32.gmra.mxu0 %v2111
  %v2130 = vpop.f32.mrf.mxu0
  %v2131 = vadd.f32 0.0, %v2130
  %2132 = vdwg.mxu0
  %2133 = vmatpush.msra.mxu0 0.0
  %2134 = vmatpush.msra.mxu0 0.0
  %2135 = vmatpush.msra.mxu0 0.0
  %2136 = vmatpush.msra.mxu0 0.0
  %2137 = vmatpush.msra.mxu0 0.0
  %2138 = vmatpush.msra.mxu0 0.0
  %2139 = vmatpush.msra.mxu0 0.0
  %2140 = vmatpush.msra.mxu0 0.0
  %2141 = vmatpush.msra.mxu0 %v1254
  %2142 = vmatpush.msra.mxu0 %v1253
  %2143 = vmatpush.msra.mxu0 %v1252
  %2144 = vmatpush.msra.mxu0 %v1251
  %2145 = vmatpush.msra.mxu0 %v1250
  %2146 = vmatpush.msra.mxu0 %v1249
  %2147 = vmatpush.msra.mxu0 %v1248
  %2148 = vmatpush.msra.mxu0 %v1247
  %2149 = vmatmul.f32.gmra.mxu0 %v2111
  %v2150 = vpop.f32.mrf.mxu0
  %v2151 = vadd.f32 0.0, %v2150
  %2152 = vdwg.mxu0
  %2153 = vmatpush.msra.mxu0 0.0
  %2154 = vmatpush.msra.mxu0 0.0
  %2155 = vmatpush.msra.mxu0 0.0
  %2156 = vmatpush.msra.mxu0 0.0
  %2157 = vmatpush.msra.mxu0 0.0
  %2158 = vmatpush.msra.mxu0 0.0
  %2159 = vmatpush.msra.mxu0 0.0
  %2160 = vmatpush.msra.mxu0 0.0
  %2161 = vmatpush.msra.mxu0 %v1263
  %2162 = vmatpush.msra.mxu0 %v1262
  %2163 = vmatpush.msra.mxu0 %v1261
  %2164 = vmatpush.msra.mxu0 %v1260
  %2165 = vmatpush.msra.mxu0 %v1259
  %2166 = vmatpush.msra.mxu0 %v1258
  %2167 = vmatpush.msra.mxu0 %v1257
  %2168 = vmatpush.msra.mxu0 %v1256
  %2169 = vmatmul.f32.gmra.mxu0 %v2111
  %v2170 = vpop.f32.mrf.mxu0
  %v2171 = vadd.f32 %v1236, %v2170
  %2172 = vdwg.mxu0
  %v2174 = vrot.slane %v2131, 2
  %v2176 = vadd.f32 %v1149, %v2174
  %v2177 = vxor.u32 %v2176, 2147483648
  %v2178 = vmul.f32 %v2177, 1.442695
  %v2179 = vpow.pop %v2178
  %v2180 = vadd.f32 %v2179, 1.0
  %v2181 = vrcp.pop %v2180
  %v2182 = vmul.f32 %v2180, %v2181
  %v2183 = vsub.f32 1.0, %v2182
  %v2184 = vmul.f32 %v2181, %v2183
  %v2185 = vadd.f32 %v2181, %v2184
  %vm2186 = vweird.f32 %v2180
  %vm2187 = vweird.f32 %v2181
  %vm2188 = vmor %vm2186, %vm2187
  %v2189 = vsel %vm2188, %v2181, %v2185
  %v2190 = vand.u32 2147483647, %v2180
  %vm2191 = vcmp.eq.f32.partialorder %v2190, 8.507059e+37
  %v2192 = vand.u32 %v2180, 2147483648
  %v2193 = vor.u32 1.1754944e-38, %v2192
  %v2194 = vsel %vm2191, %v2193, %v2189
  %v2195 = vmul.f32 1.0, %v2194
  %v2197 = vrot.slane %v2151, 2
  %v2199 = vadd.f32 %v1191, %v2197
  %v2200 = vxor.u32 %v2199, 2147483648
  %v2201 = vmul.f32 %v2200, 1.442695
  %v2202 = vpow.pop %v2201
  %v2203 = vadd.f32 %v2202, 1.0
  %v2204 = vrcp.pop %v2203
  %v2205 = vmul.f32 %v2203, %v2204
  %v2206 = vsub.f32 1.0, %v2205
  %v2207 = vmul.f32 %v2204, %v2206
  %v2208 = vadd.f32 %v2204, %v2207
  %vm2209 = vweird.f32 %v2203
  %vm2210 = vweird.f32 %v2204
  %vm2211 = vmor %vm2209, %vm2210
  %v2212 = vsel %vm2211, %v2204, %v2208
  %v2213 = vand.u32 2147483647, %v2203
  %vm2214 = vcmp.eq.f32.partialorder %v2213, 8.507059e+37
  %v2215 = vand.u32 %v2203, 2147483648
  %v2216 = vor.u32 1.1754944e-38, %v2215
  %v2217 = vsel %vm2214, %v2216, %v2212
  %v2218 = vmul.f32 1.0, %v2217
  %v2220 = vrot.slane %v2171, 2
  %v2222 = vmul.f32 %v2195, %v2220
  %v2223 = vadd.f32 %v1233, %v2222
  %v2224 = vtanh.pop %v2223
  %v2226 = vrot.slane %v2224, 2
  %v2228 = vsub.f32 %v2108, %v2226
  %v2230 = vrot.slane %v2228, 6
  %v2232 = vmul.f32 %v2218, %v2230
  %v2233 = vadd.f32 %v2224, %v2232
  %v2234 = vsel %vm1067, %v1369, %v1493
  %v2235 = vsel %vm1069, %v2234, %v1618
  %v2236 = vsel %vm1071, %v2235, %v1743
  %v2237 = vsel %vm1067, %v1859, %v1983
  %v2238 = vsel %vm1069, %v2237, %v2108
  %v2239 = vsel %vm1071, %v2238, %v2233
  %v2241 = vrot.slane %v2233, 6
  %v2243 = vrot.slane %v2108, 2
  %v2245 = vrot.slane %v1983, 6
  %v2247 = vrot.slane %v1859, 2
  %v2250 = vrot.slane %v1618, 2
  %v2252 = vrot.slane %v1493, 6
  %v2254 = vrot.slane %v1369, 2
  %v2256 = vsel %vm1067, %v2241, %v2243
  %v2257 = vsel %vm1069, %v2256, %v2245
  %v2258 = vsel %vm1071, %v2257, %v2247
  %v2259 = vsel %vm1067, %v1745, %v2250
  %v2260 = vsel %vm1069, %v2259, %v2252
  %v2261 = vsel %vm1071, %v2260, %v2254
  %s2262 = scalar_lea.vmem %s2, 1792
  %v2263 = vld [vmem:[%s2262] sm:$0xff]
  %v2264 = vld [vmem:[%s2262 + $0x8] sm:$0xff]
  %v2265 = vld [vmem:[%s2262 + $0x10] sm:$0xff]
  %v2266 = vld [vmem:[%s2262 + $0x18] sm:$0xff]
  %v2267 = vld [vmem:[%s2262 + $0x20] sm:$0xff]
  %v2268 = vld [vmem:[%s2262 + $0x28] sm:$0xff]
  %v2269 = vld [vmem:[%s2262 + $0x30] sm:$0xff]
  %v2270 = vld [vmem:[%s2262 + $0x38] sm:$0xff]
  %2273 = vrot.lane.b32.xlu0 %v2258, 96
  %v2274 = vpop.permute.xlu0 %2273
  %2275 = vrot.lane.b32.xlu0 %v2261, 96
  %v2276 = vpop.permute.xlu0 %2275
  %v2277 = vsel %vm1094, %v2274, 0
  %v2279 = vsel %vm1094, %v2276, 0
  %2281 = vmatpush.msra.mxu0 0.0
  %2282 = vmatpush.msra.mxu0 0.0
  %2283 = vmatpush.msra.mxu0 0.0
  %2284 = vmatpush.msra.mxu0 0.0
  %2285 = vmatpush.msra.mxu0 0.0
  %2286 = vmatpush.msra.mxu0 0.0
  %2287 = vmatpush.msra.mxu0 0.0
  %2288 = vmatpush.msra.mxu0 0.0
  %2289 = vmatpush.msra.mxu0 0.0
  %2290 = vmatpush.msra.mxu0 0.0
  %2291 = vmatpush.msra.mxu0 0.0
  %2292 = vmatpush.msra.mxu0 0.0
  %2293 = vmatpush.msra.mxu0 %v2270
  %2294 = vmatpush.msra.mxu0 %v2269
  %2295 = vmatpush.msra.mxu0 %v2268
  %2296 = vmatpush.msra.mxu0 %v2267
  %2297 = vmatmul.f32.gmra.mxu0 %v2277
  %v2298 = vpop.f32.mrf.mxu0
  %v2299 = vadd.f32 0.0, %v2298
  %2300 = vmatmul.f32.gmra.mxu0 %v2279
  %v2301 = vpop.f32.mrf.mxu0
  %v2302 = vadd.f32 0.0, %v2301
  %2303 = vdwg.mxu0
  %v2305 = vsel %vm1094, %v2236, 0
  %v2308 = vsel %vm1094, %v2239, 0
  %2310 = vmatpush.msra.mxu0 0.0
  %2311 = vmatpush.msra.mxu0 0.0
  %2312 = vmatpush.msra.mxu0 0.0
  %2313 = vmatpush.msra.mxu0 0.0
  %2314 = vmatpush.msra.mxu0 0.0
  %2315 = vmatpush.msra.mxu0 0.0
  %2316 = vmatpush.msra.mxu0 0.0
  %2317 = vmatpush.msra.mxu0 0.0
  %2318 = vmatpush.msra.mxu0 0.0
  %2319 = vmatpush.msra.mxu0 0.0
  %2320 = vmatpush.msra.mxu0 0.0
  %2321 = vmatpush.msra.mxu0 0.0
  %2322 = vmatpush.msra.mxu0 %v2266
  %2323 = vmatpush.msra.mxu0 %v2265
  %2324 = vmatpush.msra.mxu0 %v2264
  %2325 = vmatpush.msra.mxu0 %v2263
  %2326 = vmatmul.f32.gmra.mxu0 %v2305
  %v2327 = vpop.f32.mrf.mxu0
  %v2328 = vadd.f32 %v2299, %v2327
  %2329 = vmatmul.f32.gmra.mxu0 %v2308
  %v2330 = vpop.f32.mrf.mxu0
  %v2331 = vadd.f32 %v2302, %v2330
  %2332 = vdwg.mxu0
  %v2333 = vld [vmem:[%s3 + $0xa] sm:$0x1]
  %v2334 = vperm.slane %v2333, 0
  %v2335 = vadd.f32 %v2328, %v2334
  %v2336 = vadd.f32 %v2331, %v2334
  %2337 = vst.msk [vmem:[%s4] sm:$0xff] %vm1094, %v2335
  %2338 = vst.msk [vmem:[%s4 + $0x8] sm:$0xff] %vm1094, %v2336
  // Predicated region
  $region18: #{dismix_decoder_forward.1} parent=0 // pred_check
    _
  $region19: #{dismix_decoder_forward.1} parent=0 // pred_check_branch
    %2340 = sbr.rel (0) target = $region21
  $region20: #{dismix_decoder_forward.1} parent=0 // pred_region
    _
  $region21: #{dismix_decoder_forward.1} parent=0 // pred_fallthru
    _
  // Predicated region
  $region22: #{dismix_decoder_forward.1} parent=0 // pred_check
    _
  $region23: #{dismix_decoder_forward.1} parent=0 // pred_check_branch
    %2342 = sbr.rel (0) target = $region25
  $region24: #{dismix_decoder_forward.1} parent=0 // pred_region
    _
  $region25: #{dismix_decoder_forward.1} parent=0 // pred_fallthru
    _

</llo_original>
